<compile_context>
chip_gen: v5e
topology: v5e:2x2
jax: 0.10.0
libtpu: 0.0.40
codegen_flags: <defaults>
</compile_context>

<pallas_src>
import functools

import jax
import jax.numpy as jnp
from jax.experimental import pallas as pl
from jax.experimental.pallas import tpu as pltpu


def _round_up(x, m):
    return ((x + m - 1) // m) * m


# ----------------------------------------------------------------------------
# Fused kernel
# ----------------------------------------------------------------------------
def _postnet_fused_kernel(x_hbm, w0_ref, wm_ref, wl_ref, sh_ref, bh_ref,
                          sl_ref, bl_ref, o_ref, xbuf, sem,
                          *, ksize, n_layers, halo_pad, tile_t, t_tiles, t_valid):
    """All postnet layers for one (batch, time-tile) program.

    x_hbm:  (N, T_ceil + 2*halo_pad, C0p) bf16 in HBM (memory_space=ANY)
    w0_ref: (K*C0p, Ep)         bf16   layer-0 weight (im2col layout)
    wm_ref: (n_mid, K*Ep, Ep)   bf16   middle-layer weights
    wl_ref: (K*Ep, CLp)         bf16   last-layer weight
    sh_ref/bh_ref: (n_layers-1, 1, Ep) f32  folded BN scale/shift, layers 0..n-2
    sl_ref/bl_ref: (1, CLp)            f32  folded BN scale/shift, last layer
    o_ref:  (1, tile_t, CLp)    f32 output tile
    xbuf:   (2, 1, tile_t + 2*halo_pad, C0p) bf16 VMEM double buffer
    sem:    DMA semaphores, shape (2,)
    """
    b = pl.program_id(0)
    ti = pl.program_id(1)
    rows_in = tile_t + 2 * halo_pad
    half = ksize // 2

    def window_copy(tile_idx, slot):
        start = pl.multiple_of(tile_idx * tile_t, 8)
        return pltpu.make_async_copy(
            x_hbm.at[pl.ds(b, 1), pl.ds(start, rows_in), :],
            xbuf.at[slot], sem.at[slot])

    # ---- Double-buffered input-window pipeline -----------------------------
    # Prime at the start of each batch's time loop (time axis is "arbitrary",
    # so every core that owns batch b executes ti == 0 first).
    @pl.when(ti == 0)
    def _():
        window_copy(0, 0).start()
        if t_tiles > 1:
            window_copy(1, 1).start()

    slot = ti & 1
    window_copy(ti, slot).wait()           # wait for the current tile's window

    if t_tiles > 2:
        # Prefetch the next tile's window (same batch) into the other slot
        # while this tile computes.  Tiles 0 and 1 were started by priming.
        @pl.when((ti >= 1) & (ti + 1 < t_tiles))
        def _():
            window_copy(ti + 1, 1 - slot).start()

    # ---- Fused conv + BN (+ tanh) chain on the resident tile ---------------
    t0 = ti * tile_t                       # start (in padded time) of this window

    def conv_bn(cur_bf16, w2d, scale, shift, layer_idx, apply_tanh):
        # "valid" conv on the halo-carrying buffer, as ONE MXU contraction.
        rows = cur_bf16.shape[0] - (ksize - 1)
        xcat = jnp.concatenate(
            [cur_bf16[k:k + rows, :] for k in range(ksize)], axis=1)
        acc = jnp.dot(xcat, w2d, preferred_element_type=jnp.float32)
        y = acc * scale + shift                       # folded BN, f32
        if apply_tanh:
            y = jnp.tanh(y)
        # Zero rows whose global position lies outside [0, T): this reproduces
        # the per-layer zero "same" padding at sequence boundaries / tile tails.
        g0 = t0 - halo_pad + half * (layer_idx + 1)
        gpos = jax.lax.broadcasted_iota(jnp.int32, (rows, 1), 0) + g0
        return jnp.where((gpos >= 0) & (gpos < t_valid), y, 0.0)

    cur = xbuf[slot][0]                                              # (rows_in, C0p) bf16
    y = conv_bn(cur, w0_ref[...], sh_ref[0], bh_ref[0], 0, True)
    for m in range(n_layers - 2):
        y = conv_bn(y.astype(jnp.bfloat16), wm_ref[m],
                    sh_ref[m + 1], bh_ref[m + 1], m + 1, True)
    y = conv_bn(y.astype(jnp.bfloat16), wl_ref[...],
                sl_ref[...], bl_ref[...], n_layers - 1, False)       # no tanh on last

    extra = halo_pad - half * n_layers            # leftover halo rows per side
    o_ref[0] = y[extra:extra + tile_t, :].astype(o_ref.dtype)


# ----------------------------------------------------------------------------
# Parameter construction / packing
# ----------------------------------------------------------------------------
def init_postnet_params(key, n_mel_channels, postnet_embedding_dim,
                        postnet_kernel_size, postnet_n_convolutions, bn_eps=1e-5):
    """Deterministic synthetic parameters; Conv bias + BatchNorm1d (eval) are
    folded into per-output-channel (scale, shift)."""
    dims = ([(n_mel_channels, postnet_embedding_dim)]
            + [(postnet_embedding_dim, postnet_embedding_dim)] * (postnet_n_convolutions - 2)
            + [(postnet_embedding_dim, n_mel_channels)])
    params = []
    for (c_in, c_out) in dims:
        key, kw, kb, kg, kbe, km, kv = jax.random.split(key, 7)
        bound = (6.0 / (c_in * postnet_kernel_size + c_out * postnet_kernel_size)) ** 0.5
        w = jax.random.uniform(kw, (postnet_kernel_size, c_in, c_out),
                               jnp.float32, -bound, bound)
        conv_bias = 0.05 * jax.random.normal(kb, (c_out,), jnp.float32)
        gamma = 1.0 + 0.1 * jax.random.normal(kg, (c_out,), jnp.float32)
        beta = 0.1 * jax.random.normal(kbe, (c_out,), jnp.float32)
        running_mean = 0.1 * jax.random.normal(km, (c_out,), jnp.float32)
        running_var = 1.0 + 0.1 * jnp.abs(jax.random.normal(kv, (c_out,), jnp.float32))
        scale = gamma / jnp.sqrt(running_var + bn_eps)
        shift = beta + (conv_bias - running_mean) * scale
        params.append((w, scale, shift))
    return params


def prepare_fused_params(params, *, lane=128, compute_dtype=jnp.bfloat16):
    """Pad channel dims to multiples of 128 (zero columns so padded output
    channels stay exactly zero), reshape weights to im2col (K*C_in, C_out),
    cast weights to bf16, keep BN scale/shift in f32."""
    n_layers = len(params)
    assert n_layers >= 3
    ksize, c0, e = params[0][0].shape
    cl = params[-1][0].shape[2]
    c0p = _round_up(c0, lane)
    ep = _round_up(e, lane)
    clp = _round_up(cl, lane)

    def pad_w(w, cip, cop):
        k, ci, co = w.shape
        w = jnp.pad(w, ((0, 0), (0, cip - ci), (0, cop - co)))
        return w.reshape(k * cip, cop).astype(compute_dtype)

    def pad_vec(v, cop):
        return jnp.pad(v, (0, cop - v.shape[0])).reshape(1, cop).astype(jnp.float32)

    w0 = pad_w(params[0][0], c0p, ep)
    wm = jnp.stack([pad_w(params[i][0], ep, ep) for i in range(1, n_layers - 1)])
    wl = pad_w(params[-1][0], ep, clp)
    sh = jnp.stack([pad_vec(params[i][1], ep) for i in range(n_layers - 1)])
    bh = jnp.stack([pad_vec(params[i][2], ep) for i in range(n_layers - 1)])
    sl = pad_vec(params[-1][1], clp)
    bl = pad_vec(params[-1][2], clp)

    return dict(w0=w0, wm=wm, wl=wl, sh=sh, bh=bh, sl=sl, bl=bl,
                n_layers=n_layers, ksize=ksize,
                c_in0=c0, c_in0_pad=c0p, embed=e, embed_pad=ep,
                c_out_last=cl, c_out_last_pad=clp)


# ----------------------------------------------------------------------------
# Forward wrapper
# ----------------------------------------------------------------------------
def postnet_forward(x_nct, fused, *, tile_t=256):
    """Postnet.forward (eval mode).  x_nct: (N, n_mel, T) like PyTorch."""
    w0, wm, wl = fused["w0"], fused["wm"], fused["wl"]
    sh, bh, sl, bl = fused["sh"], fused["bh"], fused["sl"], fused["bl"]
    n_layers, ksize = fused["n_layers"], fused["ksize"]
    c0, c0p = fused["c_in0"], fused["c_in0_pad"]
    cl, clp = fused["c_out_last"], fused["c_out_last_pad"]
    ep = fused["embed_pad"]

    n, c_in, t = x_nct.shape
    assert c_in == c0

    tile_t = _round_up(min(tile_t, _round_up(t, 16)), 16)
    t_tiles = pl.cdiv(t, tile_t)
    t_ceil = t_tiles * tile_t
    half = ksize // 2
    halo_needed = half * n_layers
    halo_pad = _round_up(halo_needed, 4)          # keep DMA window length 8-aligned
    rows_in = tile_t + 2 * halo_pad

    # NCT -> NTC, bf16, pad channels to 128 lanes and time with halo + tile tail.
    x = jnp.transpose(x_nct, (0, 2, 1)).astype(jnp.bfloat16)
    x = jnp.pad(x, ((0, 0), (halo_pad, halo_pad + (t_ceil - t)), (0, c0p - c0)))

    kern = functools.partial(_postnet_fused_kernel, ksize=ksize, n_layers=n_layers,
                             halo_pad=halo_pad, tile_t=tile_t, t_tiles=t_tiles,
                             t_valid=t)

    n_mid = n_layers - 2
    flops = 2 * n * t_ceil * ksize * (c0p * ep + n_mid * ep * ep + ep * clp)
    transcendentals = n * t_ceil * ep * (n_layers - 1)
    bytes_accessed = (x.size * x.dtype.itemsize
                      + (w0.size + wm.size + wl.size) * 2
                      + (sh.size + bh.size + sl.size + bl.size) * 4
                      + n * t_ceil * clp * 4)

    out = pl.pallas_call(
        kern,
        out_shape=jax.ShapeDtypeStruct((n, t_ceil, clp), jnp.float32),
        grid_spec=pltpu.PrefetchScalarGridSpec(
            num_scalar_prefetch=0,
            grid=(n, t_tiles),
            in_specs=[
                pl.BlockSpec(memory_space=pl.ANY),              # x stays in HBM
                pl.BlockSpec(w0.shape, lambda b, ti: (0, 0)),
                pl.BlockSpec(wm.shape, lambda b, ti: (0, 0, 0)),
                pl.BlockSpec(wl.shape, lambda b, ti: (0, 0)),
                pl.BlockSpec(sh.shape, lambda b, ti: (0, 0, 0)),
                pl.BlockSpec(bh.shape, lambda b, ti: (0, 0, 0)),
                pl.BlockSpec(sl.shape, lambda b, ti: (0, 0)),
                pl.BlockSpec(bl.shape, lambda b, ti: (0, 0)),
            ],
            out_specs=pl.BlockSpec((1, tile_t, clp), lambda b, ti: (b, ti, 0)),
            scratch_shapes=[
                pltpu.VMEM((2, 1, rows_in, c0p), jnp.bfloat16),  # double-buffered halo window
                pltpu.SemaphoreType.DMA((2,)),
            ],
        ),
        compiler_params=pltpu.CompilerParams(
            # Time axis must be sequential ("arbitrary") per core so the
            # cross-iteration input prefetch is valid; batch stays parallel.
            dimension_semantics=("parallel", "arbitrary"),
            vmem_limit_bytes=48 * 1024 * 1024,
        ),
        cost_estimate=pl.CostEstimate(flops=flops, transcendentals=transcendentals,
                                      bytes_accessed=bytes_accessed),
    )(x, w0, wm, wl, sh, bh, sl, bl)

    out = out[:, :t, :cl]                 # drop time tail + channel padding
    return jnp.transpose(out, (0, 2, 1))  # NTC -> NCT


# ----------------------------------------------------------------------------
# Pure-JAX reference (mirrors the kernel's bf16 casts so tolerances stay tight)
# ----------------------------------------------------------------------------
def postnet_reference(x_nct, params, compute_dtype=jnp.bfloat16):
    n_layers = len(params)
    x = jnp.transpose(x_nct, (0, 2, 1)).astype(compute_dtype).astype(jnp.float32)
    for i, (w, scale, shift) in enumerate(params):
        k = w.shape[0]
        pad = (k - 1) // 2
        w32 = w.astype(compute_dtype).astype(jnp.float32)
        t = x.shape[1]
        xp = jnp.pad(x, ((0, 0), (pad, pad), (0, 0)))
        y = sum(jnp.einsum("ntc,co->nto", xp[:, j:j + t, :], w32[j]) for j in range(k))
        y = y * scale + shift
        if i < n_layers - 1:
            y = jnp.tanh(y)
            x = y.astype(compute_dtype).astype(jnp.float32)
        else:
            x = y
    return jnp.transpose(x, (0, 2, 1))


if __name__ == "__main__":
    # Small hparams consistent with the module's structure.
    n_mel_channels = 8
    postnet_embedding_dim = 32
    postnet_kernel_size = 5
    postnet_n_convolutions = 5
    batch, seq = 2, 40            # seq=40 with tile_t=16 exercises 3 time tiles + tail masking

    key = jax.random.PRNGKey(0)
    key, kx = jax.random.split(key)
    x = jax.random.normal(kx, (batch, n_mel_channels, seq), jnp.float32)  # NCT like PyTorch

    params = init_postnet_params(key, n_mel_channels, postnet_embedding_dim,
                                 postnet_kernel_size, postnet_n_convolutions)
    fused = prepare_fused_params(params)

    out = postnet_forward(x, fused, tile_t=16)
    jax.block_until_ready(out)
    assert out.shape == (batch, n_mel_channels, seq)

    ref = postnet_reference(x, params)
    assert jnp.allclose(out, ref, atol=3e-2, rtol=3e-2), float(jnp.max(jnp.abs(out - ref)))

    print("KERNEL_OK")
</pallas_src>

<mosaic_0001>
module attributes {stable_mosaic.version = 11 : i64} {
  func.func @_postnet_fused_kernel(%arg0: i32, %arg1: i32, %arg2: memref<2x72x128xbf16, #tpu.memory_space<any>>, %arg3: memref<640x128xbf16, #tpu.memory_space<vmem>>, %arg4: memref<3x640x128xbf16, #tpu.memory_space<vmem>>, %arg5: memref<640x128xbf16, #tpu.memory_space<vmem>>, %arg6: memref<4x1x128xf32, #tpu.memory_space<vmem>>, %arg7: memref<4x1x128xf32, #tpu.memory_space<vmem>>, %arg8: memref<1x128xf32, #tpu.memory_space<vmem>>, %arg9: memref<1x128xf32, #tpu.memory_space<vmem>>, %arg10: memref<1x16x128xf32, #tpu.memory_space<vmem>>, %arg11: memref<2x1x40x128xbf16, #tpu.memory_space<vmem>>, %arg12: memref<2x!tpu.dma_semaphore, #tpu.memory_space<semaphore_mem>>) attributes {dimension_semantics = [#tpu.dimension_semantics<parallel>, #tpu.dimension_semantics<arbitrary>], iteration_bounds = array<i64: 2, 3>, scalar_prefetch = 0 : i64, scratch_operands = 2 : i64, tpu.core_type = #tpu.core_type<tc>, window_params = [{}, {pipeline_mode = #tpu.pipeline_mode<synchronous>, transform_indices = @transform_1, window_bounds = array<i64: 640, 128>}, {pipeline_mode = #tpu.pipeline_mode<synchronous>, transform_indices = @transform_2, window_bounds = array<i64: 3, 640, 128>}, {pipeline_mode = #tpu.pipeline_mode<synchronous>, transform_indices = @transform_3, window_bounds = array<i64: 640, 128>}, {pipeline_mode = #tpu.pipeline_mode<synchronous>, transform_indices = @transform_4, window_bounds = array<i64: 4, 1, 128>}, {pipeline_mode = #tpu.pipeline_mode<synchronous>, transform_indices = @transform_5, window_bounds = array<i64: 4, 1, 128>}, {pipeline_mode = #tpu.pipeline_mode<synchronous>, transform_indices = @transform_6, window_bounds = array<i64: 1, 128>}, {pipeline_mode = #tpu.pipeline_mode<synchronous>, transform_indices = @transform_7, window_bounds = array<i64: 1, 128>}, {transform_indices = @transform_8, window_bounds = array<i64: 1, 16, 128>}]} {
    %c0_i32 = arith.constant 0 : i32
    %0 = arith.cmpi eq, %arg1, %c0_i32 : i32
    %1 = arith.extui %0 : i1 to i32
    %c0_i32_0 = arith.constant 0 : i32
    %2 = arith.cmpi ne, %1, %c0_i32_0 : i32
    scf.if %2 {
      %c0_i32_74 = arith.constant 0 : i32
      %185 = tpu.assume_multiple %c0_i32_74, 8 : i32
      %c0_i32_75 = arith.constant 0 : i32
      %c0_i32_76 = arith.constant 0 : i32
      %c0_i32_77 = arith.constant 0 : i32
      %186 = tpu.memref_slice %arg2[%arg0, %185, %c0_i32_77] : memref<2x72x128xbf16, #tpu.memory_space<any>> -> memref<1x40x128xbf16, #tpu.memory_space<any>>
      %c0_i32_78 = arith.constant 0 : i32
      %c0_i32_79 = arith.constant 0 : i32
      %c0_i32_80 = arith.constant 0 : i32
      %187 = tpu.memref_slice %arg11[%c0_i32_75, %c0_i32_78, %c0_i32_79, %c0_i32_80] : memref<2x1x40x128xbf16, #tpu.memory_space<vmem>> -> memref<1x1x40x128xbf16, #tpu.memory_space<vmem>>
      %188 = tpu.memref_squeeze %187 : memref<1x1x40x128xbf16, #tpu.memory_space<vmem>> -> memref<1x40x128xbf16, #tpu.memory_space<vmem>>
      %189 = tpu.memref_slice %arg12[%c0_i32_76] : memref<2x!tpu.dma_semaphore, #tpu.memory_space<semaphore_mem>> -> memref<1x!tpu.dma_semaphore, #tpu.memory_space<semaphore_mem>>
      %190 = tpu.memref_squeeze %189 : memref<1x!tpu.dma_semaphore, #tpu.memory_space<semaphore_mem>> -> memref<!tpu.dma_semaphore, #tpu.memory_space<semaphore_mem>>
      tpu.enqueue_dma source(%186 : memref<1x40x128xbf16, #tpu.memory_space<any>>) target(%188 : memref<1x40x128xbf16, #tpu.memory_space<vmem>>) target_semaphore(%190 : memref<!tpu.dma_semaphore, #tpu.memory_space<semaphore_mem>>)
      %c16_i32_81 = arith.constant 16 : i32
      %191 = tpu.assume_multiple %c16_i32_81, 8 : i32
      %c1_i32_82 = arith.constant 1 : i32
      %c1_i32_83 = arith.constant 1 : i32
      %c0_i32_84 = arith.constant 0 : i32
      %192 = tpu.memref_slice %arg2[%arg0, %191, %c0_i32_84] : memref<2x72x128xbf16, #tpu.memory_space<any>> -> memref<1x40x128xbf16, #tpu.memory_space<any>>
      %c0_i32_85 = arith.constant 0 : i32
      %c0_i32_86 = arith.constant 0 : i32
      %c0_i32_87 = arith.constant 0 : i32
      %193 = tpu.memref_slice %arg11[%c1_i32_82, %c0_i32_85, %c0_i32_86, %c0_i32_87] : memref<2x1x40x128xbf16, #tpu.memory_space<vmem>> -> memref<1x1x40x128xbf16, #tpu.memory_space<vmem>>
      %194 = tpu.memref_squeeze %193 : memref<1x1x40x128xbf16, #tpu.memory_space<vmem>> -> memref<1x40x128xbf16, #tpu.memory_space<vmem>>
      %195 = tpu.memref_slice %arg12[%c1_i32_83] : memref<2x!tpu.dma_semaphore, #tpu.memory_space<semaphore_mem>> -> memref<1x!tpu.dma_semaphore, #tpu.memory_space<semaphore_mem>>
      %196 = tpu.memref_squeeze %195 : memref<1x!tpu.dma_semaphore, #tpu.memory_space<semaphore_mem>> -> memref<!tpu.dma_semaphore, #tpu.memory_space<semaphore_mem>>
      tpu.enqueue_dma source(%192 : memref<1x40x128xbf16, #tpu.memory_space<any>>) target(%194 : memref<1x40x128xbf16, #tpu.memory_space<vmem>>) target_semaphore(%196 : memref<!tpu.dma_semaphore, #tpu.memory_space<semaphore_mem>>)
    } else {
    }
    %c1_i32 = arith.constant 1 : i32
    %3 = arith.andi %arg1, %c1_i32 : i32
    %c16_i32 = arith.constant 16 : i32
    %4 = arith.muli %arg1, %c16_i32 : i32
    %5 = tpu.assume_multiple %4, 8 : i32
    %c0_i32_1 = arith.constant 0 : i32
    %6 = tpu.memref_slice %arg2[%arg0, %5, %c0_i32_1] : memref<2x72x128xbf16, #tpu.memory_space<any>> -> memref<1x40x128xbf16, #tpu.memory_space<any>>
    %c0_i32_2 = arith.constant 0 : i32
    %c0_i32_3 = arith.constant 0 : i32
    %c0_i32_4 = arith.constant 0 : i32
    %7 = tpu.memref_slice %arg11[%3, %c0_i32_2, %c0_i32_3, %c0_i32_4] : memref<2x1x40x128xbf16, #tpu.memory_space<vmem>> -> memref<1x1x40x128xbf16, #tpu.memory_space<vmem>>
    %8 = tpu.memref_squeeze %7 : memref<1x1x40x128xbf16, #tpu.memory_space<vmem>> -> memref<1x40x128xbf16, #tpu.memory_space<vmem>>
    %9 = tpu.memref_slice %arg12[%3] : memref<2x!tpu.dma_semaphore, #tpu.memory_space<semaphore_mem>> -> memref<1x!tpu.dma_semaphore, #tpu.memory_space<semaphore_mem>>
    %10 = tpu.memref_squeeze %9 : memref<1x!tpu.dma_semaphore, #tpu.memory_space<semaphore_mem>> -> memref<!tpu.dma_semaphore, #tpu.memory_space<semaphore_mem>>
    tpu.wait_dma2 semaphore(%10 : memref<!tpu.dma_semaphore, #tpu.memory_space<semaphore_mem>>) src(%6 : memref<1x40x128xbf16, #tpu.memory_space<any>>) dst(%8 : memref<1x40x128xbf16, #tpu.memory_space<vmem>>)
    %c1_i32_5 = arith.constant 1 : i32
    %11 = arith.cmpi sge, %arg1, %c1_i32_5 : i32
    %c1_i32_6 = arith.constant 1 : i32
    %12 = arith.addi %arg1, %c1_i32_6 : i32
    %c3_i32 = arith.constant 3 : i32
    %13 = arith.cmpi slt, %12, %c3_i32 : i32
    %14 = arith.andi %11, %13 : i1
    %15 = arith.extui %14 : i1 to i32
    %c0_i32_7 = arith.constant 0 : i32
    %16 = arith.cmpi ne, %15, %c0_i32_7 : i32
    scf.if %16 {
      %c1_i32_74 = arith.constant 1 : i32
      %185 = arith.addi %arg1, %c1_i32_74 : i32
      %c1_i32_75 = arith.constant 1 : i32
      %186 = arith.subi %c1_i32_75, %3 : i32
      %c16_i32_76 = arith.constant 16 : i32
      %187 = arith.muli %185, %c16_i32_76 : i32
      %188 = tpu.assume_multiple %187, 8 : i32
      %c0_i32_77 = arith.constant 0 : i32
      %189 = tpu.memref_slice %arg2[%arg0, %188, %c0_i32_77] : memref<2x72x128xbf16, #tpu.memory_space<any>> -> memref<1x40x128xbf16, #tpu.memory_space<any>>
      %c0_i32_78 = arith.constant 0 : i32
      %c0_i32_79 = arith.constant 0 : i32
      %c0_i32_80 = arith.constant 0 : i32
      %190 = tpu.memref_slice %arg11[%186, %c0_i32_78, %c0_i32_79, %c0_i32_80] : memref<2x1x40x128xbf16, #tpu.memory_space<vmem>> -> memref<1x1x40x128xbf16, #tpu.memory_space<vmem>>
      %191 = tpu.memref_squeeze %190 : memref<1x1x40x128xbf16, #tpu.memory_space<vmem>> -> memref<1x40x128xbf16, #tpu.memory_space<vmem>>
      %192 = tpu.memref_slice %arg12[%186] : memref<2x!tpu.dma_semaphore, #tpu.memory_space<semaphore_mem>> -> memref<1x!tpu.dma_semaphore, #tpu.memory_space<semaphore_mem>>
      %193 = tpu.memref_squeeze %192 : memref<1x!tpu.dma_semaphore, #tpu.memory_space<semaphore_mem>> -> memref<!tpu.dma_semaphore, #tpu.memory_space<semaphore_mem>>
      tpu.enqueue_dma source(%189 : memref<1x40x128xbf16, #tpu.memory_space<any>>) target(%191 : memref<1x40x128xbf16, #tpu.memory_space<vmem>>) target_semaphore(%193 : memref<!tpu.dma_semaphore, #tpu.memory_space<semaphore_mem>>)
    } else {
    }
    %c16_i32_8 = arith.constant 16 : i32
    %17 = arith.muli %arg1, %c16_i32_8 : i32
    %18 = arith.index_cast %3 : i32 to index
    %c0 = arith.constant 0 : index
    %c0_9 = arith.constant 0 : index
    %c0_10 = arith.constant 0 : index
    %19 = vector.load %arg11[%18, %c0, %c0_9, %c0_10] : memref<2x1x40x128xbf16, #tpu.memory_space<vmem>>, vector<1x1x40x128xbf16>
    %20 = vector.shape_cast %19 : vector<1x1x40x128xbf16> to vector<1x40x128xbf16>
    %21 = vector.shape_cast %20 : vector<1x40x128xbf16> to vector<40x128xbf16>
    %c0_11 = arith.constant 0 : index
    %c0_12 = arith.constant 0 : index
    %22 = vector.load %arg3[%c0_11, %c0_12] : memref<640x128xbf16, #tpu.memory_space<vmem>>, vector<640x128xbf16>
    %c0_13 = arith.constant 0 : index
    %c0_14 = arith.constant 0 : index
    %c0_15 = arith.constant 0 : index
    %23 = vector.load %arg6[%c0_13, %c0_14, %c0_15] : memref<4x1x128xf32, #tpu.memory_space<vmem>>, vector<1x1x128xf32>
    %24 = vector.shape_cast %23 : vector<1x1x128xf32> to vector<1x128xf32>
    %c0_16 = arith.constant 0 : index
    %c0_17 = arith.constant 0 : index
    %c0_18 = arith.constant 0 : index
    %25 = vector.load %arg7[%c0_16, %c0_17, %c0_18] : memref<4x1x128xf32, #tpu.memory_space<vmem>>, vector<1x1x128xf32>
    %26 = vector.shape_cast %25 : vector<1x1x128xf32> to vector<1x128xf32>
    %27 = vector.extract_strided_slice %21 {offsets = [0, 0], sizes = [36, 128], strides = [1, 1]} : vector<40x128xbf16> to vector<36x128xbf16>
    %28 = vector.extract_strided_slice %21 {offsets = [1, 0], sizes = [36, 128], strides = [1, 1]} : vector<40x128xbf16> to vector<36x128xbf16>
    %29 = vector.extract_strided_slice %21 {offsets = [2, 0], sizes = [36, 128], strides = [1, 1]} : vector<40x128xbf16> to vector<36x128xbf16>
    %30 = vector.extract_strided_slice %21 {offsets = [3, 0], sizes = [36, 128], strides = [1, 1]} : vector<40x128xbf16> to vector<36x128xbf16>
    %31 = vector.extract_strided_slice %21 {offsets = [4, 0], sizes = [36, 128], strides = [1, 1]} : vector<40x128xbf16> to vector<36x128xbf16>
    %32 = tpu.concatenate %27, %28, %29, %30, %31 in 1 : vector<36x128xbf16>, vector<36x128xbf16>, vector<36x128xbf16>, vector<36x128xbf16>, vector<36x128xbf16> -> vector<36x640xbf16>
    %cst = arith.constant dense<0.000000e+00> : vector<36x128xf32>
    %33 = tpu.matmul %32, %22, %cst {dimension_numbers = #tpu.dot_dimension_numbers<[1], [0], [0], [1], [0, 0, 1, 1], [], []>} : vector<36x640xbf16>, vector<640x128xbf16>, vector<36x128xf32> -> vector<36x128xf32>
    %34 = vector.broadcast %24 : vector<1x128xf32> to vector<36x128xf32>
    %35 = arith.mulf %33, %34 : vector<36x128xf32>
    %36 = vector.broadcast %26 : vector<1x128xf32> to vector<36x128xf32>
    %37 = arith.addf %35, %36 : vector<36x128xf32>
    %38 = math.tanh %37 : vector<36x128xf32>
    %c12_i32 = arith.constant 12 : i32
    %39 = arith.subi %17, %c12_i32 : i32
    %c2_i32 = arith.constant 2 : i32
    %40 = arith.addi %39, %c2_i32 : i32
    %41 = tpu.iota {dimensions = array<i32: 0>} : vector<36x1xi32>
    %42 = vector.broadcast %40 : i32 to vector<36x1xi32>
    %43 = arith.addi %41, %42 : vector<36x1xi32>
    %c0_i32_19 = arith.constant 0 : i32
    %44 = vector.broadcast %c0_i32_19 : i32 to vector<36x1xi32>
    %45 = arith.cmpi sge, %43, %44 : vector<36x1xi32>
    %c40_i32 = arith.constant 40 : i32
    %46 = vector.broadcast %c40_i32 : i32 to vector<36x1xi32>
    %47 = arith.cmpi slt, %43, %46 : vector<36x1xi32>
    %48 = arith.andi %45, %47 : vector<36x1xi1>
    %cst_20 = arith.constant 0.000000e+00 : f32
    %49 = vector.shape_cast %48 : vector<36x1xi1> to vector<36x1xi1>
    %50 = vector.broadcast %49 : vector<36x1xi1> to vector<36x128xi1>
    %51 = vector.broadcast %cst_20 : f32 to vector<36x128xf32>
    %52 = arith.select %50, %38, %51 : vector<36x128xi1>, vector<36x128xf32>
    %53 = arith.truncf %52 : vector<36x128xf32> to vector<36x128xbf16>
    %c0_21 = arith.constant 0 : index
    %c0_22 = arith.constant 0 : index
    %c0_23 = arith.constant 0 : index
    %54 = vector.load %arg4[%c0_21, %c0_22, %c0_23] : memref<3x640x128xbf16, #tpu.memory_space<vmem>>, vector<1x640x128xbf16>
    %55 = vector.shape_cast %54 : vector<1x640x128xbf16> to vector<640x128xbf16>
    %c1 = arith.constant 1 : index
    %c0_24 = arith.constant 0 : index
    %c0_25 = arith.constant 0 : index
    %56 = vector.load %arg6[%c1, %c0_24, %c0_25] : memref<4x1x128xf32, #tpu.memory_space<vmem>>, vector<1x1x128xf32>
    %57 = vector.shape_cast %56 : vector<1x1x128xf32> to vector<1x128xf32>
    %c1_26 = arith.constant 1 : index
    %c0_27 = arith.constant 0 : index
    %c0_28 = arith.constant 0 : index
    %58 = vector.load %arg7[%c1_26, %c0_27, %c0_28] : memref<4x1x128xf32, #tpu.memory_space<vmem>>, vector<1x1x128xf32>
    %59 = vector.shape_cast %58 : vector<1x1x128xf32> to vector<1x128xf32>
    %60 = vector.extract_strided_slice %53 {offsets = [0, 0], sizes = [32, 128], strides = [1, 1]} : vector<36x128xbf16> to vector<32x128xbf16>
    %61 = vector.extract_strided_slice %53 {offsets = [1, 0], sizes = [32, 128], strides = [1, 1]} : vector<36x128xbf16> to vector<32x128xbf16>
    %62 = vector.extract_strided_slice %53 {offsets = [2, 0], sizes = [32, 128], strides = [1, 1]} : vector<36x128xbf16> to vector<32x128xbf16>
    %63 = vector.extract_strided_slice %53 {offsets = [3, 0], sizes = [32, 128], strides = [1, 1]} : vector<36x128xbf16> to vector<32x128xbf16>
    %64 = vector.extract_strided_slice %53 {offsets = [4, 0], sizes = [32, 128], strides = [1, 1]} : vector<36x128xbf16> to vector<32x128xbf16>
    %65 = tpu.concatenate %60, %61, %62, %63, %64 in 1 : vector<32x128xbf16>, vector<32x128xbf16>, vector<32x128xbf16>, vector<32x128xbf16>, vector<32x128xbf16> -> vector<32x640xbf16>
    %cst_29 = arith.constant dense<0.000000e+00> : vector<32x128xf32>
    %66 = tpu.matmul %65, %55, %cst_29 {dimension_numbers = #tpu.dot_dimension_numbers<[1], [0], [0], [1], [0, 0, 1, 1], [], []>} : vector<32x640xbf16>, vector<640x128xbf16>, vector<32x128xf32> -> vector<32x128xf32>
    %67 = vector.broadcast %57 : vector<1x128xf32> to vector<32x128xf32>
    %68 = arith.mulf %66, %67 : vector<32x128xf32>
    %69 = vector.broadcast %59 : vector<1x128xf32> to vector<32x128xf32>
    %70 = arith.addf %68, %69 : vector<32x128xf32>
    %71 = math.tanh %70 : vector<32x128xf32>
    %c12_i32_30 = arith.constant 12 : i32
    %72 = arith.subi %17, %c12_i32_30 : i32
    %c4_i32 = arith.constant 4 : i32
    %73 = arith.addi %72, %c4_i32 : i32
    %74 = tpu.iota {dimensions = array<i32: 0>} : vector<32x1xi32>
    %75 = vector.broadcast %73 : i32 to vector<32x1xi32>
    %76 = arith.addi %74, %75 : vector<32x1xi32>
    %c0_i32_31 = arith.constant 0 : i32
    %77 = vector.broadcast %c0_i32_31 : i32 to vector<32x1xi32>
    %78 = arith.cmpi sge, %76, %77 : vector<32x1xi32>
    %c40_i32_32 = arith.constant 40 : i32
    %79 = vector.broadcast %c40_i32_32 : i32 to vector<32x1xi32>
    %80 = arith.cmpi slt, %76, %79 : vector<32x1xi32>
    %81 = arith.andi %78, %80 : vector<32x1xi1>
    %cst_33 = arith.constant 0.000000e+00 : f32
    %82 = vector.shape_cast %81 : vector<32x1xi1> to vector<32x1xi1>
    %83 = vector.broadcast %82 : vector<32x1xi1> to vector<32x128xi1>
    %84 = vector.broadcast %cst_33 : f32 to vector<32x128xf32>
    %85 = arith.select %83, %71, %84 : vector<32x128xi1>, vector<32x128xf32>
    %86 = arith.truncf %85 : vector<32x128xf32> to vector<32x128xbf16>
    %c1_34 = arith.constant 1 : index
    %c0_35 = arith.constant 0 : index
    %c0_36 = arith.constant 0 : index
    %87 = vector.load %arg4[%c1_34, %c0_35, %c0_36] : memref<3x640x128xbf16, #tpu.memory_space<vmem>>, vector<1x640x128xbf16>
    %88 = vector.shape_cast %87 : vector<1x640x128xbf16> to vector<640x128xbf16>
    %c2 = arith.constant 2 : index
    %c0_37 = arith.constant 0 : index
    %c0_38 = arith.constant 0 : index
    %89 = vector.load %arg6[%c2, %c0_37, %c0_38] : memref<4x1x128xf32, #tpu.memory_space<vmem>>, vector<1x1x128xf32>
    %90 = vector.shape_cast %89 : vector<1x1x128xf32> to vector<1x128xf32>
    %c2_39 = arith.constant 2 : index
    %c0_40 = arith.constant 0 : index
    %c0_41 = arith.constant 0 : index
    %91 = vector.load %arg7[%c2_39, %c0_40, %c0_41] : memref<4x1x128xf32, #tpu.memory_space<vmem>>, vector<1x1x128xf32>
    %92 = vector.shape_cast %91 : vector<1x1x128xf32> to vector<1x128xf32>
    %93 = vector.extract_strided_slice %86 {offsets = [0, 0], sizes = [28, 128], strides = [1, 1]} : vector<32x128xbf16> to vector<28x128xbf16>
    %94 = vector.extract_strided_slice %86 {offsets = [1, 0], sizes = [28, 128], strides = [1, 1]} : vector<32x128xbf16> to vector<28x128xbf16>
    %95 = vector.extract_strided_slice %86 {offsets = [2, 0], sizes = [28, 128], strides = [1, 1]} : vector<32x128xbf16> to vector<28x128xbf16>
    %96 = vector.extract_strided_slice %86 {offsets = [3, 0], sizes = [28, 128], strides = [1, 1]} : vector<32x128xbf16> to vector<28x128xbf16>
    %97 = vector.extract_strided_slice %86 {offsets = [4, 0], sizes = [28, 128], strides = [1, 1]} : vector<32x128xbf16> to vector<28x128xbf16>
    %98 = tpu.concatenate %93, %94, %95, %96, %97 in 1 : vector<28x128xbf16>, vector<28x128xbf16>, vector<28x128xbf16>, vector<28x128xbf16>, vector<28x128xbf16> -> vector<28x640xbf16>
    %cst_42 = arith.constant dense<0.000000e+00> : vector<28x128xf32>
    %99 = tpu.matmul %98, %88, %cst_42 {dimension_numbers = #tpu.dot_dimension_numbers<[1], [0], [0], [1], [0, 0, 1, 1], [], []>} : vector<28x640xbf16>, vector<640x128xbf16>, vector<28x128xf32> -> vector<28x128xf32>
    %100 = vector.broadcast %90 : vector<1x128xf32> to vector<28x128xf32>
    %101 = arith.mulf %99, %100 : vector<28x128xf32>
    %102 = vector.broadcast %92 : vector<1x128xf32> to vector<28x128xf32>
    %103 = arith.addf %101, %102 : vector<28x128xf32>
    %104 = math.tanh %103 : vector<28x128xf32>
    %c12_i32_43 = arith.constant 12 : i32
    %105 = arith.subi %17, %c12_i32_43 : i32
    %c6_i32 = arith.constant 6 : i32
    %106 = arith.addi %105, %c6_i32 : i32
    %107 = tpu.iota {dimensions = array<i32: 0>} : vector<28x1xi32>
    %108 = vector.broadcast %106 : i32 to vector<28x1xi32>
    %109 = arith.addi %107, %108 : vector<28x1xi32>
    %c0_i32_44 = arith.constant 0 : i32
    %110 = vector.broadcast %c0_i32_44 : i32 to vector<28x1xi32>
    %111 = arith.cmpi sge, %109, %110 : vector<28x1xi32>
    %c40_i32_45 = arith.constant 40 : i32
    %112 = vector.broadcast %c40_i32_45 : i32 to vector<28x1xi32>
    %113 = arith.cmpi slt, %109, %112 : vector<28x1xi32>
    %114 = arith.andi %111, %113 : vector<28x1xi1>
    %cst_46 = arith.constant 0.000000e+00 : f32
    %115 = vector.shape_cast %114 : vector<28x1xi1> to vector<28x1xi1>
    %116 = vector.broadcast %115 : vector<28x1xi1> to vector<28x128xi1>
    %117 = vector.broadcast %cst_46 : f32 to vector<28x128xf32>
    %118 = arith.select %116, %104, %117 : vector<28x128xi1>, vector<28x128xf32>
    %119 = arith.truncf %118 : vector<28x128xf32> to vector<28x128xbf16>
    %c2_47 = arith.constant 2 : index
    %c0_48 = arith.constant 0 : index
    %c0_49 = arith.constant 0 : index
    %120 = vector.load %arg4[%c2_47, %c0_48, %c0_49] : memref<3x640x128xbf16, #tpu.memory_space<vmem>>, vector<1x640x128xbf16>
    %121 = vector.shape_cast %120 : vector<1x640x128xbf16> to vector<640x128xbf16>
    %c3 = arith.constant 3 : index
    %c0_50 = arith.constant 0 : index
    %c0_51 = arith.constant 0 : index
    %122 = vector.load %arg6[%c3, %c0_50, %c0_51] : memref<4x1x128xf32, #tpu.memory_space<vmem>>, vector<1x1x128xf32>
    %123 = vector.shape_cast %122 : vector<1x1x128xf32> to vector<1x128xf32>
    %c3_52 = arith.constant 3 : index
    %c0_53 = arith.constant 0 : index
    %c0_54 = arith.constant 0 : index
    %124 = vector.load %arg7[%c3_52, %c0_53, %c0_54] : memref<4x1x128xf32, #tpu.memory_space<vmem>>, vector<1x1x128xf32>
    %125 = vector.shape_cast %124 : vector<1x1x128xf32> to vector<1x128xf32>
    %126 = vector.extract_strided_slice %119 {offsets = [0, 0], sizes = [24, 128], strides = [1, 1]} : vector<28x128xbf16> to vector<24x128xbf16>
    %127 = vector.extract_strided_slice %119 {offsets = [1, 0], sizes = [24, 128], strides = [1, 1]} : vector<28x128xbf16> to vector<24x128xbf16>
    %128 = vector.extract_strided_slice %119 {offsets = [2, 0], sizes = [24, 128], strides = [1, 1]} : vector<28x128xbf16> to vector<24x128xbf16>
    %129 = vector.extract_strided_slice %119 {offsets = [3, 0], sizes = [24, 128], strides = [1, 1]} : vector<28x128xbf16> to vector<24x128xbf16>
    %130 = vector.extract_strided_slice %119 {offsets = [4, 0], sizes = [24, 128], strides = [1, 1]} : vector<28x128xbf16> to vector<24x128xbf16>
    %131 = tpu.concatenate %126, %127, %128, %129, %130 in 1 : vector<24x128xbf16>, vector<24x128xbf16>, vector<24x128xbf16>, vector<24x128xbf16>, vector<24x128xbf16> -> vector<24x640xbf16>
    %cst_55 = arith.constant dense<0.000000e+00> : vector<24x128xf32>
    %132 = tpu.matmul %131, %121, %cst_55 {dimension_numbers = #tpu.dot_dimension_numbers<[1], [0], [0], [1], [0, 0, 1, 1], [], []>} : vector<24x640xbf16>, vector<640x128xbf16>, vector<24x128xf32> -> vector<24x128xf32>
    %133 = vector.broadcast %123 : vector<1x128xf32> to vector<24x128xf32>
    %134 = arith.mulf %132, %133 : vector<24x128xf32>
    %135 = vector.broadcast %125 : vector<1x128xf32> to vector<24x128xf32>
    %136 = arith.addf %134, %135 : vector<24x128xf32>
    %137 = math.tanh %136 : vector<24x128xf32>
    %c12_i32_56 = arith.constant 12 : i32
    %138 = arith.subi %17, %c12_i32_56 : i32
    %c8_i32 = arith.constant 8 : i32
    %139 = arith.addi %138, %c8_i32 : i32
    %140 = tpu.iota {dimensions = array<i32: 0>} : vector<24x1xi32>
    %141 = vector.broadcast %139 : i32 to vector<24x1xi32>
    %142 = arith.addi %140, %141 : vector<24x1xi32>
    %c0_i32_57 = arith.constant 0 : i32
    %143 = vector.broadcast %c0_i32_57 : i32 to vector<24x1xi32>
    %144 = arith.cmpi sge, %142, %143 : vector<24x1xi32>
    %c40_i32_58 = arith.constant 40 : i32
    %145 = vector.broadcast %c40_i32_58 : i32 to vector<24x1xi32>
    %146 = arith.cmpi slt, %142, %145 : vector<24x1xi32>
    %147 = arith.andi %144, %146 : vector<24x1xi1>
    %cst_59 = arith.constant 0.000000e+00 : f32
    %148 = vector.shape_cast %147 : vector<24x1xi1> to vector<24x1xi1>
    %149 = vector.broadcast %148 : vector<24x1xi1> to vector<24x128xi1>
    %150 = vector.broadcast %cst_59 : f32 to vector<24x128xf32>
    %151 = arith.select %149, %137, %150 : vector<24x128xi1>, vector<24x128xf32>
    %152 = arith.truncf %151 : vector<24x128xf32> to vector<24x128xbf16>
    %c0_60 = arith.constant 0 : index
    %c0_61 = arith.constant 0 : index
    %153 = vector.load %arg5[%c0_60, %c0_61] : memref<640x128xbf16, #tpu.memory_space<vmem>>, vector<640x128xbf16>
    %c0_62 = arith.constant 0 : index
    %c0_63 = arith.constant 0 : index
    %154 = vector.load %arg8[%c0_62, %c0_63] : memref<1x128xf32, #tpu.memory_space<vmem>>, vector<1x128xf32>
    %c0_64 = arith.constant 0 : index
    %c0_65 = arith.constant 0 : index
    %155 = vector.load %arg9[%c0_64, %c0_65] : memref<1x128xf32, #tpu.memory_space<vmem>>, vector<1x128xf32>
    %156 = vector.extract_strided_slice %152 {offsets = [0, 0], sizes = [20, 128], strides = [1, 1]} : vector<24x128xbf16> to vector<20x128xbf16>
    %157 = vector.extract_strided_slice %152 {offsets = [1, 0], sizes = [20, 128], strides = [1, 1]} : vector<24x128xbf16> to vector<20x128xbf16>
    %158 = vector.extract_strided_slice %152 {offsets = [2, 0], sizes = [20, 128], strides = [1, 1]} : vector<24x128xbf16> to vector<20x128xbf16>
    %159 = vector.extract_strided_slice %152 {offsets = [3, 0], sizes = [20, 128], strides = [1, 1]} : vector<24x128xbf16> to vector<20x128xbf16>
    %160 = vector.extract_strided_slice %152 {offsets = [4, 0], sizes = [20, 128], strides = [1, 1]} : vector<24x128xbf16> to vector<20x128xbf16>
    %161 = tpu.concatenate %156, %157, %158, %159, %160 in 1 : vector<20x128xbf16>, vector<20x128xbf16>, vector<20x128xbf16>, vector<20x128xbf16>, vector<20x128xbf16> -> vector<20x640xbf16>
    %cst_66 = arith.constant dense<0.000000e+00> : vector<20x128xf32>
    %162 = tpu.matmul %161, %153, %cst_66 {dimension_numbers = #tpu.dot_dimension_numbers<[1], [0], [0], [1], [0, 0, 1, 1], [], []>} : vector<20x640xbf16>, vector<640x128xbf16>, vector<20x128xf32> -> vector<20x128xf32>
    %163 = vector.broadcast %154 : vector<1x128xf32> to vector<20x128xf32>
    %164 = arith.mulf %162, %163 : vector<20x128xf32>
    %165 = vector.broadcast %155 : vector<1x128xf32> to vector<20x128xf32>
    %166 = arith.addf %164, %165 : vector<20x128xf32>
    %c12_i32_67 = arith.constant 12 : i32
    %167 = arith.subi %17, %c12_i32_67 : i32
    %c10_i32 = arith.constant 10 : i32
    %168 = arith.addi %167, %c10_i32 : i32
    %169 = tpu.iota {dimensions = array<i32: 0>} : vector<20x1xi32>
    %170 = vector.broadcast %168 : i32 to vector<20x1xi32>
    %171 = arith.addi %169, %170 : vector<20x1xi32>
    %c0_i32_68 = arith.constant 0 : i32
    %172 = vector.broadcast %c0_i32_68 : i32 to vector<20x1xi32>
    %173 = arith.cmpi sge, %171, %172 : vector<20x1xi32>
    %c40_i32_69 = arith.constant 40 : i32
    %174 = vector.broadcast %c40_i32_69 : i32 to vector<20x1xi32>
    %175 = arith.cmpi slt, %171, %174 : vector<20x1xi32>
    %176 = arith.andi %173, %175 : vector<20x1xi1>
    %cst_70 = arith.constant 0.000000e+00 : f32
    %177 = vector.shape_cast %176 : vector<20x1xi1> to vector<20x1xi1>
    %178 = vector.broadcast %177 : vector<20x1xi1> to vector<20x128xi1>
    %179 = vector.broadcast %cst_70 : f32 to vector<20x128xf32>
    %180 = arith.select %178, %166, %179 : vector<20x128xi1>, vector<20x128xf32>
    %181 = vector.extract_strided_slice %180 {offsets = [2, 0], sizes = [16, 128], strides = [1, 1]} : vector<20x128xf32> to vector<16x128xf32>
    %c0_71 = arith.constant 0 : index
    %c0_72 = arith.constant 0 : index
    %c0_73 = arith.constant 0 : index
    %182 = vector.load %arg10[%c0_71, %c0_72, %c0_73] : memref<1x16x128xf32, #tpu.memory_space<vmem>>, vector<1x16x128xf32>
    %183 = vector.shape_cast %182 : vector<1x16x128xf32> to vector<16x128xf32>
    %184 = vector.shape_cast %181 : vector<16x128xf32> to vector<1x16x128xf32>
    tpu.vector_store %arg10[%c0_71, %c0_72, %c0_73], %184 {strides = array<i32>} : memref<1x16x128xf32, #tpu.memory_space<vmem>>, vector<1x16x128xf32>,
    return
  }
  func.func @transform_1(%arg0: i32, %arg1: i32) -> (i32, i32) {
    %c0_i32 = arith.constant 0 : i32
    %c0_i32_0 = arith.constant 0 : i32
    %c0_i32_1 = arith.constant 0 : i32
    return %c0_i32, %c0_i32_0 : i32, i32
  }
  func.func @transform_2(%arg0: i32, %arg1: i32) -> (i32, i32, i32) {
    %c0_i32 = arith.constant 0 : i32
    %c0_i32_0 = arith.constant 0 : i32
    %c0_i32_1 = arith.constant 0 : i32
    %c0_i32_2 = arith.constant 0 : i32
    return %c0_i32, %c0_i32_0, %c0_i32_1 : i32, i32, i32
  }
  func.func @transform_3(%arg0: i32, %arg1: i32) -> (i32, i32) {
    %c0_i32 = arith.constant 0 : i32
    %c0_i32_0 = arith.constant 0 : i32
    %c0_i32_1 = arith.constant 0 : i32
    return %c0_i32, %c0_i32_0 : i32, i32
  }
  func.func @transform_4(%arg0: i32, %arg1: i32) -> (i32, i32, i32) {
    %c0_i32 = arith.constant 0 : i32
    %c0_i32_0 = arith.constant 0 : i32
    %c0_i32_1 = arith.constant 0 : i32
    %c0_i32_2 = arith.constant 0 : i32
    return %c0_i32, %c0_i32_0, %c0_i32_1 : i32, i32, i32
  }
  func.func @transform_5(%arg0: i32, %arg1: i32) -> (i32, i32, i32) {
    %c0_i32 = arith.constant 0 : i32
    %c0_i32_0 = arith.constant 0 : i32
    %c0_i32_1 = arith.constant 0 : i32
    %c0_i32_2 = arith.constant 0 : i32
    return %c0_i32, %c0_i32_0, %c0_i32_1 : i32, i32, i32
  }
  func.func @transform_6(%arg0: i32, %arg1: i32) -> (i32, i32) {
    %c0_i32 = arith.constant 0 : i32
    %c0_i32_0 = arith.constant 0 : i32
    %c0_i32_1 = arith.constant 0 : i32
    return %c0_i32, %c0_i32_0 : i32, i32
  }
  func.func @transform_7(%arg0: i32, %arg1: i32) -> (i32, i32) {
    %c0_i32 = arith.constant 0 : i32
    %c0_i32_0 = arith.constant 0 : i32
    %c0_i32_1 = arith.constant 0 : i32
    return %c0_i32, %c0_i32_0 : i32, i32
  }
  func.func @transform_8(%arg0: i32, %arg1: i32) -> (i32, i32, i32) {
    %c0_i32 = arith.constant 0 : i32
    %c0_i32_0 = arith.constant 0 : i32
    return %arg0, %arg1, %c0_i32 : i32, i32, i32
  }
}

</mosaic_0001>

<llo_original>
// kernel: tpu_custom_call.1
$region0: #{tpu_custom_call.1}
  #allocation0 [shape = 'u32[]', space=smem, size = 0x4, offset = 0x4, fixed_abs, tag = 'smem constant byte address 0x4 - core index']
  #allocation1 [shape = 'u32[72,128]{1,0:T(1,128)}', space=vmem, size = 0x9000, scoped, tag = 'internal scratch']
  #allocation2 [shape = 'bf16[2,1,40,128]{3,2,1,0:T(8,128)(2,1)}', space=vmem, size = 0x5000, scoped, tag = 'scratch operand']
  #allocation3 [shape = 's32[2]{0}', space=sflag, size = 0x8, scoped, tag = 'scratch operand']
  #allocation13 [shape = 's32[]', space=sflag, size = 0x4, offset = 0, fixed_abs, tag = 'sflag constant byte address 0x0 - dummy sync flag']
  #allocation14 [shape = 's32[]', space=sflag, size = 0x4, offset = 0, fixed_abs, tag = 'sflag constant byte address 0x0 - dummy sync flag']
  #allocation15 [shape = 'u32[]', space=smem, size = 0x4, offset = 0x44, fixed_abs, tag = 'smem constant byte address 0x44 - assertion arg 0']
  #allocation16 [shape = 'u32[]', space=smem, size = 0x4, offset = 0x48, fixed_abs, tag = 'smem constant byte address 0x48 - assertion arg 1']
  #allocation17 [shape = 's32[]', space=sflag, size = 0x4, offset = 0, fixed_abs, tag = 'sflag constant byte address 0x0 - dummy sync flag']
  #allocation18 [shape = 's32[]', space=sflag, size = 0x4, offset = 0, fixed_abs, tag = 'sflag constant byte address 0x0 - dummy sync flag']
  #allocation19 [shape = 's32[]', space=sflag, size = 0x4, offset = 0, fixed_abs, tag = 'sflag constant byte address 0x0 - dummy sync flag']
  #allocation20 [shape = 's32[]', space=sflag, size = 0x4, offset = 0, fixed_abs, tag = 'sflag constant byte address 0x0 - dummy sync flag']
  %s0 = inlined_call_operand.hbm [shape: bf16[2,72,128], index: 0, kind: input, shape index: {}]
  %s1 = inlined_call_operand.hbm [shape: bf16[640,128], index: 1, kind: input, shape index: {}]
  %s2 = inlined_call_operand.hbm [shape: bf16[3,640,128], index: 2, kind: input, shape index: {}]
  %s3 = inlined_call_operand.hbm [shape: bf16[640,128], index: 3, kind: input, shape index: {}]
  %s4 = inlined_call_operand.hbm [shape: f32[4,1,128], index: 4, kind: input, shape index: {}]
  %s5 = inlined_call_operand.vmem [shape: f32[4,1,128], index: 5, kind: input, shape index: {}]
  %s6 = inlined_call_operand.vmem [shape: f32[1,128], index: 6, kind: input, shape index: {}]
  %s7 = inlined_call_operand.vmem [shape: f32[1,128], index: 7, kind: input, shape index: {}]
  %s8 = inlined_call_operand.hbm [shape: f32[2,48,128], index: 8, kind: output, shape index: {}]
  %s9 = sld [smem:[#allocation0]]
  $region97: #{tpu_custom_call.1} parent=0
    _
  %s11 = ssub.s32 1, %s9
  %s12 = scalar_select 0, %s11, %s9
  $region1: #{tpu_custom_call.1} parent=0
    #allocation4 [shape = 'u8[163840]{0}', space=vmem, size = 0x28000, scoped, tag = 'input window, operand 1, single buffered']
    #allocation5 [shape = 's32[2]{0}', space=sflag, size = 0x8, scoped, tag = 'scoped memory for tpu_custom_call.1']
    #allocation6 [shape = 's32[2]{0}', space=sflag, size = 0x8, scoped, tag = 'scoped memory for tpu_custom_call.1']
    #allocation7 [shape = 'u8[491520]{0}', space=vmem, size = 0x78000, scoped, tag = 'input window, operand 2, single buffered']
    #allocation8 [shape = 's32[1]{0}', space=sflag, size = 0x4, scoped, tag = 'scoped memory for tpu_custom_call.1']
    #allocation9 [shape = 'u8[163840]{0}', space=vmem, size = 0x28000, scoped, tag = 'input window, operand 3, single buffered']
    #allocation10 [shape = 'u8[2048]{0}', space=vmem, size = 0x800, scoped, tag = 'input window, operand 4, single buffered']
    #allocation11 [shape = 's32[1]{0}', space=sflag, size = 0x4, scoped, tag = 'scoped memory for tpu_custom_call.1']
    #allocation12 [shape = 'u8[16384]{0}', space=vmem, size = 0x4000, scoped, tag = 'output window, operand 0']
    %13 = vsyncpa [#allocation5], 0
    %14 = vsyncpa [#allocation8], 0
    %15 = vsyncpa [#allocation11], 0
    %16 = vsyncpa [#allocation6], 0
    %s17 = scalar_lea.sflag [#allocation6], 1
    %18 = vsyncpa %s17, 0
    loop: start=0, step=1, limit=8
    $region2: #{tpu_custom_call.1} parent=1 // loop_pre_header
      _
    $region3: #{tpu_custom_call.1} parent=1 // loop_header
      %s20 = sphi 0, %s24
      %p21 = scmp.ge.s32.totalorder %s20, 8
      %s27 = sphi 0, %s39
      %s28 = sphi 0, %s35
      %s29 = sphi 0, %s27
      %s30 = sphi 0, %s28
      %s31 = sphi 0, %s29
      %s32 = sphi 0, %s30
      %s40 = sphi 0, %s40
      %s42 = sphi 0, %s40
      %s43 = sphi 0, %s42
      %s57 = sphi 0, %s43
      %s61 = sphi 0, %s61
      %s63 = sphi 0, %s61
      %s64 = sphi 0, %s63
      %s78 = sphi 0, %s64
      %s82 = sphi 0, %s82
      %s84 = sphi 0, %s82
      %s85 = sphi 0, %s84
      %s99 = sphi 0, %s85
      %s103 = sphi 0, %s103
      %s105 = sphi 0, %s103
      %s106 = sphi 0, %s105
      %s120 = sphi 0, %s106
      %s124 = sphi 0, %s124
      %s126 = sphi 0, %s124
      %s127 = sphi 0, %s126
      %s141 = sphi 0, %s127
      %s145 = sphi 0, %s145
      %s147 = sphi 0, %s145
      %s148 = sphi 0, %s147
      %s162 = sphi 0, %s148
      %s166 = sphi 0, %s166
      %s168 = sphi 0, %s166
      %s169 = sphi 0, %s168
      %s183 = sphi 0, %s169
      %s191 = sphi 0, %s193
      %s194 = sphi 0, %s191
      %s195 = sphi 0, %s194
      %s211 = sphi 0, %s195
    $region4: #{tpu_custom_call.1} parent=1 // loop_header_branch
      %23 = sbr.rel (%p21) target = $region8
    $region5: #{tpu_custom_call.1} parent=1 // loop_body
      %s25 = ssub.s32 %s20, 1
      %s26 = ssub.s32 %s20, 2
      %s33 = sadd.s32 1, %s28
      %p34 = scmp.ge.s32.totalorder %s33, 3
      %s35 = scalar_select %p34, 0, %s33
      %s36 = sadd.s32 1, %s27
      %s37 = scalar_select %p34, %s36, %s27
      %p38 = scmp.ge.s32.totalorder %s37, 2
      %s39 = scalar_select %p38, 0, %s37
      %s41 = sadd.s32 %s40, 1
      %p44 = scmp.eq.s32.totalorder %s20, 5
      %p45 = scmp.ne.s32.totalorder %s40, %s42
      %p46 = scmp.eq.s32.totalorder %s20, 0
      %p47 = por %p45, %p46
      %p48 = scmp.ne.s32.totalorder %s40, %s42
      %p49 = scmp.eq.s32.totalorder %s25, 5
      %p50 = por %p48, %p49
      %p51 = scmp.ne.s32.totalorder %s42, %s43
      %p52 = scmp.eq.s32.totalorder %s25, 0
      %p53 = por %p51, %p52
      %p54 = scmp.ne.s32.totalorder %s42, %s43
      %p55 = scmp.eq.s32.totalorder %s26, 5
      %p56 = por %p54, %p55
      %p58 = scmp.ne.s32.totalorder %s43, %s57
      %p59 = scmp.eq.s32.totalorder %s26, 0
      %p60 = por %p58, %p59
      %s62 = sadd.s32 %s61, 1
      %p65 = scmp.eq.s32.totalorder %s20, 5
      %p66 = scmp.ne.s32.totalorder %s61, %s63
      %p67 = scmp.eq.s32.totalorder %s20, 0
      %p68 = por %p66, %p67
      %p69 = scmp.ne.s32.totalorder %s61, %s63
      %p70 = scmp.eq.s32.totalorder %s25, 5
      %p71 = por %p69, %p70
      %p72 = scmp.ne.s32.totalorder %s63, %s64
      %p73 = scmp.eq.s32.totalorder %s25, 0
      %p74 = por %p72, %p73
      %p75 = scmp.ne.s32.totalorder %s63, %s64
      %p76 = scmp.eq.s32.totalorder %s26, 5
      %p77 = por %p75, %p76
      %p79 = scmp.ne.s32.totalorder %s64, %s78
      %p80 = scmp.eq.s32.totalorder %s26, 0
      %p81 = por %p79, %p80
      %s83 = sadd.s32 %s82, 1
      %p86 = scmp.eq.s32.totalorder %s20, 5
      %p87 = scmp.ne.s32.totalorder %s82, %s84
      %p88 = scmp.eq.s32.totalorder %s20, 0
      %p89 = por %p87, %p88
      %p90 = scmp.ne.s32.totalorder %s82, %s84
      %p91 = scmp.eq.s32.totalorder %s25, 5
      %p92 = por %p90, %p91
      %p93 = scmp.ne.s32.totalorder %s84, %s85
      %p94 = scmp.eq.s32.totalorder %s25, 0
      %p95 = por %p93, %p94
      %p96 = scmp.ne.s32.totalorder %s84, %s85
      %p97 = scmp.eq.s32.totalorder %s26, 5
      %p98 = por %p96, %p97
      %p100 = scmp.ne.s32.totalorder %s85, %s99
      %p101 = scmp.eq.s32.totalorder %s26, 0
      %p102 = por %p100, %p101
      %s104 = sadd.s32 %s103, 1
      %p107 = scmp.eq.s32.totalorder %s20, 5
      %p108 = scmp.ne.s32.totalorder %s103, %s105
      %p109 = scmp.eq.s32.totalorder %s20, 0
      %p110 = por %p108, %p109
      %p111 = scmp.ne.s32.totalorder %s103, %s105
      %p112 = scmp.eq.s32.totalorder %s25, 5
      %p113 = por %p111, %p112
      %p114 = scmp.ne.s32.totalorder %s105, %s106
      %p115 = scmp.eq.s32.totalorder %s25, 0
      %p116 = por %p114, %p115
      %p117 = scmp.ne.s32.totalorder %s105, %s106
      %p118 = scmp.eq.s32.totalorder %s26, 5
      %p119 = por %p117, %p118
      %p121 = scmp.ne.s32.totalorder %s106, %s120
      %p122 = scmp.eq.s32.totalorder %s26, 0
      %p123 = por %p121, %p122
      %s125 = sadd.s32 %s124, 1
      %p128 = scmp.eq.s32.totalorder %s20, 5
      %p129 = scmp.ne.s32.totalorder %s124, %s126
      %p130 = scmp.eq.s32.totalorder %s20, 0
      %p131 = por %p129, %p130
      %p132 = scmp.ne.s32.totalorder %s124, %s126
      %p133 = scmp.eq.s32.totalorder %s25, 5
      %p134 = por %p132, %p133
      %p135 = scmp.ne.s32.totalorder %s126, %s127
      %p136 = scmp.eq.s32.totalorder %s25, 0
      %p137 = por %p135, %p136
      %p138 = scmp.ne.s32.totalorder %s126, %s127
      %p139 = scmp.eq.s32.totalorder %s26, 5
      %p140 = por %p138, %p139
      %p142 = scmp.ne.s32.totalorder %s127, %s141
      %p143 = scmp.eq.s32.totalorder %s26, 0
      %p144 = por %p142, %p143
      %s146 = sadd.s32 %s145, 1
      %p149 = scmp.eq.s32.totalorder %s20, 5
      %p150 = scmp.ne.s32.totalorder %s145, %s147
      %p151 = scmp.eq.s32.totalorder %s20, 0
      %p152 = por %p150, %p151
      %p153 = scmp.ne.s32.totalorder %s145, %s147
      %p154 = scmp.eq.s32.totalorder %s25, 5
      %p155 = por %p153, %p154
      %p156 = scmp.ne.s32.totalorder %s147, %s148
      %p157 = scmp.eq.s32.totalorder %s25, 0
      %p158 = por %p156, %p157
      %p159 = scmp.ne.s32.totalorder %s147, %s148
      %p160 = scmp.eq.s32.totalorder %s26, 5
      %p161 = por %p159, %p160
      %p163 = scmp.ne.s32.totalorder %s148, %s162
      %p164 = scmp.eq.s32.totalorder %s26, 0
      %p165 = por %p163, %p164
      %s167 = sadd.s32 %s166, 1
      %p170 = scmp.eq.s32.totalorder %s20, 5
      %p171 = scmp.ne.s32.totalorder %s166, %s168
      %p172 = scmp.eq.s32.totalorder %s20, 0
      %p173 = por %p171, %p172
      %p174 = scmp.ne.s32.totalorder %s166, %s168
      %p175 = scmp.eq.s32.totalorder %s25, 5
      %p176 = por %p174, %p175
      %p177 = scmp.ne.s32.totalorder %s168, %s169
      %p178 = scmp.eq.s32.totalorder %s25, 0
      %p179 = por %p177, %p178
      %p180 = scmp.ne.s32.totalorder %s168, %s169
      %p181 = scmp.eq.s32.totalorder %s26, 5
      %p182 = por %p180, %p181
      %p184 = scmp.ne.s32.totalorder %s169, %s183
      %p185 = scmp.eq.s32.totalorder %s26, 0
      %p186 = por %p184, %p185
      %s187 = ssub.s32 %s27, %s39
      %s188 = ssub.s32 %s28, %s35
      %s189 = sor.u32 %s187, %s188
      %p190 = scmp.eq.s32.totalorder %s189, 0
      %s192 = sadd.s32 %s191, 1
      %s193 = scalar_select %p190, %s191, %s192
      %p196 = pneg %p190
      %p197 = scmp.eq.s32.totalorder %s20, 5
      %p198 = por %p196, %p197
      %p199 = scmp.ne.s32.totalorder %s191, %s194
      %p200 = scmp.eq.s32.totalorder %s20, 0
      %p201 = por %p199, %p200
      %p202 = scmp.ne.s32.totalorder %s191, %s194
      %p203 = scmp.eq.s32.totalorder %s25, 5
      %p204 = por %p202, %p203
      %p205 = scmp.ne.s32.totalorder %s194, %s195
      %p206 = scmp.eq.s32.totalorder %s25, 0
      %p207 = por %p205, %p206
      %p208 = scmp.ne.s32.totalorder %s194, %s195
      %p209 = scmp.eq.s32.totalorder %s26, 5
      %p210 = por %p208, %p209
      %p212 = scmp.ne.s32.totalorder %s195, %s211
      %p213 = scmp.eq.s32.totalorder %s26, 0
      %p214 = por %p212, %p213
      %p215 = scmp.le.s32.totalorder 1, %s20
      %p216 = scmp.lt.s32.totalorder %s20, 7
      %p217 = pnand %p215, %p216
      %p218 = pneg %p217
      // Predicated region
      $region9: #{tpu_custom_call.1} parent=5 // pred_check
        _
      $region10: #{tpu_custom_call.1} parent=5 // pred_check_branch
        %220 = sbr.rel (%p217) target = $region12
      $region11: #{tpu_custom_call.1} parent=5 // pred_region
        %s221 = ssub.s32 %s20, 1
        // Predicated region
        $region13: #{tpu_custom_call.1} parent=11 // pred_check
          %p222 = pneg %p53
        $region14: #{tpu_custom_call.1} parent=11 // pred_check_branch
          %224 = sbr.rel (%p222) target = $region16
        $region15: #{tpu_custom_call.1} parent=11 // pred_region
          %226 = vsyncadd [#allocation5], 0
          %s227 = sshll.u32 %s1, 4
          %s228 = int_to_ptr.hbm [resolvable:$true] %s227
          %s229 = sshll.u32 [#allocation4], 4
          %s230 = int_to_ptr.vmem [resolvable:$true] %s229
          %235 = dma.hbm_to_vmem [thread:$0]  %s228, 5120, %s230, [#allocation5], 64, 64, 4
        $region16: #{tpu_custom_call.1} parent=11 // pred_fallthru
          _
        // Predicated region
        $region17: #{tpu_custom_call.1} parent=11 // pred_check
          %p236 = pneg %p74
        $region18: #{tpu_custom_call.1} parent=11 // pred_check_branch
          %238 = sbr.rel (%p236) target = $region20
        $region19: #{tpu_custom_call.1} parent=11 // pred_region
          %240 = vsyncadd [#allocation8], 0
          %s241 = sshll.u32 %s2, 4
          %s242 = int_to_ptr.hbm [resolvable:$true] %s241
          %s243 = sshll.u32 [#allocation7], 4
          %s244 = int_to_ptr.vmem [resolvable:$true] %s243
          %249 = dma.hbm_to_vmem [thread:$0]  %s242, 15360, %s244, [#allocation8], 64, 64, 4
        $region20: #{tpu_custom_call.1} parent=11 // pred_fallthru
          _
        // Predicated region
        $region21: #{tpu_custom_call.1} parent=11 // pred_check
          %p250 = pneg %p95
        $region22: #{tpu_custom_call.1} parent=11 // pred_check_branch
          %252 = sbr.rel (%p250) target = $region24
        $region23: #{tpu_custom_call.1} parent=11 // pred_region
          %254 = vsyncadd [#allocation8], 0
          %s255 = sshll.u32 %s3, 4
          %s256 = int_to_ptr.hbm [resolvable:$true] %s255
          %s257 = sshll.u32 [#allocation9], 4
          %s258 = int_to_ptr.vmem [resolvable:$true] %s257
          %263 = dma.hbm_to_vmem [thread:$0]  %s256, 5120, %s258, [#allocation8], 64, 64, 4
        $region24: #{tpu_custom_call.1} parent=11 // pred_fallthru
          _
        // Predicated region
        $region25: #{tpu_custom_call.1} parent=11 // pred_check
          %p264 = pneg %p116
        $region26: #{tpu_custom_call.1} parent=11 // pred_check_branch
          %266 = sbr.rel (%p264) target = $region28
        $region27: #{tpu_custom_call.1} parent=11 // pred_region
          %268 = vsyncadd [#allocation11], 0
          %s269 = sshll.u32 %s4, 4
          %s270 = int_to_ptr.hbm [resolvable:$true] %s269
          %s271 = sshll.u32 [#allocation10], 4
          %s272 = int_to_ptr.vmem [resolvable:$true] %s271
          %277 = dma.hbm_to_vmem [thread:$0]  %s270, 64, %s272, [#allocation11], 16, 16, 1
        $region28: #{tpu_custom_call.1} parent=11 // pred_fallthru
          _
        // Predicated region
        $region29: #{tpu_custom_call.1} parent=11 // pred_check
          %p278 = pneg %p137
        $region30: #{tpu_custom_call.1} parent=11 // pred_check_branch
          %280 = sbr.rel (%p278) target = $region32
        $region31: #{tpu_custom_call.1} parent=11 // pred_region
          _
        $region32: #{tpu_custom_call.1} parent=11 // pred_fallthru
          _
        // Predicated region
        $region33: #{tpu_custom_call.1} parent=11 // pred_check
          %p281 = pneg %p158
        $region34: #{tpu_custom_call.1} parent=11 // pred_check_branch
          %283 = sbr.rel (%p281) target = $region36
        $region35: #{tpu_custom_call.1} parent=11 // pred_region
          _
        $region36: #{tpu_custom_call.1} parent=11 // pred_fallthru
          _
        // Predicated region
        $region37: #{tpu_custom_call.1} parent=11 // pred_check
          %p284 = pneg %p179
        $region38: #{tpu_custom_call.1} parent=11 // pred_check_branch
          %286 = sbr.rel (%p284) target = $region40
        $region39: #{tpu_custom_call.1} parent=11 // pred_region
          _
        $region40: #{tpu_custom_call.1} parent=11 // pred_fallthru
          _
      $region12: #{tpu_custom_call.1} parent=5 // pred_fallthru
        _
      %p287 = scmp.lt.s32.totalorder %s20, 6
      // Predicated region
      $region41: #{tpu_custom_call.1} parent=5 // pred_check
        %p288 = pneg %p287
      $region42: #{tpu_custom_call.1} parent=5 // pred_check_branch
        %290 = sbr.rel (%p288) target = $region44
      $region43: #{tpu_custom_call.1} parent=5 // pred_region
        _
      $region44: #{tpu_custom_call.1} parent=5 // pred_fallthru
        _
      %p291 = scmp.le.s32.totalorder 1, %s20
      %p292 = scmp.lt.s32.totalorder %s20, 7
      %p293 = pnand %p291, %p292
      %p294 = pneg %p293
      // Predicated region
      $region45: #{tpu_custom_call.1} parent=5 // pred_check
        _
      $region46: #{tpu_custom_call.1} parent=5 // pred_check_branch
        %296 = sbr.rel (%p293) target = $region48
      $region47: #{tpu_custom_call.1} parent=5 // pred_region
        %s297 = ssub.s32 %s20, 1
        // Predicated region
        $region49: #{tpu_custom_call.1} parent=47 // pred_check
          %p298 = pneg %p53
        $region50: #{tpu_custom_call.1} parent=47 // pred_check_branch
          %300 = sbr.rel (%p298) target = $region52
        $region51: #{tpu_custom_call.1} parent=47 // pred_region
          %302 = dma.done [#allocation5], 5120
        $region52: #{tpu_custom_call.1} parent=47 // pred_fallthru
          _
        // Predicated region
        $region53: #{tpu_custom_call.1} parent=47 // pred_check
          %p303 = pneg %p74
        $region54: #{tpu_custom_call.1} parent=47 // pred_check_branch
          %305 = sbr.rel (%p303) target = $region56
        $region55: #{tpu_custom_call.1} parent=47 // pred_region
          %307 = dma.done [#allocation8], 15360
        $region56: #{tpu_custom_call.1} parent=47 // pred_fallthru
          _
        // Predicated region
        $region57: #{tpu_custom_call.1} parent=47 // pred_check
          %p308 = pneg %p95
        $region58: #{tpu_custom_call.1} parent=47 // pred_check_branch
          %310 = sbr.rel (%p308) target = $region60
        $region59: #{tpu_custom_call.1} parent=47 // pred_region
          %312 = dma.done [#allocation8], 5120
        $region60: #{tpu_custom_call.1} parent=47 // pred_fallthru
          _
        // Predicated region
        $region61: #{tpu_custom_call.1} parent=47 // pred_check
          %p313 = pneg %p116
        $region62: #{tpu_custom_call.1} parent=47 // pred_check_branch
          %315 = sbr.rel (%p313) target = $region64
        $region63: #{tpu_custom_call.1} parent=47 // pred_region
          %317 = dma.done [#allocation11], 64
        $region64: #{tpu_custom_call.1} parent=47 // pred_fallthru
          _
        %p318 = pneg %p53
        %p319 = pneg %p50
        %p320 = pneg %p74
        %p321 = pneg %p71
        %p322 = pneg %p95
        %p323 = pneg %p92
        %p324 = pneg %p116
        %p325 = pneg %p113
        %p326 = pneg %p137
        %p327 = pneg %p134
        %p328 = pneg %p158
        %p329 = pneg %p155
        %p330 = pneg %p179
        %p331 = pneg %p176
        %p332 = pneg %p207
        %p333 = pneg %p204
        %s334 = sand.u32 %s194, 1
        %s335 = scalar_lea.sflag [#allocation6], %s334
        %s336 = sand.u32 %s194, 1
        %s337 = smul.addr %s336, 16
        %s338 = scalar_lea.vmem [#allocation12], %s337
        %s339 = smul.u32 2, %s30
        %p340 = scmp.eq.s32.totalorder %s30, 0
        // Predicated region
        $region65: #{tpu_custom_call.1} parent=47 // pred_check
          %p341 = pneg %p340
        $region66: #{tpu_custom_call.1} parent=47 // pred_check_branch
          %343 = sbr.rel (%p341) target = $region68
        $region67: #{tpu_custom_call.1} parent=47 // pred_region
          %s344 = smul.u32 %s29, 9
          %s345 = sadd.s32 0, %s344
          %s346 = smul.addr %s345, 4
          %s347 = scalar_lea.hbm %s0, %s346
          // Predicated region
          $region69: #{tpu_custom_call.1} parent=67 // pred_check
            _
          $region70: #{tpu_custom_call.1} parent=67 // pred_check_branch
            %349 = sbr.rel target = $region72
          $region71: #{tpu_custom_call.1} parent=67 // pred_region
            %350 = sst [smem:[#allocation15]] [#allocation14]
            %351 = sst [smem:[#allocation16]] [#allocation13]
          $region72: #{tpu_custom_call.1} parent=67 // pred_fallthru
            _
          %353 = shalt.err (0)
          %s355 = sshll.u32 %s347, 4
          %s356 = int_to_ptr.hbm [resolvable:$true] %s355
          %s357 = sshll.u32 [#allocation2], 4
          %s358 = int_to_ptr.vmem [resolvable:$true] %s357
          %360 = dma.hbm_to_vmem [thread:$0]  %s356, 320, %s358, [#allocation3]
          %s361 = sadd.s32 2, %s344
          %s362 = smul.addr %s361, 4
          %s363 = scalar_lea.hbm %s0, %s362
          %s364 = scalar_lea.vmem [#allocation2], 20
          %s365 = scalar_lea.sflag [#allocation3], 1
          // Predicated region
          $region73: #{tpu_custom_call.1} parent=67 // pred_check
            _
          $region74: #{tpu_custom_call.1} parent=67 // pred_check_branch
            %367 = sbr.rel target = $region76
          $region75: #{tpu_custom_call.1} parent=67 // pred_region
            %368 = sst [smem:[#allocation15]] [#allocation18]
            %369 = sst [smem:[#allocation16]] [#allocation17]
          $region76: #{tpu_custom_call.1} parent=67 // pred_fallthru
            _
          %371 = shalt.err (0)
          %s373 = sshll.u32 %s363, 4
          %s374 = int_to_ptr.hbm [resolvable:$true] %s373
          %s375 = sshll.u32 %s364, 4
          %s376 = int_to_ptr.vmem [resolvable:$true] %s375
          %378 = dma.hbm_to_vmem [thread:$0]  %s374, 320, %s376, %s365
        $region68: #{tpu_custom_call.1} parent=47 // pred_fallthru
          _
        %s379 = sand.u32 %s30, 1
        %s380 = smul.u32 %s30, 16
        %s381 = smul.u32 %s379, 5
        %s382 = smul.addr %s381, 4
        %s383 = scalar_lea.vmem [#allocation2], %s382
        %s384 = scalar_lea.sflag [#allocation3], %s379
        %s385 = smul.u32 4, 1
        %s386 = smul.u32 %s385, 5
        %s387 = smul.u32 %s386, 1
        %s388 = sshll.u32 %s387, 4
        %389 = dma.done %s384, %s388
        %p390 = scmp.ge.s32.totalorder %s30, 1
        %s391 = sadd.s32 %s30, 1
        %p392 = scmp.lt.s32.totalorder %s391, 3
        %p393 = pnand %p390, %p392
        %p394 = pneg %p393
        // Predicated region
        $region77: #{tpu_custom_call.1} parent=47 // pred_check
          _
        $region78: #{tpu_custom_call.1} parent=47 // pred_check_branch
          %396 = sbr.rel (%p393) target = $region80
        $region79: #{tpu_custom_call.1} parent=47 // pred_region
          %s397 = ssub.s32 1, %s379
          %s398 = smul.u32 %s391, 16
          %s399 = sshra.s32 %s398, 3
          %s400 = sand.u32 %s398, 7
          %s401 = smul.u32 %s29, 9
          %s402 = sadd.s32 %s399, %s401
          %s403 = smul.addr %s402, 4
          %s404 = scalar_lea.hbm %s0, %s403
          %s405 = smul.u32 %s397, 5
          %s406 = smul.addr %s405, 4
          %s407 = scalar_lea.vmem [#allocation2], %s406
          %s408 = scalar_lea.sflag [#allocation3], %s397
          // Predicated region
          $region81: #{tpu_custom_call.1} parent=79 // pred_check
            _
          $region82: #{tpu_custom_call.1} parent=79 // pred_check_branch
            %410 = sbr.rel target = $region84
          $region83: #{tpu_custom_call.1} parent=79 // pred_region
            %411 = sst [smem:[#allocation15]] [#allocation20]
            %412 = sst [smem:[#allocation16]] [#allocation19]
          $region84: #{tpu_custom_call.1} parent=79 // pred_fallthru
            _
          %414 = shalt.err (0)
          %s416 = sshll.u32 %s404, 4
          %s417 = int_to_ptr.hbm [resolvable:$true] %s416
          %s418 = sshll.u32 %s407, 4
          %s419 = int_to_ptr.vmem [resolvable:$true] %s418
          %421 = dma.hbm_to_vmem [thread:$0]  %s417, 320, %s419, %s408
        $region80: #{tpu_custom_call.1} parent=47 // pred_fallthru
          _
        %v422 = vld [vmem:[%s383] sm:$0xf]
        %v423 = vld [vmem:[%s383 + $0x4] sm:$0xf]
        %v424 = vld [vmem:[%s383 + $0x8] sm:$0xf]
        %v425 = vld [vmem:[%s383 + $0xc] sm:$0xf]
        %v426 = vld [vmem:[%s383 + $0x10] sm:$0xf]
        %v427 = vld [vmem:[#allocation4] sm:$0xf]
        %v428 = vld [vmem:[#allocation4 + $0x4] sm:$0xf]
        %v429 = vld [vmem:[#allocation4 + $0x8] sm:$0xf]
        %v430 = vld [vmem:[#allocation4 + $0xc] sm:$0xf]
        %v431 = vld [vmem:[#allocation4 + $0x10] sm:$0xf]
        %v432 = vld [vmem:[#allocation4 + $0x14] sm:$0xf]
        %v433 = vld [vmem:[#allocation4 + $0x18] sm:$0xf]
        %v434 = vld [vmem:[#allocation4 + $0x1c] sm:$0xf]
        %v435 = vld [vmem:[#allocation4 + $0x20] sm:$0xf]
        %v436 = vld [vmem:[#allocation4 + $0x24] sm:$0xf]
        %v437 = vld [vmem:[#allocation4 + $0x28] sm:$0xf]
        %v438 = vld [vmem:[#allocation4 + $0x2c] sm:$0xf]
        %v439 = vld [vmem:[#allocation4 + $0x30] sm:$0xf]
        %v440 = vld [vmem:[#allocation4 + $0x34] sm:$0xf]
        %v441 = vld [vmem:[#allocation4 + $0x38] sm:$0xf]
        %v442 = vld [vmem:[#allocation4 + $0x3c] sm:$0xf]
        %v443 = vld [vmem:[#allocation4 + $0x40] sm:$0xf]
        %v444 = vld [vmem:[#allocation4 + $0x44] sm:$0xf]
        %v445 = vld [vmem:[#allocation4 + $0x48] sm:$0xf]
        %v446 = vld [vmem:[#allocation4 + $0x4c] sm:$0xf]
        %v447 = vld [vmem:[#allocation4 + $0x50] sm:$0xf]
        %v448 = vld [vmem:[#allocation4 + $0x54] sm:$0xf]
        %v449 = vld [vmem:[#allocation4 + $0x58] sm:$0xf]
        %v450 = vld [vmem:[#allocation4 + $0x5c] sm:$0xf]
        %v451 = vld [vmem:[#allocation4 + $0x60] sm:$0xf]
        %v452 = vld [vmem:[#allocation4 + $0x64] sm:$0xf]
        %v453 = vld [vmem:[#allocation4 + $0x68] sm:$0xf]
        %v454 = vld [vmem:[#allocation4 + $0x6c] sm:$0xf]
        %v455 = vld [vmem:[#allocation4 + $0x70] sm:$0xf]
        %v456 = vld [vmem:[#allocation4 + $0x74] sm:$0xf]
        %v457 = vld [vmem:[#allocation4 + $0x78] sm:$0xf]
        %v458 = vld [vmem:[#allocation4 + $0x7c] sm:$0xf]
        %v459 = vld [vmem:[#allocation4 + $0x80] sm:$0xf]
        %v460 = vld [vmem:[#allocation4 + $0x84] sm:$0xf]
        %v461 = vld [vmem:[#allocation4 + $0x88] sm:$0xf]
        %v462 = vld [vmem:[#allocation4 + $0x8c] sm:$0xf]
        %v463 = vld [vmem:[#allocation4 + $0x90] sm:$0xf]
        %v464 = vld [vmem:[#allocation4 + $0x94] sm:$0xf]
        %v465 = vld [vmem:[#allocation4 + $0x98] sm:$0xf]
        %v466 = vld [vmem:[#allocation4 + $0x9c] sm:$0xf]
        %v467 = vld [vmem:[#allocation4 + $0xa0] sm:$0xf]
        %v468 = vld [vmem:[#allocation4 + $0xa4] sm:$0xf]
        %v469 = vld [vmem:[#allocation4 + $0xa8] sm:$0xf]
        %v470 = vld [vmem:[#allocation4 + $0xac] sm:$0xf]
        %v471 = vld [vmem:[#allocation4 + $0xb0] sm:$0xf]
        %v472 = vld [vmem:[#allocation4 + $0xb4] sm:$0xf]
        %v473 = vld [vmem:[#allocation4 + $0xb8] sm:$0xf]
        %v474 = vld [vmem:[#allocation4 + $0xbc] sm:$0xf]
        %v475 = vld [vmem:[#allocation4 + $0xc0] sm:$0xf]
        %v476 = vld [vmem:[#allocation4 + $0xc4] sm:$0xf]
        %v477 = vld [vmem:[#allocation4 + $0xc8] sm:$0xf]
        %v478 = vld [vmem:[#allocation4 + $0xcc] sm:$0xf]
        %v479 = vld [vmem:[#allocation4 + $0xd0] sm:$0xf]
        %v480 = vld [vmem:[#allocation4 + $0xd4] sm:$0xf]
        %v481 = vld [vmem:[#allocation4 + $0xd8] sm:$0xf]
        %v482 = vld [vmem:[#allocation4 + $0xdc] sm:$0xf]
        %v483 = vld [vmem:[#allocation4 + $0xe0] sm:$0xf]
        %v484 = vld [vmem:[#allocation4 + $0xe4] sm:$0xf]
        %v485 = vld [vmem:[#allocation4 + $0xe8] sm:$0xf]
        %v486 = vld [vmem:[#allocation4 + $0xec] sm:$0xf]
        %v487 = vld [vmem:[#allocation4 + $0xf0] sm:$0xf]
        %v488 = vld [vmem:[#allocation4 + $0xf4] sm:$0xf]
        %v489 = vld [vmem:[#allocation4 + $0xf8] sm:$0xf]
        %v490 = vld [vmem:[#allocation4 + $0xfc] sm:$0xf]
        %v491 = vld [vmem:[#allocation4 + $0x100] sm:$0xf]
        %v492 = vld [vmem:[#allocation4 + $0x104] sm:$0xf]
        %v493 = vld [vmem:[#allocation4 + $0x108] sm:$0xf]
        %v494 = vld [vmem:[#allocation4 + $0x10c] sm:$0xf]
        %v495 = vld [vmem:[#allocation4 + $0x110] sm:$0xf]
        %v496 = vld [vmem:[#allocation4 + $0x114] sm:$0xf]
        %v497 = vld [vmem:[#allocation4 + $0x118] sm:$0xf]
        %v498 = vld [vmem:[#allocation4 + $0x11c] sm:$0xf]
        %v499 = vld [vmem:[#allocation4 + $0x120] sm:$0xf]
        %v500 = vld [vmem:[#allocation4 + $0x124] sm:$0xf]
        %v501 = vld [vmem:[#allocation4 + $0x128] sm:$0xf]
        %v502 = vld [vmem:[#allocation4 + $0x12c] sm:$0xf]
        %v503 = vld [vmem:[#allocation4 + $0x130] sm:$0xf]
        %v504 = vld [vmem:[#allocation4 + $0x134] sm:$0xf]
        %v505 = vld [vmem:[#allocation4 + $0x138] sm:$0xf]
        %v506 = vld [vmem:[#allocation4 + $0x13c] sm:$0xf]
        %v507 = vld [vmem:[#allocation10] sm:$0x1]
        %v508 = vld [vmem:[%s5] sm:$0x1]
        %v514 = vunpack.c.l.b16 %v422
        %v515 = vunpack.c.l.b16 %v423
        %v516 = vunpack.c.l.b16 %v424
        %v517 = vunpack.c.l.b16 %v425
        %v518 = vunpack.c.l.b16 %v426
        %v519 = vpack.c.b16 %v515, %v514
        %v520 = vpack.c.b16 %v517, %v516
        %v521 = vpack.c.b16 %v518, %v518
        %vm525 = vsmask.f32 7424
        %v527 = vshrl.u32 %v519, 16
        %v529 = vshll.u32 %v519, 16
        %v531 = vrot.slane %v529, 1
        %v532 = vor.u32 %v527, %v531
        %v534 = vshll.u32 %v520, 16
        %v536 = vrot.slane %v534, 1
        %v537 = vsel %vm525, %v532, %v536
        %v538 = vshrl.u32 %v520, 16
        %v540 = vor.u32 %v538, %v536
        %v542 = vshll.u32 %v521, 16
        %v544 = vrot.slane %v542, 1
        %v545 = vsel %vm525, %v540, %v544
        %v546 = vshrl.u32 %v521, 16
        %v548 = vor.u32 %v546, %v544
        %vm552 = vcmask 1046528
        %v553 = vrot.slane %v519, 1
        %v554 = vrot.slane %v520, 1
        %v555 = vsel %vm552, %v553, %v554
        %v556 = vrot.slane %v521, 1
        %v557 = vsel %vm552, %v554, %v556
        %vm561 = vsmask.f32 6400
        %v562 = vrot.slane %v527, 1
        %v563 = vrot.slane %v529, 2
        %v564 = vor.u32 %v562, %v563
        %v565 = vrot.slane %v538, 1
        %v566 = vrot.slane %v534, 2
        %v567 = vor.u32 %v565, %v566
        %v568 = vsel %vm561, %v564, %v567
        %v569 = vrot.slane %v546, 1
        %v570 = vrot.slane %v542, 2
        %v571 = vor.u32 %v569, %v570
        %v572 = vsel %vm561, %v567, %v571
        %vm576 = vcmask 1045504
        %v577 = vrot.slane %v519, 2
        %v578 = vrot.slane %v520, 2
        %v579 = vsel %vm576, %v577, %v578
        %v580 = vrot.slane %v521, 2
        %v581 = vsel %vm576, %v578, %v580
        %v665 = vunpack.c.l.b16 %v427
        %v666 = vunpack.c.l.b16 %v428
        %v667 = vunpack.c.l.b16 %v429
        %v668 = vunpack.c.l.b16 %v430
        %v669 = vunpack.c.l.b16 %v431
        %v670 = vunpack.c.l.b16 %v432
        %v671 = vunpack.c.l.b16 %v433
        %v672 = vunpack.c.l.b16 %v434
        %v673 = vunpack.c.l.b16 %v435
        %v674 = vunpack.c.l.b16 %v436
        %v675 = vunpack.c.l.b16 %v437
        %v676 = vunpack.c.l.b16 %v438
        %v677 = vunpack.c.l.b16 %v439
        %v678 = vunpack.c.l.b16 %v440
        %v679 = vunpack.c.l.b16 %v441
        %v680 = vunpack.c.l.b16 %v442
        %v681 = vunpack.c.l.b16 %v443
        %v682 = vunpack.c.l.b16 %v444
        %v683 = vunpack.c.l.b16 %v445
        %v684 = vunpack.c.l.b16 %v446
        %v685 = vunpack.c.l.b16 %v447
        %v686 = vunpack.c.l.b16 %v448
        %v687 = vunpack.c.l.b16 %v449
        %v688 = vunpack.c.l.b16 %v450
        %v689 = vunpack.c.l.b16 %v451
        %v690 = vunpack.c.l.b16 %v452
        %v691 = vunpack.c.l.b16 %v453
        %v692 = vunpack.c.l.b16 %v454
        %v693 = vunpack.c.l.b16 %v455
        %v694 = vunpack.c.l.b16 %v456
        %v695 = vunpack.c.l.b16 %v457
        %v696 = vunpack.c.l.b16 %v458
        %v697 = vunpack.c.l.b16 %v459
        %v698 = vunpack.c.l.b16 %v460
        %v699 = vunpack.c.l.b16 %v461
        %v700 = vunpack.c.l.b16 %v462
        %v701 = vunpack.c.l.b16 %v463
        %v702 = vunpack.c.l.b16 %v464
        %v703 = vunpack.c.l.b16 %v465
        %v704 = vunpack.c.l.b16 %v466
        %v705 = vunpack.c.l.b16 %v467
        %v706 = vunpack.c.l.b16 %v468
        %v707 = vunpack.c.l.b16 %v469
        %v708 = vunpack.c.l.b16 %v470
        %v709 = vunpack.c.l.b16 %v471
        %v710 = vunpack.c.l.b16 %v472
        %v711 = vunpack.c.l.b16 %v473
        %v712 = vunpack.c.l.b16 %v474
        %v713 = vunpack.c.l.b16 %v475
        %v714 = vunpack.c.l.b16 %v476
        %v715 = vunpack.c.l.b16 %v477
        %v716 = vunpack.c.l.b16 %v478
        %v717 = vunpack.c.l.b16 %v479
        %v718 = vunpack.c.l.b16 %v480
        %v719 = vunpack.c.l.b16 %v481
        %v720 = vunpack.c.l.b16 %v482
        %v721 = vunpack.c.l.b16 %v483
        %v722 = vunpack.c.l.b16 %v484
        %v723 = vunpack.c.l.b16 %v485
        %v724 = vunpack.c.l.b16 %v486
        %v725 = vunpack.c.l.b16 %v487
        %v726 = vunpack.c.l.b16 %v488
        %v727 = vunpack.c.l.b16 %v489
        %v728 = vunpack.c.l.b16 %v490
        %v729 = vunpack.c.l.b16 %v491
        %v730 = vunpack.c.l.b16 %v492
        %v731 = vunpack.c.l.b16 %v493
        %v732 = vunpack.c.l.b16 %v494
        %v733 = vunpack.c.l.b16 %v495
        %v734 = vunpack.c.l.b16 %v496
        %v735 = vunpack.c.l.b16 %v497
        %v736 = vunpack.c.l.b16 %v498
        %v737 = vunpack.c.l.b16 %v499
        %v738 = vunpack.c.l.b16 %v500
        %v739 = vunpack.c.l.b16 %v501
        %v740 = vunpack.c.l.b16 %v502
        %v741 = vunpack.c.l.b16 %v503
        %v742 = vunpack.c.l.b16 %v504
        %v743 = vunpack.c.l.b16 %v505
        %v744 = vunpack.c.l.b16 %v506
        %v745 = vpack.c.b16 %v666, %v665
        %v746 = vpack.c.b16 %v668, %v667
        %v747 = vpack.c.b16 %v670, %v669
        %v748 = vpack.c.b16 %v672, %v671
        %v749 = vpack.c.b16 %v674, %v673
        %v750 = vpack.c.b16 %v676, %v675
        %v751 = vpack.c.b16 %v678, %v677
        %v752 = vpack.c.b16 %v680, %v679
        %v753 = vpack.c.b16 %v682, %v681
        %v754 = vpack.c.b16 %v684, %v683
        %v755 = vpack.c.b16 %v686, %v685
        %v756 = vpack.c.b16 %v688, %v687
        %v757 = vpack.c.b16 %v690, %v689
        %v758 = vpack.c.b16 %v692, %v691
        %v759 = vpack.c.b16 %v694, %v693
        %v760 = vpack.c.b16 %v696, %v695
        %v761 = vpack.c.b16 %v698, %v697
        %v762 = vpack.c.b16 %v700, %v699
        %v763 = vpack.c.b16 %v702, %v701
        %v764 = vpack.c.b16 %v704, %v703
        %v765 = vpack.c.b16 %v706, %v705
        %v766 = vpack.c.b16 %v708, %v707
        %v767 = vpack.c.b16 %v710, %v709
        %v768 = vpack.c.b16 %v712, %v711
        %v769 = vpack.c.b16 %v714, %v713
        %v770 = vpack.c.b16 %v716, %v715
        %v771 = vpack.c.b16 %v718, %v717
        %v772 = vpack.c.b16 %v720, %v719
        %v773 = vpack.c.b16 %v722, %v721
        %v774 = vpack.c.b16 %v724, %v723
        %v775 = vpack.c.b16 %v726, %v725
        %v776 = vpack.c.b16 %v728, %v727
        %v777 = vpack.c.b16 %v730, %v729
        %v778 = vpack.c.b16 %v732, %v731
        %v779 = vpack.c.b16 %v734, %v733
        %v780 = vpack.c.b16 %v736, %v735
        %v781 = vpack.c.b16 %v738, %v737
        %v782 = vpack.c.b16 %v740, %v739
        %v783 = vpack.c.b16 %v742, %v741
        %v784 = vpack.c.b16 %v744, %v743
        %825 = vmatpush.bf16.msra.mxu0 %v752
        %826 = vmatpush.bf16.msra.mxu0 %v751
        %827 = vmatpush.bf16.msra.mxu0 %v750
        %828 = vmatpush.bf16.msra.mxu0 %v749
        %829 = vmatpush.bf16.msra.mxu0 %v748
        %830 = vmatpush.bf16.msra.mxu0 %v747
        %831 = vmatpush.bf16.msra.mxu0 %v746
        %832 = vmatpush.bf16.msra.mxu0 %v745
        %833 = vmatmul.bf16.gmra.mxu0 %v519
        %v834 = vpop.f32.mrf.mxu0
        %v835 = vadd.f32 0.0, %v834
        %v836 = vpop.f32.mrf.mxu0
        %v837 = vadd.f32 0.0, %v836
        %838 = vmatmul.bf16.gmra.mxu0 %v520
        %v839 = vpop.f32.mrf.mxu0
        %v840 = vadd.f32 0.0, %v839
        %v841 = vpop.f32.mrf.mxu0
        %v842 = vadd.f32 0.0, %v841
        %843 = vmatmul.bf16.gmra.mxu0 %v521
        %v844 = vpop.f32.mrf.mxu0
        %v845 = vadd.f32 0.0, %v844
        %v846 = vpop.f32.mrf.mxu0
        %847 = vdwg.mxu0
        %848 = vmatpush.bf16.msra.mxu0 %v760
        %849 = vmatpush.bf16.msra.mxu0 %v759
        %850 = vmatpush.bf16.msra.mxu0 %v758
        %851 = vmatpush.bf16.msra.mxu0 %v757
        %852 = vmatpush.bf16.msra.mxu0 %v756
        %853 = vmatpush.bf16.msra.mxu0 %v755
        %854 = vmatpush.bf16.msra.mxu0 %v754
        %855 = vmatpush.bf16.msra.mxu0 %v753
        %856 = vmatmul.bf16.gmra.mxu0 %v537
        %v857 = vpop.f32.mrf.mxu0
        %v858 = vadd.f32 %v835, %v857
        %v859 = vpop.f32.mrf.mxu0
        %v860 = vadd.f32 %v837, %v859
        %861 = vmatmul.bf16.gmra.mxu0 %v545
        %v862 = vpop.f32.mrf.mxu0
        %v863 = vadd.f32 %v840, %v862
        %v864 = vpop.f32.mrf.mxu0
        %v865 = vadd.f32 %v842, %v864
        %866 = vmatmul.bf16.gmra.mxu0 %v548
        %v867 = vpop.f32.mrf.mxu0
        %v868 = vadd.f32 %v845, %v867
        %v869 = vpop.f32.mrf.mxu0
        %870 = vdwg.mxu0
        %871 = vmatpush.bf16.msra.mxu0 %v768
        %872 = vmatpush.bf16.msra.mxu0 %v767
        %873 = vmatpush.bf16.msra.mxu0 %v766
        %874 = vmatpush.bf16.msra.mxu0 %v765
        %875 = vmatpush.bf16.msra.mxu0 %v764
        %876 = vmatpush.bf16.msra.mxu0 %v763
        %877 = vmatpush.bf16.msra.mxu0 %v762
        %878 = vmatpush.bf16.msra.mxu0 %v761
        %879 = vmatmul.bf16.gmra.mxu0 %v555
        %v880 = vpop.f32.mrf.mxu0
        %v881 = vadd.f32 %v858, %v880
        %v882 = vpop.f32.mrf.mxu0
        %v883 = vadd.f32 %v860, %v882
        %884 = vmatmul.bf16.gmra.mxu0 %v557
        %v885 = vpop.f32.mrf.mxu0
        %v886 = vadd.f32 %v863, %v885
        %v887 = vpop.f32.mrf.mxu0
        %v888 = vadd.f32 %v865, %v887
        %889 = vmatmul.bf16.gmra.mxu0 %v556
        %v890 = vpop.f32.mrf.mxu0
        %v891 = vadd.f32 %v868, %v890
        %v892 = vpop.f32.mrf.mxu0
        %893 = vdwg.mxu0
        %894 = vmatpush.bf16.msra.mxu0 %v776
        %895 = vmatpush.bf16.msra.mxu0 %v775
        %896 = vmatpush.bf16.msra.mxu0 %v774
        %897 = vmatpush.bf16.msra.mxu0 %v773
        %898 = vmatpush.bf16.msra.mxu0 %v772
        %899 = vmatpush.bf16.msra.mxu0 %v771
        %900 = vmatpush.bf16.msra.mxu0 %v770
        %901 = vmatpush.bf16.msra.mxu0 %v769
        %902 = vmatmul.bf16.gmra.mxu0 %v568
        %v903 = vpop.f32.mrf.mxu0
        %v904 = vadd.f32 %v881, %v903
        %v905 = vpop.f32.mrf.mxu0
        %v906 = vadd.f32 %v883, %v905
        %907 = vmatmul.bf16.gmra.mxu0 %v572
        %v908 = vpop.f32.mrf.mxu0
        %v909 = vadd.f32 %v886, %v908
        %v910 = vpop.f32.mrf.mxu0
        %v911 = vadd.f32 %v888, %v910
        %912 = vmatmul.bf16.gmra.mxu0 %v571
        %v913 = vpop.f32.mrf.mxu0
        %v914 = vadd.f32 %v891, %v913
        %v915 = vpop.f32.mrf.mxu0
        %916 = vdwg.mxu0
        %917 = vmatpush.bf16.msra.mxu0 %v784
        %918 = vmatpush.bf16.msra.mxu0 %v783
        %919 = vmatpush.bf16.msra.mxu0 %v782
        %920 = vmatpush.bf16.msra.mxu0 %v781
        %921 = vmatpush.bf16.msra.mxu0 %v780
        %922 = vmatpush.bf16.msra.mxu0 %v779
        %923 = vmatpush.bf16.msra.mxu0 %v778
        %924 = vmatpush.bf16.msra.mxu0 %v777
        %925 = vmatmul.bf16.gmra.mxu0 %v579
        %v926 = vpop.f32.mrf.mxu0
        %v927 = vadd.f32 %v904, %v926
        %v928 = vpop.f32.mrf.mxu0
        %v929 = vadd.f32 %v906, %v928
        %930 = vmatmul.bf16.gmra.mxu0 %v581
        %v931 = vpop.f32.mrf.mxu0
        %v932 = vadd.f32 %v909, %v931
        %v933 = vpop.f32.mrf.mxu0
        %v934 = vadd.f32 %v911, %v933
        %935 = vmatmul.bf16.gmra.mxu0 %v580
        %v936 = vpop.f32.mrf.mxu0
        %v937 = vadd.f32 %v914, %v936
        %v938 = vpop.f32.mrf.mxu0
        %939 = vdwg.mxu0
        %v941 = vperm.slane %v507, 0
        %v943 = vmul.f32 %v927, %v941
        %v944 = vmul.f32 %v929, %v941
        %v945 = vmul.f32 %v932, %v941
        %v946 = vmul.f32 %v934, %v941
        %v947 = vmul.f32 %v937, %v941
        %v949 = vperm.slane %v508, 0
        %v951 = vadd.f32 %v943, %v949
        %v952 = vadd.f32 %v944, %v949
        %v953 = vadd.f32 %v945, %v949
        %v954 = vadd.f32 %v946, %v949
        %v955 = vadd.f32 %v947, %v949
        %v956 = vtanh.pop %v951
        %v957 = vtanh.pop %v952
        %v958 = vtanh.pop %v953
        %v959 = vtanh.pop %v954
        %v960 = vtanh.pop %v955
        %s961 = sadd.s32 %s380, 4294967286
        %v962 = vlaneseq
        %v963 = vshrl.u32 %v962, 7
        %v964 = vadd.s32 %v963, 8
        %v965 = vadd.s32 %v963, 16
        %v966 = vadd.s32 %v963, 24
        %v967 = vadd.s32 %v963, 32
        %v968 = vstv %s961
        %v969 = vadd.s32 %v963, %v968
        %v970 = vadd.s32 %v964, %v968
        %v971 = vadd.s32 %v965, %v968
        %v972 = vadd.s32 %v966, %v968
        %v973 = vadd.s32 %v967, %v968
        %vm974 = vcmp.ge.s32.totalorder %v969, 0
        %vm975 = vcmp.ge.s32.totalorder %v970, 0
        %vm976 = vcmp.ge.s32.totalorder %v971, 0
        %vm977 = vcmp.ge.s32.totalorder %v972, 0
        %vm978 = vcmp.ge.s32.totalorder %v973, 0
        %vm979 = vcmp.lt.s32.totalorder %v969, 40
        %vm980 = vcmp.lt.s32.totalorder %v970, 40
        %vm981 = vcmp.lt.s32.totalorder %v971, 40
        %vm982 = vcmp.lt.s32.totalorder %v972, 40
        %vm983 = vcmp.lt.s32.totalorder %v973, 40
        %vm984 = vmand %vm974, %vm979
        %vm985 = vmand %vm975, %vm980
        %vm986 = vmand %vm976, %vm981
        %vm987 = vmand %vm977, %vm982
        %vm988 = vmand %vm978, %vm983
        %v989 = vsel %vm984, 1, 0
        %v990 = vsel %vm985, 1, 0
        %v991 = vsel %vm986, 1, 0
        %v992 = vsel %vm987, 1, 0
        %v993 = vsel %vm988, 1, 0
        %vm994 = vcmp.eq.s32.totalorder %v989, 1
        %vm995 = vcmp.eq.s32.totalorder %v990, 1
        %vm996 = vcmp.eq.s32.totalorder %v991, 1
        %vm997 = vcmp.eq.s32.totalorder %v992, 1
        %vm998 = vcmp.eq.s32.totalorder %v993, 1
        %v999 = vsel %vm994, %v956, 0.0
        %v1000 = vsel %vm995, %v957, 0.0
        %v1001 = vsel %vm996, %v958, 0.0
        %v1002 = vsel %vm997, %v959, 0.0
        %v1003 = vsel %vm998, %v960, 0.0
        %v1004 = vpack.c.bf16 %v999, %v999
        %v1005 = vpack.c.bf16 %v1000, %v1000
        %v1006 = vpack.c.bf16 %v1001, %v1001
        %v1007 = vpack.c.bf16 %v1002, %v1002
        %v1008 = vpack.c.bf16 %v1003, %v1003
        %v1009 = vld [vmem:[#allocation7] sm:$0xf]
        %v1010 = vld [vmem:[#allocation7 + $0x4] sm:$0xf]
        %v1011 = vld [vmem:[#allocation7 + $0x8] sm:$0xf]
        %v1012 = vld [vmem:[#allocation7 + $0xc] sm:$0xf]
        %v1013 = vld [vmem:[#allocation7 + $0x10] sm:$0xf]
        %v1014 = vld [vmem:[#allocation7 + $0x14] sm:$0xf]
        %v1015 = vld [vmem:[#allocation7 + $0x18] sm:$0xf]
        %v1016 = vld [vmem:[#allocation7 + $0x1c] sm:$0xf]
        %v1017 = vld [vmem:[#allocation7 + $0x20] sm:$0xf]
        %v1018 = vld [vmem:[#allocation7 + $0x24] sm:$0xf]
        %v1019 = vld [vmem:[#allocation7 + $0x28] sm:$0xf]
        %v1020 = vld [vmem:[#allocation7 + $0x2c] sm:$0xf]
        %v1021 = vld [vmem:[#allocation7 + $0x30] sm:$0xf]
        %v1022 = vld [vmem:[#allocation7 + $0x34] sm:$0xf]
        %v1023 = vld [vmem:[#allocation7 + $0x38] sm:$0xf]
        %v1024 = vld [vmem:[#allocation7 + $0x3c] sm:$0xf]
        %v1025 = vld [vmem:[#allocation7 + $0x40] sm:$0xf]
        %v1026 = vld [vmem:[#allocation7 + $0x44] sm:$0xf]
        %v1027 = vld [vmem:[#allocation7 + $0x48] sm:$0xf]
        %v1028 = vld [vmem:[#allocation7 + $0x4c] sm:$0xf]
        %v1029 = vld [vmem:[#allocation7 + $0x50] sm:$0xf]
        %v1030 = vld [vmem:[#allocation7 + $0x54] sm:$0xf]
        %v1031 = vld [vmem:[#allocation7 + $0x58] sm:$0xf]
        %v1032 = vld [vmem:[#allocation7 + $0x5c] sm:$0xf]
        %v1033 = vld [vmem:[#allocation7 + $0x60] sm:$0xf]
        %v1034 = vld [vmem:[#allocation7 + $0x64] sm:$0xf]
        %v1035 = vld [vmem:[#allocation7 + $0x68] sm:$0xf]
        %v1036 = vld [vmem:[#allocation7 + $0x6c] sm:$0xf]
        %v1037 = vld [vmem:[#allocation7 + $0x70] sm:$0xf]
        %v1038 = vld [vmem:[#allocation7 + $0x74] sm:$0xf]
        %v1039 = vld [vmem:[#allocation7 + $0x78] sm:$0xf]
        %v1040 = vld [vmem:[#allocation7 + $0x7c] sm:$0xf]
        %v1041 = vld [vmem:[#allocation7 + $0x80] sm:$0xf]
        %v1042 = vld [vmem:[#allocation7 + $0x84] sm:$0xf]
        %v1043 = vld [vmem:[#allocation7 + $0x88] sm:$0xf]
        %v1044 = vld [vmem:[#allocation7 + $0x8c] sm:$0xf]
        %v1045 = vld [vmem:[#allocation7 + $0x90] sm:$0xf]
        %v1046 = vld [vmem:[#allocation7 + $0x94] sm:$0xf]
        %v1047 = vld [vmem:[#allocation7 + $0x98] sm:$0xf]
        %v1048 = vld [vmem:[#allocation7 + $0x9c] sm:$0xf]
        %v1049 = vld [vmem:[#allocation7 + $0xa0] sm:$0xf]
        %v1050 = vld [vmem:[#allocation7 + $0xa4] sm:$0xf]
        %v1051 = vld [vmem:[#allocation7 + $0xa8] sm:$0xf]
        %v1052 = vld [vmem:[#allocation7 + $0xac] sm:$0xf]
        %v1053 = vld [vmem:[#allocation7 + $0xb0] sm:$0xf]
        %v1054 = vld [vmem:[#allocation7 + $0xb4] sm:$0xf]
        %v1055 = vld [vmem:[#allocation7 + $0xb8] sm:$0xf]
        %v1056 = vld [vmem:[#allocation7 + $0xbc] sm:$0xf]
        %v1057 = vld [vmem:[#allocation7 + $0xc0] sm:$0xf]
        %v1058 = vld [vmem:[#allocation7 + $0xc4] sm:$0xf]
        %v1059 = vld [vmem:[#allocation7 + $0xc8] sm:$0xf]
        %v1060 = vld [vmem:[#allocation7 + $0xcc] sm:$0xf]
        %v1061 = vld [vmem:[#allocation7 + $0xd0] sm:$0xf]
        %v1062 = vld [vmem:[#allocation7 + $0xd4] sm:$0xf]
        %v1063 = vld [vmem:[#allocation7 + $0xd8] sm:$0xf]
        %v1064 = vld [vmem:[#allocation7 + $0xdc] sm:$0xf]
        %v1065 = vld [vmem:[#allocation7 + $0xe0] sm:$0xf]
        %v1066 = vld [vmem:[#allocation7 + $0xe4] sm:$0xf]
        %v1067 = vld [vmem:[#allocation7 + $0xe8] sm:$0xf]
        %v1068 = vld [vmem:[#allocation7 + $0xec] sm:$0xf]
        %v1069 = vld [vmem:[#allocation7 + $0xf0] sm:$0xf]
        %v1070 = vld [vmem:[#allocation7 + $0xf4] sm:$0xf]
        %v1071 = vld [vmem:[#allocation7 + $0xf8] sm:$0xf]
        %v1072 = vld [vmem:[#allocation7 + $0xfc] sm:$0xf]
        %v1073 = vld [vmem:[#allocation7 + $0x100] sm:$0xf]
        %v1074 = vld [vmem:[#allocation7 + $0x104] sm:$0xf]
        %v1075 = vld [vmem:[#allocation7 + $0x108] sm:$0xf]
        %v1076 = vld [vmem:[#allocation7 + $0x10c] sm:$0xf]
        %v1077 = vld [vmem:[#allocation7 + $0x110] sm:$0xf]
        %v1078 = vld [vmem:[#allocation7 + $0x114] sm:$0xf]
        %v1079 = vld [vmem:[#allocation7 + $0x118] sm:$0xf]
        %v1080 = vld [vmem:[#allocation7 + $0x11c] sm:$0xf]
        %v1081 = vld [vmem:[#allocation7 + $0x120] sm:$0xf]
        %v1082 = vld [vmem:[#allocation7 + $0x124] sm:$0xf]
        %v1083 = vld [vmem:[#allocation7 + $0x128] sm:$0xf]
        %v1084 = vld [vmem:[#allocation7 + $0x12c] sm:$0xf]
        %v1085 = vld [vmem:[#allocation7 + $0x130] sm:$0xf]
        %v1086 = vld [vmem:[#allocation7 + $0x134] sm:$0xf]
        %v1087 = vld [vmem:[#allocation7 + $0x138] sm:$0xf]
        %v1088 = vld [vmem:[#allocation7 + $0x13c] sm:$0xf]
        %s1089 = scalar_lea.vmem [#allocation10], 1
        %v1090 = vld [vmem:[%s1089] sm:$0x1]
        %s1091 = scalar_lea.vmem %s5, 1
        %v1092 = vld [vmem:[%s1091] sm:$0x1]
        %v1097 = vunpack.c.l.b16 %v1004
        %v1098 = vunpack.c.l.b16 %v1005
        %v1099 = vunpack.c.l.b16 %v1006
        %v1100 = vunpack.c.l.b16 %v1007
        %v1101 = vpack.c.b16 %v1098, %v1097
        %v1102 = vpack.c.b16 %v1100, %v1099
        %v1106 = vunpack.c.l.b16 %v1008
        %v1107 = vpack.c.b16 %v1106, %v1106
        %v1109 = vshrl.u32 %v1101, 16
        %v1111 = vshll.u32 %v1101, 16
        %v1113 = vrot.slane %v1111, 1
        %v1114 = vor.u32 %v1109, %v1113
        %v1116 = vshll.u32 %v1102, 16
        %v1118 = vrot.slane %v1116, 1
        %v1119 = vsel %vm525, %v1114, %v1118
        %v1120 = vshrl.u32 %v1102, 16
        %v1122 = vor.u32 %v1120, %v1118
        %v1124 = vshll.u32 %v1107, 16
        %v1126 = vrot.slane %v1124, 1
        %v1127 = vsel %vm525, %v1122, %v1126
        %v1130 = vrot.slane %v1101, 1
        %v1131 = vrot.slane %v1102, 1
        %v1132 = vsel %vm552, %v1130, %v1131
        %v1133 = vrot.slane %v1107, 1
        %v1134 = vsel %vm552, %v1131, %v1133
        %v1137 = vrot.slane %v1109, 1
        %v1138 = vrot.slane %v1111, 2
        %v1139 = vor.u32 %v1137, %v1138
        %v1140 = vrot.slane %v1120, 1
        %v1141 = vrot.slane %v1116, 2
        %v1142 = vor.u32 %v1140, %v1141
        %v1143 = vsel %vm561, %v1139, %v1142
        %v1144 = vshrl.u32 %v1107, 16
        %v1146 = vrot.slane %v1144, 1
        %v1147 = vrot.slane %v1124, 2
        %v1148 = vor.u32 %v1146, %v1147
        %v1149 = vsel %vm561, %v1142, %v1148
        %v1152 = vrot.slane %v1101, 2
        %v1153 = vrot.slane %v1102, 2
        %v1154 = vsel %vm576, %v1152, %v1153
        %v1155 = vrot.slane %v1107, 2
        %v1156 = vsel %vm576, %v1153, %v1155
        %v1239 = vunpack.c.l.b16 %v1009
        %v1240 = vunpack.c.l.b16 %v1010
        %v1241 = vunpack.c.l.b16 %v1011
        %v1242 = vunpack.c.l.b16 %v1012
        %v1243 = vunpack.c.l.b16 %v1013
        %v1244 = vunpack.c.l.b16 %v1014
        %v1245 = vunpack.c.l.b16 %v1015
        %v1246 = vunpack.c.l.b16 %v1016
        %v1247 = vunpack.c.l.b16 %v1017
        %v1248 = vunpack.c.l.b16 %v1018
        %v1249 = vunpack.c.l.b16 %v1019
        %v1250 = vunpack.c.l.b16 %v1020
        %v1251 = vunpack.c.l.b16 %v1021
        %v1252 = vunpack.c.l.b16 %v1022
        %v1253 = vunpack.c.l.b16 %v1023
        %v1254 = vunpack.c.l.b16 %v1024
        %v1255 = vunpack.c.l.b16 %v1025
        %v1256 = vunpack.c.l.b16 %v1026
        %v1257 = vunpack.c.l.b16 %v1027
        %v1258 = vunpack.c.l.b16 %v1028
        %v1259 = vunpack.c.l.b16 %v1029
        %v1260 = vunpack.c.l.b16 %v1030
        %v1261 = vunpack.c.l.b16 %v1031
        %v1262 = vunpack.c.l.b16 %v1032
        %v1263 = vunpack.c.l.b16 %v1033
        %v1264 = vunpack.c.l.b16 %v1034
        %v1265 = vunpack.c.l.b16 %v1035
        %v1266 = vunpack.c.l.b16 %v1036
        %v1267 = vunpack.c.l.b16 %v1037
        %v1268 = vunpack.c.l.b16 %v1038
        %v1269 = vunpack.c.l.b16 %v1039
        %v1270 = vunpack.c.l.b16 %v1040
        %v1271 = vunpack.c.l.b16 %v1041
        %v1272 = vunpack.c.l.b16 %v1042
        %v1273 = vunpack.c.l.b16 %v1043
        %v1274 = vunpack.c.l.b16 %v1044
        %v1275 = vunpack.c.l.b16 %v1045
        %v1276 = vunpack.c.l.b16 %v1046
        %v1277 = vunpack.c.l.b16 %v1047
        %v1278 = vunpack.c.l.b16 %v1048
        %v1279 = vunpack.c.l.b16 %v1049
        %v1280 = vunpack.c.l.b16 %v1050
        %v1281 = vunpack.c.l.b16 %v1051
        %v1282 = vunpack.c.l.b16 %v1052
        %v1283 = vunpack.c.l.b16 %v1053
        %v1284 = vunpack.c.l.b16 %v1054
        %v1285 = vunpack.c.l.b16 %v1055
        %v1286 = vunpack.c.l.b16 %v1056
        %v1287 = vunpack.c.l.b16 %v1057
        %v1288 = vunpack.c.l.b16 %v1058
        %v1289 = vunpack.c.l.b16 %v1059
        %v1290 = vunpack.c.l.b16 %v1060
        %v1291 = vunpack.c.l.b16 %v1061
        %v1292 = vunpack.c.l.b16 %v1062
        %v1293 = vunpack.c.l.b16 %v1063
        %v1294 = vunpack.c.l.b16 %v1064
        %v1295 = vunpack.c.l.b16 %v1065
        %v1296 = vunpack.c.l.b16 %v1066
        %v1297 = vunpack.c.l.b16 %v1067
        %v1298 = vunpack.c.l.b16 %v1068
        %v1299 = vunpack.c.l.b16 %v1069
        %v1300 = vunpack.c.l.b16 %v1070
        %v1301 = vunpack.c.l.b16 %v1071
        %v1302 = vunpack.c.l.b16 %v1072
        %v1303 = vunpack.c.l.b16 %v1073
        %v1304 = vunpack.c.l.b16 %v1074
        %v1305 = vunpack.c.l.b16 %v1075
        %v1306 = vunpack.c.l.b16 %v1076
        %v1307 = vunpack.c.l.b16 %v1077
        %v1308 = vunpack.c.l.b16 %v1078
        %v1309 = vunpack.c.l.b16 %v1079
        %v1310 = vunpack.c.l.b16 %v1080
        %v1311 = vunpack.c.l.b16 %v1081
        %v1312 = vunpack.c.l.b16 %v1082
        %v1313 = vunpack.c.l.b16 %v1083
        %v1314 = vunpack.c.l.b16 %v1084
        %v1315 = vunpack.c.l.b16 %v1085
        %v1316 = vunpack.c.l.b16 %v1086
        %v1317 = vunpack.c.l.b16 %v1087
        %v1318 = vunpack.c.l.b16 %v1088
        %v1319 = vpack.c.b16 %v1240, %v1239
        %v1320 = vpack.c.b16 %v1242, %v1241
        %v1321 = vpack.c.b16 %v1244, %v1243
        %v1322 = vpack.c.b16 %v1246, %v1245
        %v1323 = vpack.c.b16 %v1248, %v1247
        %v1324 = vpack.c.b16 %v1250, %v1249
        %v1325 = vpack.c.b16 %v1252, %v1251
        %v1326 = vpack.c.b16 %v1254, %v1253
        %v1327 = vpack.c.b16 %v1256, %v1255
        %v1328 = vpack.c.b16 %v1258, %v1257
        %v1329 = vpack.c.b16 %v1260, %v1259
        %v1330 = vpack.c.b16 %v1262, %v1261
        %v1331 = vpack.c.b16 %v1264, %v1263
        %v1332 = vpack.c.b16 %v1266, %v1265
        %v1333 = vpack.c.b16 %v1268, %v1267
        %v1334 = vpack.c.b16 %v1270, %v1269
        %v1335 = vpack.c.b16 %v1272, %v1271
        %v1336 = vpack.c.b16 %v1274, %v1273
        %v1337 = vpack.c.b16 %v1276, %v1275
        %v1338 = vpack.c.b16 %v1278, %v1277
        %v1339 = vpack.c.b16 %v1280, %v1279
        %v1340 = vpack.c.b16 %v1282, %v1281
        %v1341 = vpack.c.b16 %v1284, %v1283
        %v1342 = vpack.c.b16 %v1286, %v1285
        %v1343 = vpack.c.b16 %v1288, %v1287
        %v1344 = vpack.c.b16 %v1290, %v1289
        %v1345 = vpack.c.b16 %v1292, %v1291
        %v1346 = vpack.c.b16 %v1294, %v1293
        %v1347 = vpack.c.b16 %v1296, %v1295
        %v1348 = vpack.c.b16 %v1298, %v1297
        %v1349 = vpack.c.b16 %v1300, %v1299
        %v1350 = vpack.c.b16 %v1302, %v1301
        %v1351 = vpack.c.b16 %v1304, %v1303
        %v1352 = vpack.c.b16 %v1306, %v1305
        %v1353 = vpack.c.b16 %v1308, %v1307
        %v1354 = vpack.c.b16 %v1310, %v1309
        %v1355 = vpack.c.b16 %v1312, %v1311
        %v1356 = vpack.c.b16 %v1314, %v1313
        %v1357 = vpack.c.b16 %v1316, %v1315
        %v1358 = vpack.c.b16 %v1318, %v1317
        %1399 = vmatpush.bf16.msra.mxu0 %v1326
        %1400 = vmatpush.bf16.msra.mxu0 %v1325
        %1401 = vmatpush.bf16.msra.mxu0 %v1324
        %1402 = vmatpush.bf16.msra.mxu0 %v1323
        %1403 = vmatpush.bf16.msra.mxu0 %v1322
        %1404 = vmatpush.bf16.msra.mxu0 %v1321
        %1405 = vmatpush.bf16.msra.mxu0 %v1320
        %1406 = vmatpush.bf16.msra.mxu0 %v1319
        %1407 = vmatmul.bf16.gmra.mxu0 %v1101
        %v1408 = vpop.f32.mrf.mxu0
        %v1409 = vadd.f32 0.0, %v1408
        %v1410 = vpop.f32.mrf.mxu0
        %v1411 = vadd.f32 0.0, %v1410
        %1412 = vmatmul.bf16.gmra.mxu0 %v1102
        %v1413 = vpop.f32.mrf.mxu0
        %v1414 = vadd.f32 0.0, %v1413
        %v1415 = vpop.f32.mrf.mxu0
        %v1416 = vadd.f32 0.0, %v1415
        %1417 = vdwg.mxu0
        %1418 = vmatpush.bf16.msra.mxu0 %v1334
        %1419 = vmatpush.bf16.msra.mxu0 %v1333
        %1420 = vmatpush.bf16.msra.mxu0 %v1332
        %1421 = vmatpush.bf16.msra.mxu0 %v1331
        %1422 = vmatpush.bf16.msra.mxu0 %v1330
        %1423 = vmatpush.bf16.msra.mxu0 %v1329
        %1424 = vmatpush.bf16.msra.mxu0 %v1328
        %1425 = vmatpush.bf16.msra.mxu0 %v1327
        %1426 = vmatmul.bf16.gmra.mxu0 %v1119
        %v1427 = vpop.f32.mrf.mxu0
        %v1428 = vadd.f32 %v1409, %v1427
        %v1429 = vpop.f32.mrf.mxu0
        %v1430 = vadd.f32 %v1411, %v1429
        %1431 = vmatmul.bf16.gmra.mxu0 %v1127
        %v1432 = vpop.f32.mrf.mxu0
        %v1433 = vadd.f32 %v1414, %v1432
        %v1434 = vpop.f32.mrf.mxu0
        %v1435 = vadd.f32 %v1416, %v1434
        %1436 = vdwg.mxu0
        %1437 = vmatpush.bf16.msra.mxu0 %v1342
        %1438 = vmatpush.bf16.msra.mxu0 %v1341
        %1439 = vmatpush.bf16.msra.mxu0 %v1340
        %1440 = vmatpush.bf16.msra.mxu0 %v1339
        %1441 = vmatpush.bf16.msra.mxu0 %v1338
        %1442 = vmatpush.bf16.msra.mxu0 %v1337
        %1443 = vmatpush.bf16.msra.mxu0 %v1336
        %1444 = vmatpush.bf16.msra.mxu0 %v1335
        %1445 = vmatmul.bf16.gmra.mxu0 %v1132
        %v1446 = vpop.f32.mrf.mxu0
        %v1447 = vadd.f32 %v1428, %v1446
        %v1448 = vpop.f32.mrf.mxu0
        %v1449 = vadd.f32 %v1430, %v1448
        %1450 = vmatmul.bf16.gmra.mxu0 %v1134
        %v1451 = vpop.f32.mrf.mxu0
        %v1452 = vadd.f32 %v1433, %v1451
        %v1453 = vpop.f32.mrf.mxu0
        %v1454 = vadd.f32 %v1435, %v1453
        %1455 = vdwg.mxu0
        %1456 = vmatpush.bf16.msra.mxu0 %v1350
        %1457 = vmatpush.bf16.msra.mxu0 %v1349
        %1458 = vmatpush.bf16.msra.mxu0 %v1348
        %1459 = vmatpush.bf16.msra.mxu0 %v1347
        %1460 = vmatpush.bf16.msra.mxu0 %v1346
        %1461 = vmatpush.bf16.msra.mxu0 %v1345
        %1462 = vmatpush.bf16.msra.mxu0 %v1344
        %1463 = vmatpush.bf16.msra.mxu0 %v1343
        %1464 = vmatmul.bf16.gmra.mxu0 %v1143
        %v1465 = vpop.f32.mrf.mxu0
        %v1466 = vadd.f32 %v1447, %v1465
        %v1467 = vpop.f32.mrf.mxu0
        %v1468 = vadd.f32 %v1449, %v1467
        %1469 = vmatmul.bf16.gmra.mxu0 %v1149
        %v1470 = vpop.f32.mrf.mxu0
        %v1471 = vadd.f32 %v1452, %v1470
        %v1472 = vpop.f32.mrf.mxu0
        %v1473 = vadd.f32 %v1454, %v1472
        %1474 = vdwg.mxu0
        %1475 = vmatpush.bf16.msra.mxu0 %v1358
        %1476 = vmatpush.bf16.msra.mxu0 %v1357
        %1477 = vmatpush.bf16.msra.mxu0 %v1356
        %1478 = vmatpush.bf16.msra.mxu0 %v1355
        %1479 = vmatpush.bf16.msra.mxu0 %v1354
        %1480 = vmatpush.bf16.msra.mxu0 %v1353
        %1481 = vmatpush.bf16.msra.mxu0 %v1352
        %1482 = vmatpush.bf16.msra.mxu0 %v1351
        %1483 = vmatmul.bf16.gmra.mxu0 %v1154
        %v1484 = vpop.f32.mrf.mxu0
        %v1485 = vadd.f32 %v1466, %v1484
        %v1486 = vpop.f32.mrf.mxu0
        %v1487 = vadd.f32 %v1468, %v1486
        %1488 = vmatmul.bf16.gmra.mxu0 %v1156
        %v1489 = vpop.f32.mrf.mxu0
        %v1490 = vadd.f32 %v1471, %v1489
        %v1491 = vpop.f32.mrf.mxu0
        %v1492 = vadd.f32 %v1473, %v1491
        %1493 = vdwg.mxu0
        %v1495 = vperm.slane %v1090, 0
        %v1497 = vmul.f32 %v1485, %v1495
        %v1498 = vmul.f32 %v1487, %v1495
        %v1499 = vmul.f32 %v1490, %v1495
        %v1500 = vmul.f32 %v1492, %v1495
        %v1502 = vperm.slane %v1092, 0
        %v1504 = vadd.f32 %v1497, %v1502
        %v1505 = vadd.f32 %v1498, %v1502
        %v1506 = vadd.f32 %v1499, %v1502
        %v1507 = vadd.f32 %v1500, %v1502
        %v1508 = vtanh.pop %v1504
        %v1509 = vtanh.pop %v1505
        %v1510 = vtanh.pop %v1506
        %v1511 = vtanh.pop %v1507
        %s1512 = sadd.s32 %s380, 4294967288
        %v1513 = vstv %s1512
        %v1514 = vadd.s32 %v963, %v1513
        %v1515 = vadd.s32 %v964, %v1513
        %v1516 = vadd.s32 %v965, %v1513
        %v1517 = vadd.s32 %v966, %v1513
        %vm1518 = vcmp.ge.s32.totalorder %v1514, 0
        %vm1519 = vcmp.ge.s32.totalorder %v1515, 0
        %vm1520 = vcmp.ge.s32.totalorder %v1516, 0
        %vm1521 = vcmp.ge.s32.totalorder %v1517, 0
        %vm1522 = vcmp.lt.s32.totalorder %v1514, 40
        %vm1523 = vcmp.lt.s32.totalorder %v1515, 40
        %vm1524 = vcmp.lt.s32.totalorder %v1516, 40
        %vm1525 = vcmp.lt.s32.totalorder %v1517, 40
        %vm1526 = vmand %vm1518, %vm1522
        %vm1527 = vmand %vm1519, %vm1523
        %vm1528 = vmand %vm1520, %vm1524
        %vm1529 = vmand %vm1521, %vm1525
        %v1530 = vsel %vm1526, 1, 0
        %v1531 = vsel %vm1527, 1, 0
        %v1532 = vsel %vm1528, 1, 0
        %v1533 = vsel %vm1529, 1, 0
        %vm1534 = vcmp.eq.s32.totalorder %v1530, 1
        %vm1535 = vcmp.eq.s32.totalorder %v1531, 1
        %vm1536 = vcmp.eq.s32.totalorder %v1532, 1
        %vm1537 = vcmp.eq.s32.totalorder %v1533, 1
        %v1538 = vsel %vm1534, %v1508, 0.0
        %v1539 = vsel %vm1535, %v1509, 0.0
        %v1540 = vsel %vm1536, %v1510, 0.0
        %v1541 = vsel %vm1537, %v1511, 0.0
        %v1542 = vpack.c.bf16 %v1538, %v1538
        %v1543 = vpack.c.bf16 %v1539, %v1539
        %v1544 = vpack.c.bf16 %v1540, %v1540
        %v1545 = vpack.c.bf16 %v1541, %v1541
        %s1546 = scalar_lea.vmem [#allocation7], 320
        %v1547 = vld [vmem:[%s1546] sm:$0xf]
        %v1548 = vld [vmem:[%s1546 + $0x4] sm:$0xf]
        %v1549 = vld [vmem:[%s1546 + $0x8] sm:$0xf]
        %v1550 = vld [vmem:[%s1546 + $0xc] sm:$0xf]
        %v1551 = vld [vmem:[%s1546 + $0x10] sm:$0xf]
        %v1552 = vld [vmem:[%s1546 + $0x14] sm:$0xf]
        %v1553 = vld [vmem:[%s1546 + $0x18] sm:$0xf]
        %v1554 = vld [vmem:[%s1546 + $0x1c] sm:$0xf]
        %v1555 = vld [vmem:[%s1546 + $0x20] sm:$0xf]
        %v1556 = vld [vmem:[%s1546 + $0x24] sm:$0xf]
        %v1557 = vld [vmem:[%s1546 + $0x28] sm:$0xf]
        %v1558 = vld [vmem:[%s1546 + $0x2c] sm:$0xf]
        %v1559 = vld [vmem:[%s1546 + $0x30] sm:$0xf]
        %v1560 = vld [vmem:[%s1546 + $0x34] sm:$0xf]
        %v1561 = vld [vmem:[%s1546 + $0x38] sm:$0xf]
        %v1562 = vld [vmem:[%s1546 + $0x3c] sm:$0xf]
        %v1563 = vld [vmem:[%s1546 + $0x40] sm:$0xf]
        %v1564 = vld [vmem:[%s1546 + $0x44] sm:$0xf]
        %v1565 = vld [vmem:[%s1546 + $0x48] sm:$0xf]
        %v1566 = vld [vmem:[%s1546 + $0x4c] sm:$0xf]
        %v1567 = vld [vmem:[%s1546 + $0x50] sm:$0xf]
        %v1568 = vld [vmem:[%s1546 + $0x54] sm:$0xf]
        %v1569 = vld [vmem:[%s1546 + $0x58] sm:$0xf]
        %v1570 = vld [vmem:[%s1546 + $0x5c] sm:$0xf]
        %v1571 = vld [vmem:[%s1546 + $0x60] sm:$0xf]
        %v1572 = vld [vmem:[%s1546 + $0x64] sm:$0xf]
        %v1573 = vld [vmem:[%s1546 + $0x68] sm:$0xf]
        %v1574 = vld [vmem:[%s1546 + $0x6c] sm:$0xf]
        %v1575 = vld [vmem:[%s1546 + $0x70] sm:$0xf]
        %v1576 = vld [vmem:[%s1546 + $0x74] sm:$0xf]
        %v1577 = vld [vmem:[%s1546 + $0x78] sm:$0xf]
        %v1578 = vld [vmem:[%s1546 + $0x7c] sm:$0xf]
        %v1579 = vld [vmem:[%s1546 + $0x80] sm:$0xf]
        %v1580 = vld [vmem:[%s1546 + $0x84] sm:$0xf]
        %v1581 = vld [vmem:[%s1546 + $0x88] sm:$0xf]
        %v1582 = vld [vmem:[%s1546 + $0x8c] sm:$0xf]
        %v1583 = vld [vmem:[%s1546 + $0x90] sm:$0xf]
        %v1584 = vld [vmem:[%s1546 + $0x94] sm:$0xf]
        %v1585 = vld [vmem:[%s1546 + $0x98] sm:$0xf]
        %v1586 = vld [vmem:[%s1546 + $0x9c] sm:$0xf]
        %v1587 = vld [vmem:[%s1546 + $0xa0] sm:$0xf]
        %v1588 = vld [vmem:[%s1546 + $0xa4] sm:$0xf]
        %v1589 = vld [vmem:[%s1546 + $0xa8] sm:$0xf]
        %v1590 = vld [vmem:[%s1546 + $0xac] sm:$0xf]
        %v1591 = vld [vmem:[%s1546 + $0xb0] sm:$0xf]
        %v1592 = vld [vmem:[%s1546 + $0xb4] sm:$0xf]
        %v1593 = vld [vmem:[%s1546 + $0xb8] sm:$0xf]
        %v1594 = vld [vmem:[%s1546 + $0xbc] sm:$0xf]
        %v1595 = vld [vmem:[%s1546 + $0xc0] sm:$0xf]
        %v1596 = vld [vmem:[%s1546 + $0xc4] sm:$0xf]
        %v1597 = vld [vmem:[%s1546 + $0xc8] sm:$0xf]
        %v1598 = vld [vmem:[%s1546 + $0xcc] sm:$0xf]
        %v1599 = vld [vmem:[%s1546 + $0xd0] sm:$0xf]
        %v1600 = vld [vmem:[%s1546 + $0xd4] sm:$0xf]
        %v1601 = vld [vmem:[%s1546 + $0xd8] sm:$0xf]
        %v1602 = vld [vmem:[%s1546 + $0xdc] sm:$0xf]
        %v1603 = vld [vmem:[%s1546 + $0xe0] sm:$0xf]
        %v1604 = vld [vmem:[%s1546 + $0xe4] sm:$0xf]
        %v1605 = vld [vmem:[%s1546 + $0xe8] sm:$0xf]
        %v1606 = vld [vmem:[%s1546 + $0xec] sm:$0xf]
        %v1607 = vld [vmem:[%s1546 + $0xf0] sm:$0xf]
        %v1608 = vld [vmem:[%s1546 + $0xf4] sm:$0xf]
        %v1609 = vld [vmem:[%s1546 + $0xf8] sm:$0xf]
        %v1610 = vld [vmem:[%s1546 + $0xfc] sm:$0xf]
        %v1611 = vld [vmem:[%s1546 + $0x100] sm:$0xf]
        %v1612 = vld [vmem:[%s1546 + $0x104] sm:$0xf]
        %v1613 = vld [vmem:[%s1546 + $0x108] sm:$0xf]
        %v1614 = vld [vmem:[%s1546 + $0x10c] sm:$0xf]
        %v1615 = vld [vmem:[%s1546 + $0x110] sm:$0xf]
        %v1616 = vld [vmem:[%s1546 + $0x114] sm:$0xf]
        %v1617 = vld [vmem:[%s1546 + $0x118] sm:$0xf]
        %v1618 = vld [vmem:[%s1546 + $0x11c] sm:$0xf]
        %v1619 = vld [vmem:[%s1546 + $0x120] sm:$0xf]
        %v1620 = vld [vmem:[%s1546 + $0x124] sm:$0xf]
        %v1621 = vld [vmem:[%s1546 + $0x128] sm:$0xf]
        %v1622 = vld [vmem:[%s1546 + $0x12c] sm:$0xf]
        %v1623 = vld [vmem:[%s1546 + $0x130] sm:$0xf]
        %v1624 = vld [vmem:[%s1546 + $0x134] sm:$0xf]
        %v1625 = vld [vmem:[%s1546 + $0x138] sm:$0xf]
        %v1626 = vld [vmem:[%s1546 + $0x13c] sm:$0xf]
        %s1627 = scalar_lea.vmem [#allocation10], 2
        %v1628 = vld [vmem:[%s1627] sm:$0x1]
        %s1629 = scalar_lea.vmem %s5, 2
        %v1630 = vld [vmem:[%s1629] sm:$0x1]
        %v1635 = vunpack.c.l.b16 %v1542
        %v1636 = vunpack.c.l.b16 %v1543
        %v1637 = vunpack.c.l.b16 %v1544
        %v1638 = vunpack.c.l.b16 %v1545
        %v1639 = vpack.c.b16 %v1636, %v1635
        %v1640 = vpack.c.b16 %v1638, %v1637
        %v1644 = vshrl.u32 %v1639, 16
        %v1646 = vshll.u32 %v1639, 16
        %v1648 = vrot.slane %v1646, 1
        %v1649 = vor.u32 %v1644, %v1648
        %v1651 = vshll.u32 %v1640, 16
        %v1653 = vrot.slane %v1651, 1
        %v1654 = vsel %vm525, %v1649, %v1653
        %v1655 = vshrl.u32 %v1640, 16
        %v1657 = vor.u32 %v1655, %v1653
        %v1660 = vrot.slane %v1639, 1
        %v1661 = vrot.slane %v1640, 1
        %v1662 = vsel %vm552, %v1660, %v1661
        %v1665 = vrot.slane %v1644, 1
        %v1666 = vrot.slane %v1646, 2
        %v1667 = vor.u32 %v1665, %v1666
        %v1668 = vrot.slane %v1655, 1
        %v1669 = vrot.slane %v1651, 2
        %v1670 = vor.u32 %v1668, %v1669
        %v1671 = vsel %vm561, %v1667, %v1670
        %v1674 = vrot.slane %v1639, 2
        %v1675 = vrot.slane %v1640, 2
        %v1676 = vsel %vm576, %v1674, %v1675
        %v1759 = vunpack.c.l.b16 %v1547
        %v1760 = vunpack.c.l.b16 %v1548
        %v1761 = vunpack.c.l.b16 %v1549
        %v1762 = vunpack.c.l.b16 %v1550
        %v1763 = vunpack.c.l.b16 %v1551
        %v1764 = vunpack.c.l.b16 %v1552
        %v1765 = vunpack.c.l.b16 %v1553
        %v1766 = vunpack.c.l.b16 %v1554
        %v1767 = vunpack.c.l.b16 %v1555
        %v1768 = vunpack.c.l.b16 %v1556
        %v1769 = vunpack.c.l.b16 %v1557
        %v1770 = vunpack.c.l.b16 %v1558
        %v1771 = vunpack.c.l.b16 %v1559
        %v1772 = vunpack.c.l.b16 %v1560
        %v1773 = vunpack.c.l.b16 %v1561
        %v1774 = vunpack.c.l.b16 %v1562
        %v1775 = vunpack.c.l.b16 %v1563
        %v1776 = vunpack.c.l.b16 %v1564
        %v1777 = vunpack.c.l.b16 %v1565
        %v1778 = vunpack.c.l.b16 %v1566
        %v1779 = vunpack.c.l.b16 %v1567
        %v1780 = vunpack.c.l.b16 %v1568
        %v1781 = vunpack.c.l.b16 %v1569
        %v1782 = vunpack.c.l.b16 %v1570
        %v1783 = vunpack.c.l.b16 %v1571
        %v1784 = vunpack.c.l.b16 %v1572
        %v1785 = vunpack.c.l.b16 %v1573
        %v1786 = vunpack.c.l.b16 %v1574
        %v1787 = vunpack.c.l.b16 %v1575
        %v1788 = vunpack.c.l.b16 %v1576
        %v1789 = vunpack.c.l.b16 %v1577
        %v1790 = vunpack.c.l.b16 %v1578
        %v1791 = vunpack.c.l.b16 %v1579
        %v1792 = vunpack.c.l.b16 %v1580
        %v1793 = vunpack.c.l.b16 %v1581
        %v1794 = vunpack.c.l.b16 %v1582
        %v1795 = vunpack.c.l.b16 %v1583
        %v1796 = vunpack.c.l.b16 %v1584
        %v1797 = vunpack.c.l.b16 %v1585
        %v1798 = vunpack.c.l.b16 %v1586
        %v1799 = vunpack.c.l.b16 %v1587
        %v1800 = vunpack.c.l.b16 %v1588
        %v1801 = vunpack.c.l.b16 %v1589
        %v1802 = vunpack.c.l.b16 %v1590
        %v1803 = vunpack.c.l.b16 %v1591
        %v1804 = vunpack.c.l.b16 %v1592
        %v1805 = vunpack.c.l.b16 %v1593
        %v1806 = vunpack.c.l.b16 %v1594
        %v1807 = vunpack.c.l.b16 %v1595
        %v1808 = vunpack.c.l.b16 %v1596
        %v1809 = vunpack.c.l.b16 %v1597
        %v1810 = vunpack.c.l.b16 %v1598
        %v1811 = vunpack.c.l.b16 %v1599
        %v1812 = vunpack.c.l.b16 %v1600
        %v1813 = vunpack.c.l.b16 %v1601
        %v1814 = vunpack.c.l.b16 %v1602
        %v1815 = vunpack.c.l.b16 %v1603
        %v1816 = vunpack.c.l.b16 %v1604
        %v1817 = vunpack.c.l.b16 %v1605
        %v1818 = vunpack.c.l.b16 %v1606
        %v1819 = vunpack.c.l.b16 %v1607
        %v1820 = vunpack.c.l.b16 %v1608
        %v1821 = vunpack.c.l.b16 %v1609
        %v1822 = vunpack.c.l.b16 %v1610
        %v1823 = vunpack.c.l.b16 %v1611
        %v1824 = vunpack.c.l.b16 %v1612
        %v1825 = vunpack.c.l.b16 %v1613
        %v1826 = vunpack.c.l.b16 %v1614
        %v1827 = vunpack.c.l.b16 %v1615
        %v1828 = vunpack.c.l.b16 %v1616
        %v1829 = vunpack.c.l.b16 %v1617
        %v1830 = vunpack.c.l.b16 %v1618
        %v1831 = vunpack.c.l.b16 %v1619
        %v1832 = vunpack.c.l.b16 %v1620
        %v1833 = vunpack.c.l.b16 %v1621
        %v1834 = vunpack.c.l.b16 %v1622
        %v1835 = vunpack.c.l.b16 %v1623
        %v1836 = vunpack.c.l.b16 %v1624
        %v1837 = vunpack.c.l.b16 %v1625
        %v1838 = vunpack.c.l.b16 %v1626
        %v1839 = vpack.c.b16 %v1760, %v1759
        %v1840 = vpack.c.b16 %v1762, %v1761
        %v1841 = vpack.c.b16 %v1764, %v1763
        %v1842 = vpack.c.b16 %v1766, %v1765
        %v1843 = vpack.c.b16 %v1768, %v1767
        %v1844 = vpack.c.b16 %v1770, %v1769
        %v1845 = vpack.c.b16 %v1772, %v1771
        %v1846 = vpack.c.b16 %v1774, %v1773
        %v1847 = vpack.c.b16 %v1776, %v1775
        %v1848 = vpack.c.b16 %v1778, %v1777
        %v1849 = vpack.c.b16 %v1780, %v1779
        %v1850 = vpack.c.b16 %v1782, %v1781
        %v1851 = vpack.c.b16 %v1784, %v1783
        %v1852 = vpack.c.b16 %v1786, %v1785
        %v1853 = vpack.c.b16 %v1788, %v1787
        %v1854 = vpack.c.b16 %v1790, %v1789
        %v1855 = vpack.c.b16 %v1792, %v1791
        %v1856 = vpack.c.b16 %v1794, %v1793
        %v1857 = vpack.c.b16 %v1796, %v1795
        %v1858 = vpack.c.b16 %v1798, %v1797
        %v1859 = vpack.c.b16 %v1800, %v1799
        %v1860 = vpack.c.b16 %v1802, %v1801
        %v1861 = vpack.c.b16 %v1804, %v1803
        %v1862 = vpack.c.b16 %v1806, %v1805
        %v1863 = vpack.c.b16 %v1808, %v1807
        %v1864 = vpack.c.b16 %v1810, %v1809
        %v1865 = vpack.c.b16 %v1812, %v1811
        %v1866 = vpack.c.b16 %v1814, %v1813
        %v1867 = vpack.c.b16 %v1816, %v1815
        %v1868 = vpack.c.b16 %v1818, %v1817
        %v1869 = vpack.c.b16 %v1820, %v1819
        %v1870 = vpack.c.b16 %v1822, %v1821
        %v1871 = vpack.c.b16 %v1824, %v1823
        %v1872 = vpack.c.b16 %v1826, %v1825
        %v1873 = vpack.c.b16 %v1828, %v1827
        %v1874 = vpack.c.b16 %v1830, %v1829
        %v1875 = vpack.c.b16 %v1832, %v1831
        %v1876 = vpack.c.b16 %v1834, %v1833
        %v1877 = vpack.c.b16 %v1836, %v1835
        %v1878 = vpack.c.b16 %v1838, %v1837
        %1919 = vmatpush.bf16.msra.mxu0 %v1846
        %1920 = vmatpush.bf16.msra.mxu0 %v1845
        %1921 = vmatpush.bf16.msra.mxu0 %v1844
        %1922 = vmatpush.bf16.msra.mxu0 %v1843
        %1923 = vmatpush.bf16.msra.mxu0 %v1842
        %1924 = vmatpush.bf16.msra.mxu0 %v1841
        %1925 = vmatpush.bf16.msra.mxu0 %v1840
        %1926 = vmatpush.bf16.msra.mxu0 %v1839
        %1927 = vmatmul.bf16.gmra.mxu0 %v1639
        %v1928 = vpop.f32.mrf.mxu0
        %v1929 = vadd.f32 0.0, %v1928
        %v1930 = vpop.f32.mrf.mxu0
        %v1931 = vadd.f32 0.0, %v1930
        %1932 = vmatmul.bf16.gmra.mxu0 %v1640
        %v1933 = vpop.f32.mrf.mxu0
        %v1934 = vadd.f32 0.0, %v1933
        %v1935 = vpop.f32.mrf.mxu0
        %v1936 = vadd.f32 0.0, %v1935
        %1937 = vdwg.mxu0
        %1938 = vmatpush.bf16.msra.mxu0 %v1854
        %1939 = vmatpush.bf16.msra.mxu0 %v1853
        %1940 = vmatpush.bf16.msra.mxu0 %v1852
        %1941 = vmatpush.bf16.msra.mxu0 %v1851
        %1942 = vmatpush.bf16.msra.mxu0 %v1850
        %1943 = vmatpush.bf16.msra.mxu0 %v1849
        %1944 = vmatpush.bf16.msra.mxu0 %v1848
        %1945 = vmatpush.bf16.msra.mxu0 %v1847
        %1946 = vmatmul.bf16.gmra.mxu0 %v1654
        %v1947 = vpop.f32.mrf.mxu0
        %v1948 = vadd.f32 %v1929, %v1947
        %v1949 = vpop.f32.mrf.mxu0
        %v1950 = vadd.f32 %v1931, %v1949
        %1951 = vmatmul.bf16.gmra.mxu0 %v1657
        %v1952 = vpop.f32.mrf.mxu0
        %v1953 = vadd.f32 %v1934, %v1952
        %v1954 = vpop.f32.mrf.mxu0
        %v1955 = vadd.f32 %v1936, %v1954
        %1956 = vdwg.mxu0
        %1957 = vmatpush.bf16.msra.mxu0 %v1862
        %1958 = vmatpush.bf16.msra.mxu0 %v1861
        %1959 = vmatpush.bf16.msra.mxu0 %v1860
        %1960 = vmatpush.bf16.msra.mxu0 %v1859
        %1961 = vmatpush.bf16.msra.mxu0 %v1858
        %1962 = vmatpush.bf16.msra.mxu0 %v1857
        %1963 = vmatpush.bf16.msra.mxu0 %v1856
        %1964 = vmatpush.bf16.msra.mxu0 %v1855
        %1965 = vmatmul.bf16.gmra.mxu0 %v1662
        %v1966 = vpop.f32.mrf.mxu0
        %v1967 = vadd.f32 %v1948, %v1966
        %v1968 = vpop.f32.mrf.mxu0
        %v1969 = vadd.f32 %v1950, %v1968
        %1970 = vmatmul.bf16.gmra.mxu0 %v1661
        %v1971 = vpop.f32.mrf.mxu0
        %v1972 = vadd.f32 %v1953, %v1971
        %v1973 = vpop.f32.mrf.mxu0
        %v1974 = vadd.f32 %v1955, %v1973
        %1975 = vdwg.mxu0
        %1976 = vmatpush.bf16.msra.mxu0 %v1870
        %1977 = vmatpush.bf16.msra.mxu0 %v1869
        %1978 = vmatpush.bf16.msra.mxu0 %v1868
        %1979 = vmatpush.bf16.msra.mxu0 %v1867
        %1980 = vmatpush.bf16.msra.mxu0 %v1866
        %1981 = vmatpush.bf16.msra.mxu0 %v1865
        %1982 = vmatpush.bf16.msra.mxu0 %v1864
        %1983 = vmatpush.bf16.msra.mxu0 %v1863
        %1984 = vmatmul.bf16.gmra.mxu0 %v1671
        %v1985 = vpop.f32.mrf.mxu0
        %v1986 = vadd.f32 %v1967, %v1985
        %v1987 = vpop.f32.mrf.mxu0
        %v1988 = vadd.f32 %v1969, %v1987
        %1989 = vmatmul.bf16.gmra.mxu0 %v1670
        %v1990 = vpop.f32.mrf.mxu0
        %v1991 = vadd.f32 %v1972, %v1990
        %v1992 = vpop.f32.mrf.mxu0
        %v1993 = vadd.f32 %v1974, %v1992
        %1994 = vdwg.mxu0
        %1995 = vmatpush.bf16.msra.mxu0 %v1878
        %1996 = vmatpush.bf16.msra.mxu0 %v1877
        %1997 = vmatpush.bf16.msra.mxu0 %v1876
        %1998 = vmatpush.bf16.msra.mxu0 %v1875
        %1999 = vmatpush.bf16.msra.mxu0 %v1874
        %2000 = vmatpush.bf16.msra.mxu0 %v1873
        %2001 = vmatpush.bf16.msra.mxu0 %v1872
        %2002 = vmatpush.bf16.msra.mxu0 %v1871
        %2003 = vmatmul.bf16.gmra.mxu0 %v1676
        %v2004 = vpop.f32.mrf.mxu0
        %v2005 = vadd.f32 %v1986, %v2004
        %v2006 = vpop.f32.mrf.mxu0
        %v2007 = vadd.f32 %v1988, %v2006
        %2008 = vmatmul.bf16.gmra.mxu0 %v1675
        %v2009 = vpop.f32.mrf.mxu0
        %v2010 = vadd.f32 %v1991, %v2009
        %v2011 = vpop.f32.mrf.mxu0
        %v2012 = vadd.f32 %v1993, %v2011
        %2013 = vdwg.mxu0
        %v2015 = vperm.slane %v1628, 0
        %v2017 = vmul.f32 %v2005, %v2015
        %v2018 = vmul.f32 %v2007, %v2015
        %v2019 = vmul.f32 %v2010, %v2015
        %v2020 = vmul.f32 %v2012, %v2015
        %v2022 = vperm.slane %v1630, 0
        %v2024 = vadd.f32 %v2017, %v2022
        %v2025 = vadd.f32 %v2018, %v2022
        %v2026 = vadd.f32 %v2019, %v2022
        %v2027 = vadd.f32 %v2020, %v2022
        %v2028 = vtanh.pop %v2024
        %v2029 = vtanh.pop %v2025
        %v2030 = vtanh.pop %v2026
        %v2031 = vtanh.pop %v2027
        %s2032 = sadd.s32 %s380, 4294967290
        %v2033 = vstv %s2032
        %v2034 = vadd.s32 %v963, %v2033
        %v2035 = vadd.s32 %v964, %v2033
        %v2036 = vadd.s32 %v965, %v2033
        %v2037 = vadd.s32 %v966, %v2033
        %vm2038 = vcmp.ge.s32.totalorder %v2034, 0
        %vm2039 = vcmp.ge.s32.totalorder %v2035, 0
        %vm2040 = vcmp.ge.s32.totalorder %v2036, 0
        %vm2041 = vcmp.ge.s32.totalorder %v2037, 0
        %vm2042 = vcmp.lt.s32.totalorder %v2034, 40
        %vm2043 = vcmp.lt.s32.totalorder %v2035, 40
        %vm2044 = vcmp.lt.s32.totalorder %v2036, 40
        %vm2045 = vcmp.lt.s32.totalorder %v2037, 40
        %vm2046 = vmand %vm2038, %vm2042
        %vm2047 = vmand %vm2039, %vm2043
        %vm2048 = vmand %vm2040, %vm2044
        %vm2049 = vmand %vm2041, %vm2045
        %v2050 = vsel %vm2046, 1, 0
        %v2051 = vsel %vm2047, 1, 0
        %v2052 = vsel %vm2048, 1, 0
        %v2053 = vsel %vm2049, 1, 0
        %vm2054 = vcmp.eq.s32.totalorder %v2050, 1
        %vm2055 = vcmp.eq.s32.totalorder %v2051, 1
        %vm2056 = vcmp.eq.s32.totalorder %v2052, 1
        %vm2057 = vcmp.eq.s32.totalorder %v2053, 1
        %v2058 = vsel %vm2054, %v2028, 0.0
        %v2059 = vsel %vm2055, %v2029, 0.0
        %v2060 = vsel %vm2056, %v2030, 0.0
        %v2061 = vsel %vm2057, %v2031, 0.0
        %v2062 = vpack.c.bf16 %v2058, %v2058
        %v2063 = vpack.c.bf16 %v2059, %v2059
        %v2064 = vpack.c.bf16 %v2060, %v2060
        %v2065 = vpack.c.bf16 %v2061, %v2061
        %s2066 = scalar_lea.vmem [#allocation7], 640
        %v2067 = vld [vmem:[%s2066] sm:$0xf]
        %v2068 = vld [vmem:[%s2066 + $0x4] sm:$0xf]
        %v2069 = vld [vmem:[%s2066 + $0x8] sm:$0xf]
        %v2070 = vld [vmem:[%s2066 + $0xc] sm:$0xf]
        %v2071 = vld [vmem:[%s2066 + $0x10] sm:$0xf]
        %v2072 = vld [vmem:[%s2066 + $0x14] sm:$0xf]
        %v2073 = vld [vmem:[%s2066 + $0x18] sm:$0xf]
        %v2074 = vld [vmem:[%s2066 + $0x1c] sm:$0xf]
        %v2075 = vld [vmem:[%s2066 + $0x20] sm:$0xf]
        %v2076 = vld [vmem:[%s2066 + $0x24] sm:$0xf]
        %v2077 = vld [vmem:[%s2066 + $0x28] sm:$0xf]
        %v2078 = vld [vmem:[%s2066 + $0x2c] sm:$0xf]
        %v2079 = vld [vmem:[%s2066 + $0x30] sm:$0xf]
        %v2080 = vld [vmem:[%s2066 + $0x34] sm:$0xf]
        %v2081 = vld [vmem:[%s2066 + $0x38] sm:$0xf]
        %v2082 = vld [vmem:[%s2066 + $0x3c] sm:$0xf]
        %v2083 = vld [vmem:[%s2066 + $0x40] sm:$0xf]
        %v2084 = vld [vmem:[%s2066 + $0x44] sm:$0xf]
        %v2085 = vld [vmem:[%s2066 + $0x48] sm:$0xf]
        %v2086 = vld [vmem:[%s2066 + $0x4c] sm:$0xf]
        %v2087 = vld [vmem:[%s2066 + $0x50] sm:$0xf]
        %v2088 = vld [vmem:[%s2066 + $0x54] sm:$0xf]
        %v2089 = vld [vmem:[%s2066 + $0x58] sm:$0xf]
        %v2090 = vld [vmem:[%s2066 + $0x5c] sm:$0xf]
        %v2091 = vld [vmem:[%s2066 + $0x60] sm:$0xf]
        %v2092 = vld [vmem:[%s2066 + $0x64] sm:$0xf]
        %v2093 = vld [vmem:[%s2066 + $0x68] sm:$0xf]
        %v2094 = vld [vmem:[%s2066 + $0x6c] sm:$0xf]
        %v2095 = vld [vmem:[%s2066 + $0x70] sm:$0xf]
        %v2096 = vld [vmem:[%s2066 + $0x74] sm:$0xf]
        %v2097 = vld [vmem:[%s2066 + $0x78] sm:$0xf]
        %v2098 = vld [vmem:[%s2066 + $0x7c] sm:$0xf]
        %v2099 = vld [vmem:[%s2066 + $0x80] sm:$0xf]
        %v2100 = vld [vmem:[%s2066 + $0x84] sm:$0xf]
        %v2101 = vld [vmem:[%s2066 + $0x88] sm:$0xf]
        %v2102 = vld [vmem:[%s2066 + $0x8c] sm:$0xf]
        %v2103 = vld [vmem:[%s2066 + $0x90] sm:$0xf]
        %v2104 = vld [vmem:[%s2066 + $0x94] sm:$0xf]
        %v2105 = vld [vmem:[%s2066 + $0x98] sm:$0xf]
        %v2106 = vld [vmem:[%s2066 + $0x9c] sm:$0xf]
        %v2107 = vld [vmem:[%s2066 + $0xa0] sm:$0xf]
        %v2108 = vld [vmem:[%s2066 + $0xa4] sm:$0xf]
        %v2109 = vld [vmem:[%s2066 + $0xa8] sm:$0xf]
        %v2110 = vld [vmem:[%s2066 + $0xac] sm:$0xf]
        %v2111 = vld [vmem:[%s2066 + $0xb0] sm:$0xf]
        %v2112 = vld [vmem:[%s2066 + $0xb4] sm:$0xf]
        %v2113 = vld [vmem:[%s2066 + $0xb8] sm:$0xf]
        %v2114 = vld [vmem:[%s2066 + $0xbc] sm:$0xf]
        %v2115 = vld [vmem:[%s2066 + $0xc0] sm:$0xf]
        %v2116 = vld [vmem:[%s2066 + $0xc4] sm:$0xf]
        %v2117 = vld [vmem:[%s2066 + $0xc8] sm:$0xf]
        %v2118 = vld [vmem:[%s2066 + $0xcc] sm:$0xf]
        %v2119 = vld [vmem:[%s2066 + $0xd0] sm:$0xf]
        %v2120 = vld [vmem:[%s2066 + $0xd4] sm:$0xf]
        %v2121 = vld [vmem:[%s2066 + $0xd8] sm:$0xf]
        %v2122 = vld [vmem:[%s2066 + $0xdc] sm:$0xf]
        %v2123 = vld [vmem:[%s2066 + $0xe0] sm:$0xf]
        %v2124 = vld [vmem:[%s2066 + $0xe4] sm:$0xf]
        %v2125 = vld [vmem:[%s2066 + $0xe8] sm:$0xf]
        %v2126 = vld [vmem:[%s2066 + $0xec] sm:$0xf]
        %v2127 = vld [vmem:[%s2066 + $0xf0] sm:$0xf]
        %v2128 = vld [vmem:[%s2066 + $0xf4] sm:$0xf]
        %v2129 = vld [vmem:[%s2066 + $0xf8] sm:$0xf]
        %v2130 = vld [vmem:[%s2066 + $0xfc] sm:$0xf]
        %v2131 = vld [vmem:[%s2066 + $0x100] sm:$0xf]
        %v2132 = vld [vmem:[%s2066 + $0x104] sm:$0xf]
        %v2133 = vld [vmem:[%s2066 + $0x108] sm:$0xf]
        %v2134 = vld [vmem:[%s2066 + $0x10c] sm:$0xf]
        %v2135 = vld [vmem:[%s2066 + $0x110] sm:$0xf]
        %v2136 = vld [vmem:[%s2066 + $0x114] sm:$0xf]
        %v2137 = vld [vmem:[%s2066 + $0x118] sm:$0xf]
        %v2138 = vld [vmem:[%s2066 + $0x11c] sm:$0xf]
        %v2139 = vld [vmem:[%s2066 + $0x120] sm:$0xf]
        %v2140 = vld [vmem:[%s2066 + $0x124] sm:$0xf]
        %v2141 = vld [vmem:[%s2066 + $0x128] sm:$0xf]
        %v2142 = vld [vmem:[%s2066 + $0x12c] sm:$0xf]
        %v2143 = vld [vmem:[%s2066 + $0x130] sm:$0xf]
        %v2144 = vld [vmem:[%s2066 + $0x134] sm:$0xf]
        %v2145 = vld [vmem:[%s2066 + $0x138] sm:$0xf]
        %v2146 = vld [vmem:[%s2066 + $0x13c] sm:$0xf]
        %s2147 = scalar_lea.vmem [#allocation10], 3
        %v2148 = vld [vmem:[%s2147] sm:$0x1]
        %s2149 = scalar_lea.vmem %s5, 3
        %v2150 = vld [vmem:[%s2149] sm:$0x1]
        %v2154 = vunpack.c.l.b16 %v2062
        %v2155 = vunpack.c.l.b16 %v2063
        %v2156 = vunpack.c.l.b16 %v2064
        %v2157 = vpack.c.b16 %v2155, %v2154
        %v2158 = vpack.c.b16 %v2156, %v2156
        %v2162 = vunpack.c.l.b16 %v2065
        %v2163 = vpack.c.b16 %v2162, %v2156
        %v2165 = vshrl.u32 %v2157, 16
        %v2167 = vshll.u32 %v2157, 16
        %v2169 = vrot.slane %v2167, 1
        %v2170 = vor.u32 %v2165, %v2169
        %v2172 = vshll.u32 %v2163, 16
        %v2174 = vrot.slane %v2172, 1
        %v2175 = vsel %vm525, %v2170, %v2174
        %v2176 = vshrl.u32 %v2163, 16
        %v2178 = vor.u32 %v2176, %v2174
        %v2181 = vrot.slane %v2157, 1
        %v2182 = vrot.slane %v2163, 1
        %v2183 = vsel %vm552, %v2181, %v2182
        %v2186 = vrot.slane %v2165, 1
        %v2187 = vrot.slane %v2167, 2
        %v2188 = vor.u32 %v2186, %v2187
        %v2189 = vrot.slane %v2176, 1
        %v2190 = vrot.slane %v2172, 2
        %v2191 = vor.u32 %v2189, %v2190
        %v2192 = vsel %vm561, %v2188, %v2191
        %v2195 = vrot.slane %v2157, 2
        %v2196 = vrot.slane %v2163, 2
        %v2197 = vsel %vm576, %v2195, %v2196
        %v2280 = vunpack.c.l.b16 %v2067
        %v2281 = vunpack.c.l.b16 %v2068
        %v2282 = vunpack.c.l.b16 %v2069
        %v2283 = vunpack.c.l.b16 %v2070
        %v2284 = vunpack.c.l.b16 %v2071
        %v2285 = vunpack.c.l.b16 %v2072
        %v2286 = vunpack.c.l.b16 %v2073
        %v2287 = vunpack.c.l.b16 %v2074
        %v2288 = vunpack.c.l.b16 %v2075
        %v2289 = vunpack.c.l.b16 %v2076
        %v2290 = vunpack.c.l.b16 %v2077
        %v2291 = vunpack.c.l.b16 %v2078
        %v2292 = vunpack.c.l.b16 %v2079
        %v2293 = vunpack.c.l.b16 %v2080
        %v2294 = vunpack.c.l.b16 %v2081
        %v2295 = vunpack.c.l.b16 %v2082
        %v2296 = vunpack.c.l.b16 %v2083
        %v2297 = vunpack.c.l.b16 %v2084
        %v2298 = vunpack.c.l.b16 %v2085
        %v2299 = vunpack.c.l.b16 %v2086
        %v2300 = vunpack.c.l.b16 %v2087
        %v2301 = vunpack.c.l.b16 %v2088
        %v2302 = vunpack.c.l.b16 %v2089
        %v2303 = vunpack.c.l.b16 %v2090
        %v2304 = vunpack.c.l.b16 %v2091
        %v2305 = vunpack.c.l.b16 %v2092
        %v2306 = vunpack.c.l.b16 %v2093
        %v2307 = vunpack.c.l.b16 %v2094
        %v2308 = vunpack.c.l.b16 %v2095
        %v2309 = vunpack.c.l.b16 %v2096
        %v2310 = vunpack.c.l.b16 %v2097
        %v2311 = vunpack.c.l.b16 %v2098
        %v2312 = vunpack.c.l.b16 %v2099
        %v2313 = vunpack.c.l.b16 %v2100
        %v2314 = vunpack.c.l.b16 %v2101
        %v2315 = vunpack.c.l.b16 %v2102
        %v2316 = vunpack.c.l.b16 %v2103
        %v2317 = vunpack.c.l.b16 %v2104
        %v2318 = vunpack.c.l.b16 %v2105
        %v2319 = vunpack.c.l.b16 %v2106
        %v2320 = vunpack.c.l.b16 %v2107
        %v2321 = vunpack.c.l.b16 %v2108
        %v2322 = vunpack.c.l.b16 %v2109
        %v2323 = vunpack.c.l.b16 %v2110
        %v2324 = vunpack.c.l.b16 %v2111
        %v2325 = vunpack.c.l.b16 %v2112
        %v2326 = vunpack.c.l.b16 %v2113
        %v2327 = vunpack.c.l.b16 %v2114
        %v2328 = vunpack.c.l.b16 %v2115
        %v2329 = vunpack.c.l.b16 %v2116
        %v2330 = vunpack.c.l.b16 %v2117
        %v2331 = vunpack.c.l.b16 %v2118
        %v2332 = vunpack.c.l.b16 %v2119
        %v2333 = vunpack.c.l.b16 %v2120
        %v2334 = vunpack.c.l.b16 %v2121
        %v2335 = vunpack.c.l.b16 %v2122
        %v2336 = vunpack.c.l.b16 %v2123
        %v2337 = vunpack.c.l.b16 %v2124
        %v2338 = vunpack.c.l.b16 %v2125
        %v2339 = vunpack.c.l.b16 %v2126
        %v2340 = vunpack.c.l.b16 %v2127
        %v2341 = vunpack.c.l.b16 %v2128
        %v2342 = vunpack.c.l.b16 %v2129
        %v2343 = vunpack.c.l.b16 %v2130
        %v2344 = vunpack.c.l.b16 %v2131
        %v2345 = vunpack.c.l.b16 %v2132
        %v2346 = vunpack.c.l.b16 %v2133
        %v2347 = vunpack.c.l.b16 %v2134
        %v2348 = vunpack.c.l.b16 %v2135
        %v2349 = vunpack.c.l.b16 %v2136
        %v2350 = vunpack.c.l.b16 %v2137
        %v2351 = vunpack.c.l.b16 %v2138
        %v2352 = vunpack.c.l.b16 %v2139
        %v2353 = vunpack.c.l.b16 %v2140
        %v2354 = vunpack.c.l.b16 %v2141
        %v2355 = vunpack.c.l.b16 %v2142
        %v2356 = vunpack.c.l.b16 %v2143
        %v2357 = vunpack.c.l.b16 %v2144
        %v2358 = vunpack.c.l.b16 %v2145
        %v2359 = vunpack.c.l.b16 %v2146
        %v2360 = vpack.c.b16 %v2281, %v2280
        %v2361 = vpack.c.b16 %v2283, %v2282
        %v2362 = vpack.c.b16 %v2285, %v2284
        %v2363 = vpack.c.b16 %v2287, %v2286
        %v2364 = vpack.c.b16 %v2289, %v2288
        %v2365 = vpack.c.b16 %v2291, %v2290
        %v2366 = vpack.c.b16 %v2293, %v2292
        %v2367 = vpack.c.b16 %v2295, %v2294
        %v2368 = vpack.c.b16 %v2297, %v2296
        %v2369 = vpack.c.b16 %v2299, %v2298
        %v2370 = vpack.c.b16 %v2301, %v2300
        %v2371 = vpack.c.b16 %v2303, %v2302
        %v2372 = vpack.c.b16 %v2305, %v2304
        %v2373 = vpack.c.b16 %v2307, %v2306
        %v2374 = vpack.c.b16 %v2309, %v2308
        %v2375 = vpack.c.b16 %v2311, %v2310
        %v2376 = vpack.c.b16 %v2313, %v2312
        %v2377 = vpack.c.b16 %v2315, %v2314
        %v2378 = vpack.c.b16 %v2317, %v2316
        %v2379 = vpack.c.b16 %v2319, %v2318
        %v2380 = vpack.c.b16 %v2321, %v2320
        %v2381 = vpack.c.b16 %v2323, %v2322
        %v2382 = vpack.c.b16 %v2325, %v2324
        %v2383 = vpack.c.b16 %v2327, %v2326
        %v2384 = vpack.c.b16 %v2329, %v2328
        %v2385 = vpack.c.b16 %v2331, %v2330
        %v2386 = vpack.c.b16 %v2333, %v2332
        %v2387 = vpack.c.b16 %v2335, %v2334
        %v2388 = vpack.c.b16 %v2337, %v2336
        %v2389 = vpack.c.b16 %v2339, %v2338
        %v2390 = vpack.c.b16 %v2341, %v2340
        %v2391 = vpack.c.b16 %v2343, %v2342
        %v2392 = vpack.c.b16 %v2345, %v2344
        %v2393 = vpack.c.b16 %v2347, %v2346
        %v2394 = vpack.c.b16 %v2349, %v2348
        %v2395 = vpack.c.b16 %v2351, %v2350
        %v2396 = vpack.c.b16 %v2353, %v2352
        %v2397 = vpack.c.b16 %v2355, %v2354
        %v2398 = vpack.c.b16 %v2357, %v2356
        %v2399 = vpack.c.b16 %v2359, %v2358
        %2440 = vmatpush.bf16.msra.mxu0 %v2367
        %2441 = vmatpush.bf16.msra.mxu0 %v2366
        %2442 = vmatpush.bf16.msra.mxu0 %v2365
        %2443 = vmatpush.bf16.msra.mxu0 %v2364
        %2444 = vmatpush.bf16.msra.mxu0 %v2363
        %2445 = vmatpush.bf16.msra.mxu0 %v2362
        %2446 = vmatpush.bf16.msra.mxu0 %v2361
        %2447 = vmatpush.bf16.msra.mxu0 %v2360
        %2448 = vmatmul.bf16.gmra.mxu0 %v2157
        %v2449 = vpop.f32.mrf.mxu0
        %v2450 = vadd.f32 0.0, %v2449
        %v2451 = vpop.f32.mrf.mxu0
        %v2452 = vadd.f32 0.0, %v2451
        %2453 = vmatmul.bf16.gmra.mxu0 %v2158
        %v2454 = vpop.f32.mrf.mxu0
        %v2455 = vadd.f32 0.0, %v2454
        %v2456 = vpop.f32.mrf.mxu0
        %2457 = vdwg.mxu0
        %2458 = vmatpush.bf16.msra.mxu0 %v2375
        %2459 = vmatpush.bf16.msra.mxu0 %v2374
        %2460 = vmatpush.bf16.msra.mxu0 %v2373
        %2461 = vmatpush.bf16.msra.mxu0 %v2372
        %2462 = vmatpush.bf16.msra.mxu0 %v2371
        %2463 = vmatpush.bf16.msra.mxu0 %v2370
        %2464 = vmatpush.bf16.msra.mxu0 %v2369
        %2465 = vmatpush.bf16.msra.mxu0 %v2368
        %2466 = vmatmul.bf16.gmra.mxu0 %v2175
        %v2467 = vpop.f32.mrf.mxu0
        %v2468 = vadd.f32 %v2450, %v2467
        %v2469 = vpop.f32.mrf.mxu0
        %v2470 = vadd.f32 %v2452, %v2469
        %2471 = vmatmul.bf16.gmra.mxu0 %v2178
        %v2472 = vpop.f32.mrf.mxu0
        %v2473 = vadd.f32 %v2455, %v2472
        %v2474 = vpop.f32.mrf.mxu0
        %2475 = vdwg.mxu0
        %2476 = vmatpush.bf16.msra.mxu0 %v2383
        %2477 = vmatpush.bf16.msra.mxu0 %v2382
        %2478 = vmatpush.bf16.msra.mxu0 %v2381
        %2479 = vmatpush.bf16.msra.mxu0 %v2380
        %2480 = vmatpush.bf16.msra.mxu0 %v2379
        %2481 = vmatpush.bf16.msra.mxu0 %v2378
        %2482 = vmatpush.bf16.msra.mxu0 %v2377
        %2483 = vmatpush.bf16.msra.mxu0 %v2376
        %2484 = vmatmul.bf16.gmra.mxu0 %v2183
        %v2485 = vpop.f32.mrf.mxu0
        %v2486 = vadd.f32 %v2468, %v2485
        %v2487 = vpop.f32.mrf.mxu0
        %v2488 = vadd.f32 %v2470, %v2487
        %2489 = vmatmul.bf16.gmra.mxu0 %v2182
        %v2490 = vpop.f32.mrf.mxu0
        %v2491 = vadd.f32 %v2473, %v2490
        %v2492 = vpop.f32.mrf.mxu0
        %2493 = vdwg.mxu0
        %2494 = vmatpush.bf16.msra.mxu0 %v2391
        %2495 = vmatpush.bf16.msra.mxu0 %v2390
        %2496 = vmatpush.bf16.msra.mxu0 %v2389
        %2497 = vmatpush.bf16.msra.mxu0 %v2388
        %2498 = vmatpush.bf16.msra.mxu0 %v2387
        %2499 = vmatpush.bf16.msra.mxu0 %v2386
        %2500 = vmatpush.bf16.msra.mxu0 %v2385
        %2501 = vmatpush.bf16.msra.mxu0 %v2384
        %2502 = vmatmul.bf16.gmra.mxu0 %v2192
        %v2503 = vpop.f32.mrf.mxu0
        %v2504 = vadd.f32 %v2486, %v2503
        %v2505 = vpop.f32.mrf.mxu0
        %v2506 = vadd.f32 %v2488, %v2505
        %2507 = vmatmul.bf16.gmra.mxu0 %v2191
        %v2508 = vpop.f32.mrf.mxu0
        %v2509 = vadd.f32 %v2491, %v2508
        %v2510 = vpop.f32.mrf.mxu0
        %2511 = vdwg.mxu0
        %2512 = vmatpush.bf16.msra.mxu0 %v2399
        %2513 = vmatpush.bf16.msra.mxu0 %v2398
        %2514 = vmatpush.bf16.msra.mxu0 %v2397
        %2515 = vmatpush.bf16.msra.mxu0 %v2396
        %2516 = vmatpush.bf16.msra.mxu0 %v2395
        %2517 = vmatpush.bf16.msra.mxu0 %v2394
        %2518 = vmatpush.bf16.msra.mxu0 %v2393
        %2519 = vmatpush.bf16.msra.mxu0 %v2392
        %2520 = vmatmul.bf16.gmra.mxu0 %v2197
        %v2521 = vpop.f32.mrf.mxu0
        %v2522 = vadd.f32 %v2504, %v2521
        %v2523 = vpop.f32.mrf.mxu0
        %v2524 = vadd.f32 %v2506, %v2523
        %2525 = vmatmul.bf16.gmra.mxu0 %v2196
        %v2526 = vpop.f32.mrf.mxu0
        %v2527 = vadd.f32 %v2509, %v2526
        %v2528 = vpop.f32.mrf.mxu0
        %2529 = vdwg.mxu0
        %v2531 = vperm.slane %v2148, 0
        %v2533 = vmul.f32 %v2522, %v2531
        %v2534 = vmul.f32 %v2524, %v2531
        %v2535 = vmul.f32 %v2527, %v2531
        %v2537 = vperm.slane %v2150, 0
        %v2539 = vadd.f32 %v2533, %v2537
        %v2540 = vadd.f32 %v2534, %v2537
        %v2541 = vadd.f32 %v2535, %v2537
        %v2542 = vtanh.pop %v2539
        %v2543 = vtanh.pop %v2540
        %v2544 = vtanh.pop %v2541
        %s2545 = sadd.s32 %s380, 4294967292
        %v2546 = vstv %s2545
        %v2547 = vadd.s32 %v963, %v2546
        %v2548 = vadd.s32 %v964, %v2546
        %v2549 = vadd.s32 %v965, %v2546
        %vm2550 = vcmp.ge.s32.totalorder %v2547, 0
        %vm2551 = vcmp.ge.s32.totalorder %v2548, 0
        %vm2552 = vcmp.ge.s32.totalorder %v2549, 0
        %vm2553 = vcmp.lt.s32.totalorder %v2547, 40
        %vm2554 = vcmp.lt.s32.totalorder %v2548, 40
        %vm2555 = vcmp.lt.s32.totalorder %v2549, 40
        %vm2556 = vmand %vm2550, %vm2553
        %vm2557 = vmand %vm2551, %vm2554
        %vm2558 = vmand %vm2552, %vm2555
        %v2559 = vsel %vm2556, 1, 0
        %v2560 = vsel %vm2557, 1, 0
        %v2561 = vsel %vm2558, 1, 0
        %vm2562 = vcmp.eq.s32.totalorder %v2559, 1
        %vm2563 = vcmp.eq.s32.totalorder %v2560, 1
        %vm2564 = vcmp.eq.s32.totalorder %v2561, 1
        %v2565 = vsel %vm2562, %v2542, 0.0
        %v2566 = vsel %vm2563, %v2543, 0.0
        %v2567 = vsel %vm2564, %v2544, 0.0
        %v2568 = vpack.c.bf16 %v2565, %v2565
        %v2569 = vpack.c.bf16 %v2566, %v2566
        %v2570 = vpack.c.bf16 %v2567, %v2567
        %v2571 = vld [vmem:[#allocation9] sm:$0xf]
        %v2572 = vld [vmem:[#allocation9 + $0x4] sm:$0xf]
        %v2573 = vld [vmem:[#allocation9 + $0x8] sm:$0xf]
        %v2574 = vld [vmem:[#allocation9 + $0xc] sm:$0xf]
        %v2575 = vld [vmem:[#allocation9 + $0x10] sm:$0xf]
        %v2576 = vld [vmem:[#allocation9 + $0x14] sm:$0xf]
        %v2577 = vld [vmem:[#allocation9 + $0x18] sm:$0xf]
        %v2578 = vld [vmem:[#allocation9 + $0x1c] sm:$0xf]
        %v2579 = vld [vmem:[#allocation9 + $0x20] sm:$0xf]
        %v2580 = vld [vmem:[#allocation9 + $0x24] sm:$0xf]
        %v2581 = vld [vmem:[#allocation9 + $0x28] sm:$0xf]
        %v2582 = vld [vmem:[#allocation9 + $0x2c] sm:$0xf]
        %v2583 = vld [vmem:[#allocation9 + $0x30] sm:$0xf]
        %v2584 = vld [vmem:[#allocation9 + $0x34] sm:$0xf]
        %v2585 = vld [vmem:[#allocation9 + $0x38] sm:$0xf]
        %v2586 = vld [vmem:[#allocation9 + $0x3c] sm:$0xf]
        %v2587 = vld [vmem:[#allocation9 + $0x40] sm:$0xf]
        %v2588 = vld [vmem:[#allocation9 + $0x44] sm:$0xf]
        %v2589 = vld [vmem:[#allocation9 + $0x48] sm:$0xf]
        %v2590 = vld [vmem:[#allocation9 + $0x4c] sm:$0xf]
        %v2591 = vld [vmem:[#allocation9 + $0x50] sm:$0xf]
        %v2592 = vld [vmem:[#allocation9 + $0x54] sm:$0xf]
        %v2593 = vld [vmem:[#allocation9 + $0x58] sm:$0xf]
        %v2594 = vld [vmem:[#allocation9 + $0x5c] sm:$0xf]
        %v2595 = vld [vmem:[#allocation9 + $0x60] sm:$0xf]
        %v2596 = vld [vmem:[#allocation9 + $0x64] sm:$0xf]
        %v2597 = vld [vmem:[#allocation9 + $0x68] sm:$0xf]
        %v2598 = vld [vmem:[#allocation9 + $0x6c] sm:$0xf]
        %v2599 = vld [vmem:[#allocation9 + $0x70] sm:$0xf]
        %v2600 = vld [vmem:[#allocation9 + $0x74] sm:$0xf]
        %v2601 = vld [vmem:[#allocation9 + $0x78] sm:$0xf]
        %v2602 = vld [vmem:[#allocation9 + $0x7c] sm:$0xf]
        %v2603 = vld [vmem:[#allocation9 + $0x80] sm:$0xf]
        %v2604 = vld [vmem:[#allocation9 + $0x84] sm:$0xf]
        %v2605 = vld [vmem:[#allocation9 + $0x88] sm:$0xf]
        %v2606 = vld [vmem:[#allocation9 + $0x8c] sm:$0xf]
        %v2607 = vld [vmem:[#allocation9 + $0x90] sm:$0xf]
        %v2608 = vld [vmem:[#allocation9 + $0x94] sm:$0xf]
        %v2609 = vld [vmem:[#allocation9 + $0x98] sm:$0xf]
        %v2610 = vld [vmem:[#allocation9 + $0x9c] sm:$0xf]
        %v2611 = vld [vmem:[#allocation9 + $0xa0] sm:$0xf]
        %v2612 = vld [vmem:[#allocation9 + $0xa4] sm:$0xf]
        %v2613 = vld [vmem:[#allocation9 + $0xa8] sm:$0xf]
        %v2614 = vld [vmem:[#allocation9 + $0xac] sm:$0xf]
        %v2615 = vld [vmem:[#allocation9 + $0xb0] sm:$0xf]
        %v2616 = vld [vmem:[#allocation9 + $0xb4] sm:$0xf]
        %v2617 = vld [vmem:[#allocation9 + $0xb8] sm:$0xf]
        %v2618 = vld [vmem:[#allocation9 + $0xbc] sm:$0xf]
        %v2619 = vld [vmem:[#allocation9 + $0xc0] sm:$0xf]
        %v2620 = vld [vmem:[#allocation9 + $0xc4] sm:$0xf]
        %v2621 = vld [vmem:[#allocation9 + $0xc8] sm:$0xf]
        %v2622 = vld [vmem:[#allocation9 + $0xcc] sm:$0xf]
        %v2623 = vld [vmem:[#allocation9 + $0xd0] sm:$0xf]
        %v2624 = vld [vmem:[#allocation9 + $0xd4] sm:$0xf]
        %v2625 = vld [vmem:[#allocation9 + $0xd8] sm:$0xf]
        %v2626 = vld [vmem:[#allocation9 + $0xdc] sm:$0xf]
        %v2627 = vld [vmem:[#allocation9 + $0xe0] sm:$0xf]
        %v2628 = vld [vmem:[#allocation9 + $0xe4] sm:$0xf]
        %v2629 = vld [vmem:[#allocation9 + $0xe8] sm:$0xf]
        %v2630 = vld [vmem:[#allocation9 + $0xec] sm:$0xf]
        %v2631 = vld [vmem:[#allocation9 + $0xf0] sm:$0xf]
        %v2632 = vld [vmem:[#allocation9 + $0xf4] sm:$0xf]
        %v2633 = vld [vmem:[#allocation9 + $0xf8] sm:$0xf]
        %v2634 = vld [vmem:[#allocation9 + $0xfc] sm:$0xf]
        %v2635 = vld [vmem:[#allocation9 + $0x100] sm:$0xf]
        %v2636 = vld [vmem:[#allocation9 + $0x104] sm:$0xf]
        %v2637 = vld [vmem:[#allocation9 + $0x108] sm:$0xf]
        %v2638 = vld [vmem:[#allocation9 + $0x10c] sm:$0xf]
        %v2639 = vld [vmem:[#allocation9 + $0x110] sm:$0xf]
        %v2640 = vld [vmem:[#allocation9 + $0x114] sm:$0xf]
        %v2641 = vld [vmem:[#allocation9 + $0x118] sm:$0xf]
        %v2642 = vld [vmem:[#allocation9 + $0x11c] sm:$0xf]
        %v2643 = vld [vmem:[#allocation9 + $0x120] sm:$0xf]
        %v2644 = vld [vmem:[#allocation9 + $0x124] sm:$0xf]
        %v2645 = vld [vmem:[#allocation9 + $0x128] sm:$0xf]
        %v2646 = vld [vmem:[#allocation9 + $0x12c] sm:$0xf]
        %v2647 = vld [vmem:[#allocation9 + $0x130] sm:$0xf]
        %v2648 = vld [vmem:[#allocation9 + $0x134] sm:$0xf]
        %v2649 = vld [vmem:[#allocation9 + $0x138] sm:$0xf]
        %v2650 = vld [vmem:[#allocation9 + $0x13c] sm:$0xf]
        %v2651 = vld [vmem:[%s6] sm:$0x1]
        %v2652 = vld [vmem:[%s7] sm:$0x1]
        %v2656 = vunpack.c.l.b16 %v2568
        %v2657 = vunpack.c.l.b16 %v2569
        %v2658 = vunpack.c.l.b16 %v2570
        %v2659 = vpack.c.b16 %v2657, %v2656
        %v2660 = vpack.c.b16 %v2658, %v2658
        %v2664 = vshrl.u32 %v2659, 16
        %v2666 = vshll.u32 %v2659, 16
        %v2668 = vrot.slane %v2666, 1
        %v2669 = vor.u32 %v2664, %v2668
        %v2671 = vshll.u32 %v2660, 16
        %v2673 = vrot.slane %v2671, 1
        %v2674 = vsel %vm525, %v2669, %v2673
        %v2675 = vshrl.u32 %v2660, 16
        %v2677 = vor.u32 %v2675, %v2673
        %v2680 = vrot.slane %v2659, 1
        %v2681 = vrot.slane %v2660, 1
        %v2682 = vsel %vm552, %v2680, %v2681
        %v2685 = vrot.slane %v2664, 1
        %v2686 = vrot.slane %v2666, 2
        %v2687 = vor.u32 %v2685, %v2686
        %v2688 = vrot.slane %v2675, 1
        %v2689 = vrot.slane %v2671, 2
        %v2690 = vor.u32 %v2688, %v2689
        %v2691 = vsel %vm561, %v2687, %v2690
        %v2694 = vrot.slane %v2659, 2
        %v2695 = vrot.slane %v2660, 2
        %v2696 = vsel %vm576, %v2694, %v2695
        %v2779 = vunpack.c.l.b16 %v2571
        %v2780 = vunpack.c.l.b16 %v2572
        %v2781 = vunpack.c.l.b16 %v2573
        %v2782 = vunpack.c.l.b16 %v2574
        %v2783 = vunpack.c.l.b16 %v2575
        %v2784 = vunpack.c.l.b16 %v2576
        %v2785 = vunpack.c.l.b16 %v2577
        %v2786 = vunpack.c.l.b16 %v2578
        %v2787 = vunpack.c.l.b16 %v2579
        %v2788 = vunpack.c.l.b16 %v2580
        %v2789 = vunpack.c.l.b16 %v2581
        %v2790 = vunpack.c.l.b16 %v2582
        %v2791 = vunpack.c.l.b16 %v2583
        %v2792 = vunpack.c.l.b16 %v2584
        %v2793 = vunpack.c.l.b16 %v2585
        %v2794 = vunpack.c.l.b16 %v2586
        %v2795 = vunpack.c.l.b16 %v2587
        %v2796 = vunpack.c.l.b16 %v2588
        %v2797 = vunpack.c.l.b16 %v2589
        %v2798 = vunpack.c.l.b16 %v2590
        %v2799 = vunpack.c.l.b16 %v2591
        %v2800 = vunpack.c.l.b16 %v2592
        %v2801 = vunpack.c.l.b16 %v2593
        %v2802 = vunpack.c.l.b16 %v2594
        %v2803 = vunpack.c.l.b16 %v2595
        %v2804 = vunpack.c.l.b16 %v2596
        %v2805 = vunpack.c.l.b16 %v2597
        %v2806 = vunpack.c.l.b16 %v2598
        %v2807 = vunpack.c.l.b16 %v2599
        %v2808 = vunpack.c.l.b16 %v2600
        %v2809 = vunpack.c.l.b16 %v2601
        %v2810 = vunpack.c.l.b16 %v2602
        %v2811 = vunpack.c.l.b16 %v2603
        %v2812 = vunpack.c.l.b16 %v2604
        %v2813 = vunpack.c.l.b16 %v2605
        %v2814 = vunpack.c.l.b16 %v2606
        %v2815 = vunpack.c.l.b16 %v2607
        %v2816 = vunpack.c.l.b16 %v2608
        %v2817 = vunpack.c.l.b16 %v2609
        %v2818 = vunpack.c.l.b16 %v2610
        %v2819 = vunpack.c.l.b16 %v2611
        %v2820 = vunpack.c.l.b16 %v2612
        %v2821 = vunpack.c.l.b16 %v2613
        %v2822 = vunpack.c.l.b16 %v2614
        %v2823 = vunpack.c.l.b16 %v2615
        %v2824 = vunpack.c.l.b16 %v2616
        %v2825 = vunpack.c.l.b16 %v2617
        %v2826 = vunpack.c.l.b16 %v2618
        %v2827 = vunpack.c.l.b16 %v2619
        %v2828 = vunpack.c.l.b16 %v2620
        %v2829 = vunpack.c.l.b16 %v2621
        %v2830 = vunpack.c.l.b16 %v2622
        %v2831 = vunpack.c.l.b16 %v2623
        %v2832 = vunpack.c.l.b16 %v2624
        %v2833 = vunpack.c.l.b16 %v2625
        %v2834 = vunpack.c.l.b16 %v2626
        %v2835 = vunpack.c.l.b16 %v2627
        %v2836 = vunpack.c.l.b16 %v2628
        %v2837 = vunpack.c.l.b16 %v2629
        %v2838 = vunpack.c.l.b16 %v2630
        %v2839 = vunpack.c.l.b16 %v2631
        %v2840 = vunpack.c.l.b16 %v2632
        %v2841 = vunpack.c.l.b16 %v2633
        %v2842 = vunpack.c.l.b16 %v2634
        %v2843 = vunpack.c.l.b16 %v2635
        %v2844 = vunpack.c.l.b16 %v2636
        %v2845 = vunpack.c.l.b16 %v2637
        %v2846 = vunpack.c.l.b16 %v2638
        %v2847 = vunpack.c.l.b16 %v2639
        %v2848 = vunpack.c.l.b16 %v2640
        %v2849 = vunpack.c.l.b16 %v2641
        %v2850 = vunpack.c.l.b16 %v2642
        %v2851 = vunpack.c.l.b16 %v2643
        %v2852 = vunpack.c.l.b16 %v2644
        %v2853 = vunpack.c.l.b16 %v2645
        %v2854 = vunpack.c.l.b16 %v2646
        %v2855 = vunpack.c.l.b16 %v2647
        %v2856 = vunpack.c.l.b16 %v2648
        %v2857 = vunpack.c.l.b16 %v2649
        %v2858 = vunpack.c.l.b16 %v2650
        %v2859 = vpack.c.b16 %v2780, %v2779
        %v2860 = vpack.c.b16 %v2782, %v2781
        %v2861 = vpack.c.b16 %v2784, %v2783
        %v2862 = vpack.c.b16 %v2786, %v2785
        %v2863 = vpack.c.b16 %v2788, %v2787
        %v2864 = vpack.c.b16 %v2790, %v2789
        %v2865 = vpack.c.b16 %v2792, %v2791
        %v2866 = vpack.c.b16 %v2794, %v2793
        %v2867 = vpack.c.b16 %v2796, %v2795
        %v2868 = vpack.c.b16 %v2798, %v2797
        %v2869 = vpack.c.b16 %v2800, %v2799
        %v2870 = vpack.c.b16 %v2802, %v2801
        %v2871 = vpack.c.b16 %v2804, %v2803
        %v2872 = vpack.c.b16 %v2806, %v2805
        %v2873 = vpack.c.b16 %v2808, %v2807
        %v2874 = vpack.c.b16 %v2810, %v2809
        %v2875 = vpack.c.b16 %v2812, %v2811
        %v2876 = vpack.c.b16 %v2814, %v2813
        %v2877 = vpack.c.b16 %v2816, %v2815
        %v2878 = vpack.c.b16 %v2818, %v2817
        %v2879 = vpack.c.b16 %v2820, %v2819
        %v2880 = vpack.c.b16 %v2822, %v2821
        %v2881 = vpack.c.b16 %v2824, %v2823
        %v2882 = vpack.c.b16 %v2826, %v2825
        %v2883 = vpack.c.b16 %v2828, %v2827
        %v2884 = vpack.c.b16 %v2830, %v2829
        %v2885 = vpack.c.b16 %v2832, %v2831
        %v2886 = vpack.c.b16 %v2834, %v2833
        %v2887 = vpack.c.b16 %v2836, %v2835
        %v2888 = vpack.c.b16 %v2838, %v2837
        %v2889 = vpack.c.b16 %v2840, %v2839
        %v2890 = vpack.c.b16 %v2842, %v2841
        %v2891 = vpack.c.b16 %v2844, %v2843
        %v2892 = vpack.c.b16 %v2846, %v2845
        %v2893 = vpack.c.b16 %v2848, %v2847
        %v2894 = vpack.c.b16 %v2850, %v2849
        %v2895 = vpack.c.b16 %v2852, %v2851
        %v2896 = vpack.c.b16 %v2854, %v2853
        %v2897 = vpack.c.b16 %v2856, %v2855
        %v2898 = vpack.c.b16 %v2858, %v2857
        %2939 = vmatpush.bf16.msra.mxu0 %v2866
        %2940 = vmatpush.bf16.msra.mxu0 %v2865
        %2941 = vmatpush.bf16.msra.mxu0 %v2864
        %2942 = vmatpush.bf16.msra.mxu0 %v2863
        %2943 = vmatpush.bf16.msra.mxu0 %v2862
        %2944 = vmatpush.bf16.msra.mxu0 %v2861
        %2945 = vmatpush.bf16.msra.mxu0 %v2860
        %2946 = vmatpush.bf16.msra.mxu0 %v2859
        %2947 = vmatmul.bf16.gmra.mxu0 %v2659
        %v2948 = vpop.f32.mrf.mxu0
        %v2949 = vadd.f32 0.0, %v2948
        %v2950 = vpop.f32.mrf.mxu0
        %v2951 = vadd.f32 0.0, %v2950
        %2952 = vmatmul.bf16.gmra.mxu0 %v2660
        %v2953 = vpop.f32.mrf.mxu0
        %v2954 = vadd.f32 0.0, %v2953
        %v2955 = vpop.f32.mrf.mxu0
        %2956 = vdwg.mxu0
        %2957 = vmatpush.bf16.msra.mxu0 %v2874
        %2958 = vmatpush.bf16.msra.mxu0 %v2873
        %2959 = vmatpush.bf16.msra.mxu0 %v2872
        %2960 = vmatpush.bf16.msra.mxu0 %v2871
        %2961 = vmatpush.bf16.msra.mxu0 %v2870
        %2962 = vmatpush.bf16.msra.mxu0 %v2869
        %2963 = vmatpush.bf16.msra.mxu0 %v2868
        %2964 = vmatpush.bf16.msra.mxu0 %v2867
        %2965 = vmatmul.bf16.gmra.mxu0 %v2674
        %v2966 = vpop.f32.mrf.mxu0
        %v2967 = vadd.f32 %v2949, %v2966
        %v2968 = vpop.f32.mrf.mxu0
        %v2969 = vadd.f32 %v2951, %v2968
        %2970 = vmatmul.bf16.gmra.mxu0 %v2677
        %v2971 = vpop.f32.mrf.mxu0
        %v2972 = vadd.f32 %v2954, %v2971
        %v2973 = vpop.f32.mrf.mxu0
        %2974 = vdwg.mxu0
        %2975 = vmatpush.bf16.msra.mxu0 %v2882
        %2976 = vmatpush.bf16.msra.mxu0 %v2881
        %2977 = vmatpush.bf16.msra.mxu0 %v2880
        %2978 = vmatpush.bf16.msra.mxu0 %v2879
        %2979 = vmatpush.bf16.msra.mxu0 %v2878
        %2980 = vmatpush.bf16.msra.mxu0 %v2877
        %2981 = vmatpush.bf16.msra.mxu0 %v2876
        %2982 = vmatpush.bf16.msra.mxu0 %v2875
        %2983 = vmatmul.bf16.gmra.mxu0 %v2682
        %v2984 = vpop.f32.mrf.mxu0
        %v2985 = vadd.f32 %v2967, %v2984
        %v2986 = vpop.f32.mrf.mxu0
        %v2987 = vadd.f32 %v2969, %v2986
        %2988 = vmatmul.bf16.gmra.mxu0 %v2681
        %v2989 = vpop.f32.mrf.mxu0
        %v2990 = vadd.f32 %v2972, %v2989
        %v2991 = vpop.f32.mrf.mxu0
        %2992 = vdwg.mxu0
        %2993 = vmatpush.bf16.msra.mxu0 %v2890
        %2994 = vmatpush.bf16.msra.mxu0 %v2889
        %2995 = vmatpush.bf16.msra.mxu0 %v2888
        %2996 = vmatpush.bf16.msra.mxu0 %v2887
        %2997 = vmatpush.bf16.msra.mxu0 %v2886
        %2998 = vmatpush.bf16.msra.mxu0 %v2885
        %2999 = vmatpush.bf16.msra.mxu0 %v2884
        %3000 = vmatpush.bf16.msra.mxu0 %v2883
        %3001 = vmatmul.bf16.gmra.mxu0 %v2691
        %v3002 = vpop.f32.mrf.mxu0
        %v3003 = vadd.f32 %v2985, %v3002
        %v3004 = vpop.f32.mrf.mxu0
        %v3005 = vadd.f32 %v2987, %v3004
        %3006 = vmatmul.bf16.gmra.mxu0 %v2690
        %v3007 = vpop.f32.mrf.mxu0
        %v3008 = vadd.f32 %v2990, %v3007
        %v3009 = vpop.f32.mrf.mxu0
        %3010 = vdwg.mxu0
        %3011 = vmatpush.bf16.msra.mxu0 %v2898
        %3012 = vmatpush.bf16.msra.mxu0 %v2897
        %3013 = vmatpush.bf16.msra.mxu0 %v2896
        %3014 = vmatpush.bf16.msra.mxu0 %v2895
        %3015 = vmatpush.bf16.msra.mxu0 %v2894
        %3016 = vmatpush.bf16.msra.mxu0 %v2893
        %3017 = vmatpush.bf16.msra.mxu0 %v2892
        %3018 = vmatpush.bf16.msra.mxu0 %v2891
        %3019 = vmatmul.bf16.gmra.mxu0 %v2696
        %v3020 = vpop.f32.mrf.mxu0
        %v3021 = vadd.f32 %v3003, %v3020
        %v3022 = vpop.f32.mrf.mxu0
        %v3023 = vadd.f32 %v3005, %v3022
        %3024 = vmatmul.bf16.gmra.mxu0 %v2695
        %v3025 = vpop.f32.mrf.mxu0
        %v3026 = vadd.f32 %v3008, %v3025
        %v3027 = vpop.f32.mrf.mxu0
        %3028 = vdwg.mxu0
        %v3030 = vperm.slane %v2651, 0
        %v3032 = vmul.f32 %v3021, %v3030
        %v3033 = vmul.f32 %v3023, %v3030
        %v3034 = vmul.f32 %v3026, %v3030
        %v3036 = vperm.slane %v2652, 0
        %v3038 = vadd.f32 %v3032, %v3036
        %v3039 = vadd.f32 %v3033, %v3036
        %v3040 = vadd.f32 %v3034, %v3036
        %s3041 = sadd.s32 %s380, 4294967294
        %v3042 = vstv %s3041
        %v3043 = vadd.s32 %v963, %v3042
        %v3044 = vadd.s32 %v964, %v3042
        %v3045 = vadd.s32 %v965, %v3042
        %vm3046 = vcmp.ge.s32.totalorder %v3043, 0
        %vm3047 = vcmp.ge.s32.totalorder %v3044, 0
        %vm3048 = vcmp.ge.s32.totalorder %v3045, 0
        %vm3049 = vcmp.lt.s32.totalorder %v3043, 40
        %vm3050 = vcmp.lt.s32.totalorder %v3044, 40
        %vm3051 = vcmp.lt.s32.totalorder %v3045, 40
        %vm3052 = vmand %vm3046, %vm3049
        %vm3053 = vmand %vm3047, %vm3050
        %vm3054 = vmand %vm3048, %vm3051
        %v3055 = vsel %vm3052, 1, 0
        %v3056 = vsel %vm3053, 1, 0
        %v3057 = vsel %vm3054, 1, 0
        %vm3058 = vcmp.eq.s32.totalorder %v3055, 1
        %vm3059 = vcmp.eq.s32.totalorder %v3056, 1
        %vm3060 = vcmp.eq.s32.totalorder %v3057, 1
        %v3061 = vsel %vm3058, %v3038, 0.0
        %v3062 = vsel %vm3059, %v3039, 0.0
        %v3063 = vsel %vm3060, %v3040, 0.0
        %3064 = vst [vmem:[%s338 - $0x2] sm:$0xfc] %v3061
        %3065 = vst [vmem:[%s338 + $0x6] sm:$0xff] %v3062
        %3066 = vst [vmem:[%s338 + $0xe] sm:$0x3] %v3063
        %s3067 = sand.u32 %s194, 1
        %s3068 = scalar_lea.sflag [#allocation6], %s3067
        %s3069 = sand.u32 %s194, 1
        %s3070 = smul.addr %s3069, 16
        %s3071 = scalar_lea.vmem [#allocation12], %s3070
        // Predicated region
        $region85: #{tpu_custom_call.1} parent=47 // pred_check
          %p3072 = pneg %p204
        $region86: #{tpu_custom_call.1} parent=47 // pred_check_branch
          %3074 = sbr.rel (%p3072) target = $region88
        $region87: #{tpu_custom_call.1} parent=47 // pred_region
          %s3075 = smul.u32 2, %s30
          %3077 = vsyncadd %s3068, 0
          %s3078 = smul.addr %s29, 6
          %s3079 = sadd.s32 %s3075, %s3078
          %s3080 = smul.addr %s3079, 8
          %s3081 = scalar_lea.hbm %s8, %s3080
          %s3082 = sshll.u32 %s3071, 4
          %s3083 = int_to_ptr.vmem [resolvable:$true] %s3082
          %s3084 = sshll.u32 %s3081, 4
          %s3085 = int_to_ptr.hbm [resolvable:$true] %s3084
          %3090 = dma.vmem_to_hbm [thread:$0]  %s3083, 256, %s3085, %s3068, 128, 128, 8
        $region88: #{tpu_custom_call.1} parent=47 // pred_fallthru
          _
      $region48: #{tpu_custom_call.1} parent=5 // pred_fallthru
        _
      %p3091 = scmp.le.s32.totalorder 2, %s20
      // Predicated region
      $region89: #{tpu_custom_call.1} parent=5 // pred_check
        %p3092 = pneg %p3091
      $region90: #{tpu_custom_call.1} parent=5 // pred_check_branch
        %3094 = sbr.rel (%p3092) target = $region92
      $region91: #{tpu_custom_call.1} parent=5 // pred_region
        %s3095 = ssub.s32 %s20, 2
        // Predicated region
        $region93: #{tpu_custom_call.1} parent=91 // pred_check
          %p3096 = pneg %p210
        $region94: #{tpu_custom_call.1} parent=91 // pred_check_branch
          %3098 = sbr.rel (%p3096) target = $region96
        $region95: #{tpu_custom_call.1} parent=91 // pred_region
          %s3099 = sand.u32 %s195, 1
          %s3100 = scalar_lea.sflag [#allocation6], %s3099
          %s3101 = sand.u32 %s195, 1
          %s3102 = smul.addr %s3101, 16
          %s3103 = scalar_lea.vmem [#allocation12], %s3102
          %3105 = dma.done %s3100, 256
        $region96: #{tpu_custom_call.1} parent=91 // pred_fallthru
          _
      $region92: #{tpu_custom_call.1} parent=5 // pred_fallthru
        _
    $region6: #{tpu_custom_call.1} parent=1 // loop_footer
      %s24 = sadd.s32 1, %s20
    $region7: #{tpu_custom_call.1} parent=1 // loop_footer_branch
      %19 = sbr.rel target = $region3
    $region8: #{tpu_custom_call.1} parent=1 // loop_exit
      _
    %3106 = vsyncpa [#allocation5], 1
    %s3107 = scalar_lea.sflag [#allocation5], 1
    %3108 = vsyncpa %s3107, 1
    %3109 = vsyncpa [#allocation8], 1
    %3110 = vsyncpa [#allocation11], 1
    %3111 = vsyncpa [#allocation6], 1
    %s3112 = scalar_lea.sflag [#allocation6], 1
    %3113 = vsyncpa %s3112, 1
  %3114 = vsyncmov [#allocation3]
  %s3115 = vpop.sfrf %3114
  %p3116 = scmp.eq.s32.totalorder %s3115, 0
  %p3117 = pneg %p3116
  %3119 = shalt.err (%p3117)
  %s3120 = scalar_lea.sflag [#allocation3], 1
  %3121 = vsyncmov %s3120
  %s3122 = vpop.sfrf %3121
  %p3123 = scmp.eq.s32.totalorder %s3122, 0
  %p3124 = pneg %p3123
  %3126 = shalt.err (%p3124)

</llo_original>
